<compile_context>
chip_gen: v7x
topology: tpu7x:2x2x1
jax: 0.10.0
libtpu: 0.0.40
codegen_flags: <defaults>
</compile_context>

<pallas_src>
import jax
import jax.numpy as jnp
from jax.experimental import pallas as pl
from jax.experimental.pallas import tpu as pltpu


# Static network geometry (40x40 single-channel input, as the module implies):
# 40 -> conv(8) 33 -> pool 16 -> conv(4) 13 -> pool 6 -> conv(3) 4 -> pool 2
H0 = W0 = 40
K1, C1 = 8, 64             # conv1: 8x8, 1 -> 64
H1 = W1 = H0 - K1 + 1      # 33
P1 = H1 // 2               # 16
K2, C2 = 4, 64             # conv2: 4x4, 64 -> 64
H2 = W2 = P1 - K2 + 1      # 13
P2 = H2 // 2               # 6
K3, C3 = 3, 32             # conv3: 3x3, 64 -> 32
H3 = W3 = P2 - K3 + 1      # 4
P3 = H3 // 2               # 2

_P1_PAD = 8                # extra scratch rows read by conv2 "full width" taps
_P2_PAD = 4                # extra scratch rows read by conv3 "full width" taps
_BATCH_BLOCK = 8           # max images per grid step (VMEM / overhead tradeoff)

# "Full width" trick invariants: the pools must never read the garbage output
# columns, the merged-tap windows must stay inside the padded scratch, and
# valid output rows must never read the (zeroed) pad rows.
assert P1 == H1 // 2 and P2 == H2 // 2 and P3 == H3 // 2
assert 2 * P2 <= W2 and 2 * P3 <= W3                                  # pools skip garbage cols
assert P1 * (K2 - 1) + (K2 - 1) + H2 * P1 - 1 < P1 * P1 + _P1_PAD     # conv2 reads in-bounds
assert P2 * (K3 - 1) + (K3 - 1) + H3 * P2 - 1 < P2 * P2 + _P2_PAD     # conv3 reads in-bounds
assert (2 * P2 - 1) * (P1 + 1) < H2 * P1                              # pool2 reads in-bounds
assert (2 * P3 - 1) * (P2 + 1) < H3 * P2                              # pool3 reads in-bounds
assert P1 * (H2 - 1 + K2 - 1) + (W2 - 1 + K2 - 1) < P1 * P1           # valid conv2 rows skip pads
assert P2 * (H3 - 1 + K3 - 1) + (W3 - 1 + K3 - 1) < P2 * P2           # valid conv3 rows skip pads


def _make_kernel(batch_block):
    bb = batch_block
    f32 = jnp.float32
    bf16 = jnp.bfloat16
    n1 = P1 * P1                         # 256 pooled-1 pixels

    def kernel(patches_ref, w1_ref, b1_ref, w2_ref, b2_ref, w3_ref, b3_ref,
               out_ref, a1_ref, p1_ref, a2_ref, p2_ref):
        # Zero the pad rows once.  Scratch persists across grid steps and the
        # pads are never overwritten; they only feed output columns that the
        # following pool discards, but zeroing keeps things deterministic.
        @pl.when(pl.program_id(0) == 0)
        def _zero_pads():
            p1_ref[pl.ds(n1, _P1_PAD), :] = jnp.zeros((_P1_PAD, C1), f32)
            p2_ref[pl.ds(P2 * P2, _P2_PAD), :] = jnp.zeros((_P2_PAD, C2), f32)

        @pl.loop(0, bb)
        def _one_image(b):
            # ---- conv1: (1024, 64) @ (64, 64) bf16 im2col matmul -> f32 ----
            a1_ref[...] = jnp.dot(patches_ref[b], w1_ref[...],
                                  preferred_element_type=f32)

            # ---- pool1 (33x33 -> 16x16): patch rows are in pooling-phase
            # planar order, so the pool is a max over 4 contiguous 256-row
            # blocks.  bias + ReLU applied here (they commute with max).
            m = jnp.maximum(
                jnp.maximum(a1_ref[pl.ds(0, n1), :], a1_ref[pl.ds(n1, n1), :]),
                jnp.maximum(a1_ref[pl.ds(2 * n1, n1), :],
                            a1_ref[pl.ds(3 * n1, n1), :]))
            p1_ref[pl.ds(0, n1), :] = jnp.maximum(m + b1_ref[...], 0.0)

            # ---- conv2: tap accumulation with kw taps merged along K=256 ----
            # Rows r = 16*oh + ow (oh<13, ow<16); columns ow >= 13 are garbage
            # that pool2 never reads ("full width" trick).
            acc2 = None
            for kh in range(K2):
                lhs = jnp.concatenate(
                    [p1_ref[pl.ds(P1 * kh + kw, H2 * P1), :].astype(bf16)
                     for kw in range(K2)], axis=-1)               # (208, 256)
                t = jnp.dot(lhs, w2_ref[kh], preferred_element_type=f32)
                acc2 = t if acc2 is None else acc2 + t
            a2_ref[...] = acc2                                    # raw, pre-bias

            # ---- pool2 (13x13 -> 6x6) + bias + ReLU ----
            for p in range(P2):
                base = 2 * p * P1
                r00 = a2_ref[pl.ds(base, P2, stride=2), :]
                r01 = a2_ref[pl.ds(base + 1, P2, stride=2), :]
                r10 = a2_ref[pl.ds(base + P1, P2, stride=2), :]
                r11 = a2_ref[pl.ds(base + P1 + 1, P2, stride=2), :]
                mp = jnp.maximum(jnp.maximum(r00, r01), jnp.maximum(r10, r11))
                p2_ref[pl.ds(P2 * p, P2), :] = jnp.maximum(mp + b2_ref[...], 0.0)

            # ---- conv3: kw taps merged along K=192 ----
            acc3 = None
            for kh in range(K3):
                lhs = jnp.concatenate(
                    [p2_ref[pl.ds(P2 * kh + kw, H3 * P2), :].astype(bf16)
                     for kw in range(K3)], axis=-1)               # (24, 192)
                t = jnp.dot(lhs, w3_ref[kh], preferred_element_type=f32)
                acc3 = t if acc3 is None else acc3 + t            # (24, 32)

            # ---- pool3 (4x4 -> 2x2) + bias + ReLU, fused with global mean ---
            s = None
            for p in range(P3):
                for q in range(P3):
                    r = 2 * p * P2 + 2 * q
                    mq = jnp.maximum(
                        jnp.maximum(acc3[r:r + 1, :], acc3[r + 1:r + 2, :]),
                        jnp.maximum(acc3[r + P2:r + P2 + 1, :],
                                    acc3[r + P2 + 1:r + P2 + 2, :]))
                    mq = jnp.maximum(mq + b3_ref[...], 0.0)
                    s = mq if s is None else s + mq
            out_ref[0, pl.ds(b, 1), :] = s * (1.0 / (P3 * P3))

    return kernel


def _im2col_conv1(x):
    # (N,1,40,40) -> (N, 1024, 64) patches.  Rows are in pooling-phase planar
    # order: row [phase*256 + 16*p + q] is the 8x8 patch at pixel (2p+dy, 2q+dx)
    # with phase = 2*dy + dx, so pool1 reduces to a max over 4 contiguous
    # 256-row blocks.  Conv1 outputs the 2x2 pool never reads (row/col 32) are
    # simply not generated.  Column k = 8*kh + kw.
    # TODO(synk): if profiling shows this wrapper im2col / the patch DMA
    # dominating (most likely on v5e), DMA the raw (40,40) image into the
    # kernel and build the patch columns in VMEM instead.
    n = x.shape[0]
    win = jnp.stack([x[:, 0, kh:kh + H1, kw:kw + W1]
                     for kh in range(K1) for kw in range(K1)], axis=-1)  # (n,33,33,64)
    e = 2 * P1
    phases = (win[:, 0:e:2, 0:e:2, :], win[:, 0:e:2, 1:e:2, :],
              win[:, 1:e:2, 0:e:2, :], win[:, 1:e:2, 1:e:2, :])
    return jnp.concatenate(
        [ph.reshape(n, P1 * P1, K1 * K1) for ph in phases], axis=1)


@jax.jit
def network_forward(x, params):
    (w1, b1, w2, b2, w3, b3) = params
    n = x.shape[0]
    x = x.astype(jnp.float32)

    # Layout plumbing + bf16 casts (done once, in XLA).
    patches = _im2col_conv1(x).astype(jnp.bfloat16)                   # (n,1024,64)
    w1m = jnp.transpose(w1, (2, 3, 1, 0)).reshape(K1 * K1, C1).astype(jnp.bfloat16)
    w2m = jnp.transpose(w2, (2, 3, 1, 0)).reshape(K2, K2 * C1, C2).astype(jnp.bfloat16)
    w3m = jnp.transpose(w3, (2, 3, 1, 0)).reshape(K3, K3 * C2, C3).astype(jnp.bfloat16)
    b1m = b1.reshape(1, C1).astype(jnp.float32)
    b2m = b2.reshape(1, C2).astype(jnp.float32)
    b3m = b3.reshape(1, C3).astype(jnp.float32)

    # Per-step batch: cap at _BATCH_BLOCK, but keep >= 2 grid steps when
    # possible so both v7x TensorCores get work.
    bb = max(1, min(_BATCH_BLOCK, (n + 1) // 2))
    n_steps = pl.cdiv(n, bb)
    n_pad = n_steps * bb
    if n_pad != n:
        patches = jnp.pad(patches, ((0, n_pad - n), (0, 0), (0, 0)))

    out = pl.pallas_call(
        _make_kernel(bb),
        out_shape=jax.ShapeDtypeStruct((n_steps, bb, C3), jnp.float32),
        grid=(n_steps,),
        in_specs=[
            pl.BlockSpec((bb, 4 * P1 * P1, K1 * K1), lambda i: (i, 0, 0)),  # patches
            pl.BlockSpec((K1 * K1, C1), lambda i: (0, 0)),                  # w1
            pl.BlockSpec((1, C1), lambda i: (0, 0)),                        # b1
            pl.BlockSpec((K2, K2 * C1, C2), lambda i: (0, 0, 0)),           # w2 (kh, kw*cin, cout)
            pl.BlockSpec((1, C2), lambda i: (0, 0)),                        # b2
            pl.BlockSpec((K3, K3 * C2, C3), lambda i: (0, 0, 0)),           # w3 (kh, kw*cin, cout)
            pl.BlockSpec((1, C3), lambda i: (0, 0)),                        # b3
        ],
        out_specs=pl.BlockSpec((1, bb, C3), lambda i: (i, 0, 0)),
        scratch_shapes=[
            pltpu.VMEM((4 * P1 * P1, C1), jnp.float32),          # conv1 out (1024, 64)
            pltpu.VMEM((P1 * P1 + _P1_PAD, C1), jnp.float32),    # pool1 out (264, 64)
            pltpu.VMEM((H2 * P1, C2), jnp.float32),              # conv2 out (208, 64)
            pltpu.VMEM((P2 * P2 + _P2_PAD, C2), jnp.float32),    # pool2 out (40, 64)
        ],
        # ~3 MiB total (scratch + double-buffered bf16 patch block + weights)
        # at bb=8: comfortably under every chip's default scoped VMEM limit,
        # so vmem_limit_bytes is left at its default.
        compiler_params=pltpu.CompilerParams(
            dimension_semantics=("parallel",)),
    )(patches, w1m, b1m, w2m, b2m, w3m, b3m)
    return out.reshape(n_pad, C3)[:n]


# ----------------------------------------------------------------------------
# pure-JAX reference for a correctness sanity check
# ----------------------------------------------------------------------------
def reference_forward(x, params):
    (w1, b1, w2, b2, w3, b3) = params

    def conv(x, w, b):
        y = jax.lax.conv_general_dilated(
            x, w, window_strides=(1, 1), padding="VALID",
            dimension_numbers=("NCHW", "OIHW", "NCHW"),
            precision=jax.lax.Precision.HIGHEST)
        return jax.nn.relu(y + b[None, :, None, None])

    def pool(x):
        return jax.lax.reduce_window(
            x, -jnp.inf, jax.lax.max, (1, 1, 2, 2), (1, 1, 2, 2), "VALID")

    x = pool(conv(x, w1, b1))
    x = pool(conv(x, w2, b2))
    x = pool(conv(x, w3, b3))
    n, c = x.shape[:2]
    return x.reshape(n, c, -1).mean(-1)


if __name__ == "__main__":
    key = jax.random.PRNGKey(0)
    kx, kw1, kb1, kw2, kb2, kw3, kb3 = jax.random.split(key, 7)

    # 40x40 single-channel images: 40 -> 33 -> 16 -> 13 -> 6 -> 4 -> 2
    x = jax.random.normal(kx, (4, 1, H0, W0), jnp.float32)

    w1 = 0.10 * jax.random.normal(kw1, (C1, 1, K1, K1), jnp.float32)
    b1 = 0.10 * jax.random.normal(kb1, (C1,), jnp.float32)
    w2 = 0.05 * jax.random.normal(kw2, (C2, C1, K2, K2), jnp.float32)
    b2 = 0.10 * jax.random.normal(kb2, (C2,), jnp.float32)
    w3 = 0.05 * jax.random.normal(kw3, (C3, C2, K3, K3), jnp.float32)
    b3 = 0.10 * jax.random.normal(kb3, (C3,), jnp.float32)
    params = (w1, b1, w2, b2, w3, b3)

    out = jax.block_until_ready(network_forward(x, params))
    assert out.shape == (4, C3), out.shape

    ref = jax.block_until_ready(reference_forward(x, params))
    max_err = float(jnp.max(jnp.abs(out - ref)))
    assert jnp.allclose(out, ref, rtol=2e-2, atol=2e-2), max_err

    print("KERNEL_OK")
</pallas_src>

<mosaic_0001>
module attributes {stable_mosaic.version = 11 : i64} {
  func.func @kernel(%arg0: i32, %arg1: memref<2x1024x64xbf16, #tpu.memory_space<vmem>>, %arg2: memref<64x64xbf16, #tpu.memory_space<vmem>>, %arg3: memref<1x64xf32, #tpu.memory_space<vmem>>, %arg4: memref<4x256x64xbf16, #tpu.memory_space<vmem>>, %arg5: memref<1x64xf32, #tpu.memory_space<vmem>>, %arg6: memref<3x192x32xbf16, #tpu.memory_space<vmem>>, %arg7: memref<1x32xf32, #tpu.memory_space<vmem>>, %arg8: memref<1x2x32xf32, #tpu.memory_space<vmem>>, %arg9: memref<1024x64xf32, #tpu.memory_space<vmem>>, %arg10: memref<264x64xf32, #tpu.memory_space<vmem>>, %arg11: memref<208x64xf32, #tpu.memory_space<vmem>>, %arg12: memref<40x64xf32, #tpu.memory_space<vmem>>) attributes {dimension_semantics = [#tpu.dimension_semantics<parallel>], iteration_bounds = array<i64: 2>, scalar_prefetch = 0 : i64, scratch_operands = 4 : i64, tpu.core_type = #tpu.core_type<tc>, window_params = [{transform_indices = @transform_0, window_bounds = array<i64: 2, 1024, 64>}, {pipeline_mode = #tpu.pipeline_mode<synchronous>, transform_indices = @transform_1, window_bounds = array<i64: 64, 64>}, {pipeline_mode = #tpu.pipeline_mode<synchronous>, transform_indices = @transform_2, window_bounds = array<i64: 1, 64>}, {pipeline_mode = #tpu.pipeline_mode<synchronous>, transform_indices = @transform_3, window_bounds = array<i64: 4, 256, 64>}, {pipeline_mode = #tpu.pipeline_mode<synchronous>, transform_indices = @transform_4, window_bounds = array<i64: 1, 64>}, {pipeline_mode = #tpu.pipeline_mode<synchronous>, transform_indices = @transform_5, window_bounds = array<i64: 3, 192, 32>}, {pipeline_mode = #tpu.pipeline_mode<synchronous>, transform_indices = @transform_6, window_bounds = array<i64: 1, 32>}, {transform_indices = @transform_7, window_bounds = array<i64: 1, 2, 32>}]} {
    %c0_i32 = arith.constant 0 : i32
    %0 = arith.cmpi eq, %arg0, %c0_i32 : i32
    %1 = arith.extui %0 : i1 to i32
    %c0_i32_0 = arith.constant 0 : i32
    %2 = arith.cmpi ne, %1, %c0_i32_0 : i32
    scf.if %2 {
      %cst = arith.constant 0.000000e+00 : f32
      %4 = vector.broadcast %cst : f32 to vector<8x64xf32>
      %c256 = arith.constant 256 : index
      %c0 = arith.constant 0 : index
      %5 = vector.load %arg10[%c256, %c0] : memref<264x64xf32, #tpu.memory_space<vmem>>, vector<8x64xf32>
      tpu.vector_store %arg10[%c256, %c0], %4 {strides = array<i32>} : memref<264x64xf32, #tpu.memory_space<vmem>>, vector<8x64xf32>,
      %cst_3 = arith.constant 0.000000e+00 : f32
      %6 = vector.broadcast %cst_3 : f32 to vector<4x64xf32>
      %c36 = arith.constant 36 : index
      %c0_4 = arith.constant 0 : index
      %7 = vector.load %arg12[%c36, %c0_4] : memref<40x64xf32, #tpu.memory_space<vmem>>, vector<4x64xf32>
      tpu.vector_store %arg12[%c36, %c0_4], %6 {strides = array<i32>} : memref<40x64xf32, #tpu.memory_space<vmem>>, vector<4x64xf32>,
    } else {
    }
    %c0_i32_1 = arith.constant 0 : i32
    %c2_i32 = arith.constant 2 : i32
    %3 = arith.addi %c0_i32_1, %c2_i32 : i32
    %c1_i32 = arith.constant 1 : i32
    scf.for %arg13 = %c0_i32_1 to %3 step %c1_i32  : i32 {
      %c1_i32_3 = arith.constant 1 : i32
      %4 = arith.muli %arg13, %c1_i32_3 : i32
      %c0_i32_4 = arith.constant 0 : i32
      %5 = arith.addi %c0_i32_4, %4 : i32
      %6 = arith.index_cast %5 : i32 to index
      %c0 = arith.constant 0 : index
      %c0_5 = arith.constant 0 : index
      %7 = vector.load %arg1[%6, %c0, %c0_5] : memref<2x1024x64xbf16, #tpu.memory_space<vmem>>, vector<1x1024x64xbf16>
      %8 = vector.shape_cast %7 : vector<1x1024x64xbf16> to vector<1024x64xbf16>
      %c0_6 = arith.constant 0 : index
      %c0_7 = arith.constant 0 : index
      %9 = vector.load %arg2[%c0_6, %c0_7] : memref<64x64xbf16, #tpu.memory_space<vmem>>, vector<64x64xbf16>
      %cst = arith.constant dense<0.000000e+00> : vector<1024x64xf32>
      %10 = tpu.matmul %8, %9, %cst {dimension_numbers = #tpu.dot_dimension_numbers<[1], [0], [0], [1], [0, 0, 1, 1], [], []>} : vector<1024x64xbf16>, vector<64x64xbf16>, vector<1024x64xf32> -> vector<1024x64xf32>
      %c0_8 = arith.constant 0 : index
      %c0_9 = arith.constant 0 : index
      %11 = vector.load %arg9[%c0_8, %c0_9] : memref<1024x64xf32, #tpu.memory_space<vmem>>, vector<1024x64xf32>
      tpu.vector_store %arg9[%c0_8, %c0_9], %10 {strides = array<i32>} : memref<1024x64xf32, #tpu.memory_space<vmem>>, vector<1024x64xf32>,
      %c0_10 = arith.constant 0 : index
      %c0_11 = arith.constant 0 : index
      %12 = vector.load %arg9[%c0_10, %c0_11] : memref<1024x64xf32, #tpu.memory_space<vmem>>, vector<256x64xf32>
      %c256 = arith.constant 256 : index
      %c0_12 = arith.constant 0 : index
      %13 = vector.load %arg9[%c256, %c0_12] : memref<1024x64xf32, #tpu.memory_space<vmem>>, vector<256x64xf32>
      %14 = arith.maximumf %12, %13 : vector<256x64xf32>
      %c512 = arith.constant 512 : index
      %c0_13 = arith.constant 0 : index
      %15 = vector.load %arg9[%c512, %c0_13] : memref<1024x64xf32, #tpu.memory_space<vmem>>, vector<256x64xf32>
      %c768 = arith.constant 768 : index
      %c0_14 = arith.constant 0 : index
      %16 = vector.load %arg9[%c768, %c0_14] : memref<1024x64xf32, #tpu.memory_space<vmem>>, vector<256x64xf32>
      %17 = arith.maximumf %15, %16 : vector<256x64xf32>
      %18 = arith.maximumf %14, %17 : vector<256x64xf32>
      %c0_15 = arith.constant 0 : index
      %c0_16 = arith.constant 0 : index
      %19 = vector.load %arg3[%c0_15, %c0_16] : memref<1x64xf32, #tpu.memory_space<vmem>>, vector<1x64xf32>
      %20 = vector.broadcast %19 : vector<1x64xf32> to vector<256x64xf32>
      %21 = arith.addf %18, %20 : vector<256x64xf32>
      %cst_17 = arith.constant 0.000000e+00 : f32
      %22 = vector.broadcast %cst_17 : f32 to vector<256x64xf32>
      %23 = arith.maximumf %21, %22 : vector<256x64xf32>
      %c0_18 = arith.constant 0 : index
      %c0_19 = arith.constant 0 : index
      %24 = vector.load %arg10[%c0_18, %c0_19] : memref<264x64xf32, #tpu.memory_space<vmem>>, vector<256x64xf32>
      tpu.vector_store %arg10[%c0_18, %c0_19], %23 {strides = array<i32>} : memref<264x64xf32, #tpu.memory_space<vmem>>, vector<256x64xf32>,
      %c0_20 = arith.constant 0 : index
      %c0_21 = arith.constant 0 : index
      %25 = vector.load %arg10[%c0_20, %c0_21] : memref<264x64xf32, #tpu.memory_space<vmem>>, vector<208x64xf32>
      %26 = arith.truncf %25 : vector<208x64xf32> to vector<208x64xbf16>
      %c1 = arith.constant 1 : index
      %c0_22 = arith.constant 0 : index
      %27 = vector.load %arg10[%c1, %c0_22] : memref<264x64xf32, #tpu.memory_space<vmem>>, vector<208x64xf32>
      %28 = arith.truncf %27 : vector<208x64xf32> to vector<208x64xbf16>
      %c2 = arith.constant 2 : index
      %c0_23 = arith.constant 0 : index
      %29 = vector.load %arg10[%c2, %c0_23] : memref<264x64xf32, #tpu.memory_space<vmem>>, vector<208x64xf32>
      %30 = arith.truncf %29 : vector<208x64xf32> to vector<208x64xbf16>
      %c3 = arith.constant 3 : index
      %c0_24 = arith.constant 0 : index
      %31 = vector.load %arg10[%c3, %c0_24] : memref<264x64xf32, #tpu.memory_space<vmem>>, vector<208x64xf32>
      %32 = arith.truncf %31 : vector<208x64xf32> to vector<208x64xbf16>
      %33 = tpu.concatenate %26, %28, %30, %32 in 1 : vector<208x64xbf16>, vector<208x64xbf16>, vector<208x64xbf16>, vector<208x64xbf16> -> vector<208x256xbf16>
      %c0_25 = arith.constant 0 : index
      %c0_26 = arith.constant 0 : index
      %c0_27 = arith.constant 0 : index
      %34 = vector.load %arg4[%c0_25, %c0_26, %c0_27] : memref<4x256x64xbf16, #tpu.memory_space<vmem>>, vector<1x256x64xbf16>
      %35 = vector.shape_cast %34 : vector<1x256x64xbf16> to vector<256x64xbf16>
      %cst_28 = arith.constant dense<0.000000e+00> : vector<208x64xf32>
      %36 = tpu.matmul %33, %35, %cst_28 {dimension_numbers = #tpu.dot_dimension_numbers<[1], [0], [0], [1], [0, 0, 1, 1], [], []>} : vector<208x256xbf16>, vector<256x64xbf16>, vector<208x64xf32> -> vector<208x64xf32>
      %c16 = arith.constant 16 : index
      %c0_29 = arith.constant 0 : index
      %37 = vector.load %arg10[%c16, %c0_29] : memref<264x64xf32, #tpu.memory_space<vmem>>, vector<208x64xf32>
      %38 = arith.truncf %37 : vector<208x64xf32> to vector<208x64xbf16>
      %c17 = arith.constant 17 : index
      %c0_30 = arith.constant 0 : index
      %39 = vector.load %arg10[%c17, %c0_30] : memref<264x64xf32, #tpu.memory_space<vmem>>, vector<208x64xf32>
      %40 = arith.truncf %39 : vector<208x64xf32> to vector<208x64xbf16>
      %c18 = arith.constant 18 : index
      %c0_31 = arith.constant 0 : index
      %41 = vector.load %arg10[%c18, %c0_31] : memref<264x64xf32, #tpu.memory_space<vmem>>, vector<208x64xf32>
      %42 = arith.truncf %41 : vector<208x64xf32> to vector<208x64xbf16>
      %c19 = arith.constant 19 : index
      %c0_32 = arith.constant 0 : index
      %43 = vector.load %arg10[%c19, %c0_32] : memref<264x64xf32, #tpu.memory_space<vmem>>, vector<208x64xf32>
      %44 = arith.truncf %43 : vector<208x64xf32> to vector<208x64xbf16>
      %45 = tpu.concatenate %38, %40, %42, %44 in 1 : vector<208x64xbf16>, vector<208x64xbf16>, vector<208x64xbf16>, vector<208x64xbf16> -> vector<208x256xbf16>
      %c1_33 = arith.constant 1 : index
      %c0_34 = arith.constant 0 : index
      %c0_35 = arith.constant 0 : index
      %46 = vector.load %arg4[%c1_33, %c0_34, %c0_35] : memref<4x256x64xbf16, #tpu.memory_space<vmem>>, vector<1x256x64xbf16>
      %47 = vector.shape_cast %46 : vector<1x256x64xbf16> to vector<256x64xbf16>
      %cst_36 = arith.constant dense<0.000000e+00> : vector<208x64xf32>
      %48 = tpu.matmul %45, %47, %cst_36 {dimension_numbers = #tpu.dot_dimension_numbers<[1], [0], [0], [1], [0, 0, 1, 1], [], []>} : vector<208x256xbf16>, vector<256x64xbf16>, vector<208x64xf32> -> vector<208x64xf32>
      %49 = arith.addf %36, %48 : vector<208x64xf32>
      %c32 = arith.constant 32 : index
      %c0_37 = arith.constant 0 : index
      %50 = vector.load %arg10[%c32, %c0_37] : memref<264x64xf32, #tpu.memory_space<vmem>>, vector<208x64xf32>
      %51 = arith.truncf %50 : vector<208x64xf32> to vector<208x64xbf16>
      %c33 = arith.constant 33 : index
      %c0_38 = arith.constant 0 : index
      %52 = vector.load %arg10[%c33, %c0_38] : memref<264x64xf32, #tpu.memory_space<vmem>>, vector<208x64xf32>
      %53 = arith.truncf %52 : vector<208x64xf32> to vector<208x64xbf16>
      %c34 = arith.constant 34 : index
      %c0_39 = arith.constant 0 : index
      %54 = vector.load %arg10[%c34, %c0_39] : memref<264x64xf32, #tpu.memory_space<vmem>>, vector<208x64xf32>
      %55 = arith.truncf %54 : vector<208x64xf32> to vector<208x64xbf16>
      %c35 = arith.constant 35 : index
      %c0_40 = arith.constant 0 : index
      %56 = vector.load %arg10[%c35, %c0_40] : memref<264x64xf32, #tpu.memory_space<vmem>>, vector<208x64xf32>
      %57 = arith.truncf %56 : vector<208x64xf32> to vector<208x64xbf16>
      %58 = tpu.concatenate %51, %53, %55, %57 in 1 : vector<208x64xbf16>, vector<208x64xbf16>, vector<208x64xbf16>, vector<208x64xbf16> -> vector<208x256xbf16>
      %c2_41 = arith.constant 2 : index
      %c0_42 = arith.constant 0 : index
      %c0_43 = arith.constant 0 : index
      %59 = vector.load %arg4[%c2_41, %c0_42, %c0_43] : memref<4x256x64xbf16, #tpu.memory_space<vmem>>, vector<1x256x64xbf16>
      %60 = vector.shape_cast %59 : vector<1x256x64xbf16> to vector<256x64xbf16>
      %cst_44 = arith.constant dense<0.000000e+00> : vector<208x64xf32>
      %61 = tpu.matmul %58, %60, %cst_44 {dimension_numbers = #tpu.dot_dimension_numbers<[1], [0], [0], [1], [0, 0, 1, 1], [], []>} : vector<208x256xbf16>, vector<256x64xbf16>, vector<208x64xf32> -> vector<208x64xf32>
      %62 = arith.addf %49, %61 : vector<208x64xf32>
      %c48 = arith.constant 48 : index
      %c0_45 = arith.constant 0 : index
      %63 = vector.load %arg10[%c48, %c0_45] : memref<264x64xf32, #tpu.memory_space<vmem>>, vector<208x64xf32>
      %64 = arith.truncf %63 : vector<208x64xf32> to vector<208x64xbf16>
      %c49 = arith.constant 49 : index
      %c0_46 = arith.constant 0 : index
      %65 = vector.load %arg10[%c49, %c0_46] : memref<264x64xf32, #tpu.memory_space<vmem>>, vector<208x64xf32>
      %66 = arith.truncf %65 : vector<208x64xf32> to vector<208x64xbf16>
      %c50 = arith.constant 50 : index
      %c0_47 = arith.constant 0 : index
      %67 = vector.load %arg10[%c50, %c0_47] : memref<264x64xf32, #tpu.memory_space<vmem>>, vector<208x64xf32>
      %68 = arith.truncf %67 : vector<208x64xf32> to vector<208x64xbf16>
      %c51 = arith.constant 51 : index
      %c0_48 = arith.constant 0 : index
      %69 = vector.load %arg10[%c51, %c0_48] : memref<264x64xf32, #tpu.memory_space<vmem>>, vector<208x64xf32>
      %70 = arith.truncf %69 : vector<208x64xf32> to vector<208x64xbf16>
      %71 = tpu.concatenate %64, %66, %68, %70 in 1 : vector<208x64xbf16>, vector<208x64xbf16>, vector<208x64xbf16>, vector<208x64xbf16> -> vector<208x256xbf16>
      %c3_49 = arith.constant 3 : index
      %c0_50 = arith.constant 0 : index
      %c0_51 = arith.constant 0 : index
      %72 = vector.load %arg4[%c3_49, %c0_50, %c0_51] : memref<4x256x64xbf16, #tpu.memory_space<vmem>>, vector<1x256x64xbf16>
      %73 = vector.shape_cast %72 : vector<1x256x64xbf16> to vector<256x64xbf16>
      %cst_52 = arith.constant dense<0.000000e+00> : vector<208x64xf32>
      %74 = tpu.matmul %71, %73, %cst_52 {dimension_numbers = #tpu.dot_dimension_numbers<[1], [0], [0], [1], [0, 0, 1, 1], [], []>} : vector<208x256xbf16>, vector<256x64xbf16>, vector<208x64xf32> -> vector<208x64xf32>
      %75 = arith.addf %62, %74 : vector<208x64xf32>
      %c0_53 = arith.constant 0 : index
      %c0_54 = arith.constant 0 : index
      %76 = vector.load %arg11[%c0_53, %c0_54] : memref<208x64xf32, #tpu.memory_space<vmem>>, vector<208x64xf32>
      tpu.vector_store %arg11[%c0_53, %c0_54], %75 {strides = array<i32>} : memref<208x64xf32, #tpu.memory_space<vmem>>, vector<208x64xf32>,
      %c0_55 = arith.constant 0 : index
      %c0_56 = arith.constant 0 : index
      %77 = tpu.strided_load %arg11[%c0_55, %c0_56] {strides = array<i32: 2, 1>} : memref<208x64xf32, #tpu.memory_space<vmem>>, vector<6x64xf32>
      %c1_57 = arith.constant 1 : index
      %c0_58 = arith.constant 0 : index
      %78 = tpu.strided_load %arg11[%c1_57, %c0_58] {strides = array<i32: 2, 1>} : memref<208x64xf32, #tpu.memory_space<vmem>>, vector<6x64xf32>
      %c16_59 = arith.constant 16 : index
      %c0_60 = arith.constant 0 : index
      %79 = tpu.strided_load %arg11[%c16_59, %c0_60] {strides = array<i32: 2, 1>} : memref<208x64xf32, #tpu.memory_space<vmem>>, vector<6x64xf32>
      %c17_61 = arith.constant 17 : index
      %c0_62 = arith.constant 0 : index
      %80 = tpu.strided_load %arg11[%c17_61, %c0_62] {strides = array<i32: 2, 1>} : memref<208x64xf32, #tpu.memory_space<vmem>>, vector<6x64xf32>
      %81 = arith.maximumf %77, %78 : vector<6x64xf32>
      %82 = arith.maximumf %79, %80 : vector<6x64xf32>
      %83 = arith.maximumf %81, %82 : vector<6x64xf32>
      %c0_63 = arith.constant 0 : index
      %c0_64 = arith.constant 0 : index
      %84 = vector.load %arg5[%c0_63, %c0_64] : memref<1x64xf32, #tpu.memory_space<vmem>>, vector<1x64xf32>
      %85 = vector.broadcast %84 : vector<1x64xf32> to vector<6x64xf32>
      %86 = arith.addf %83, %85 : vector<6x64xf32>
      %cst_65 = arith.constant 0.000000e+00 : f32
      %87 = vector.broadcast %cst_65 : f32 to vector<6x64xf32>
      %88 = arith.maximumf %86, %87 : vector<6x64xf32>
      %c0_66 = arith.constant 0 : index
      %c0_67 = arith.constant 0 : index
      %89 = vector.load %arg12[%c0_66, %c0_67] : memref<40x64xf32, #tpu.memory_space<vmem>>, vector<6x64xf32>
      tpu.vector_store %arg12[%c0_66, %c0_67], %88 {strides = array<i32>} : memref<40x64xf32, #tpu.memory_space<vmem>>, vector<6x64xf32>,
      %c32_68 = arith.constant 32 : index
      %c0_69 = arith.constant 0 : index
      %90 = tpu.strided_load %arg11[%c32_68, %c0_69] {strides = array<i32: 2, 1>} : memref<208x64xf32, #tpu.memory_space<vmem>>, vector<6x64xf32>
      %c33_70 = arith.constant 33 : index
      %c0_71 = arith.constant 0 : index
      %91 = tpu.strided_load %arg11[%c33_70, %c0_71] {strides = array<i32: 2, 1>} : memref<208x64xf32, #tpu.memory_space<vmem>>, vector<6x64xf32>
      %c48_72 = arith.constant 48 : index
      %c0_73 = arith.constant 0 : index
      %92 = tpu.strided_load %arg11[%c48_72, %c0_73] {strides = array<i32: 2, 1>} : memref<208x64xf32, #tpu.memory_space<vmem>>, vector<6x64xf32>
      %c49_74 = arith.constant 49 : index
      %c0_75 = arith.constant 0 : index
      %93 = tpu.strided_load %arg11[%c49_74, %c0_75] {strides = array<i32: 2, 1>} : memref<208x64xf32, #tpu.memory_space<vmem>>, vector<6x64xf32>
      %94 = arith.maximumf %90, %91 : vector<6x64xf32>
      %95 = arith.maximumf %92, %93 : vector<6x64xf32>
      %96 = arith.maximumf %94, %95 : vector<6x64xf32>
      %c0_76 = arith.constant 0 : index
      %c0_77 = arith.constant 0 : index
      %97 = vector.load %arg5[%c0_76, %c0_77] : memref<1x64xf32, #tpu.memory_space<vmem>>, vector<1x64xf32>
      %98 = vector.broadcast %97 : vector<1x64xf32> to vector<6x64xf32>
      %99 = arith.addf %96, %98 : vector<6x64xf32>
      %cst_78 = arith.constant 0.000000e+00 : f32
      %100 = vector.broadcast %cst_78 : f32 to vector<6x64xf32>
      %101 = arith.maximumf %99, %100 : vector<6x64xf32>
      %c6 = arith.constant 6 : index
      %c0_79 = arith.constant 0 : index
      %102 = vector.load %arg12[%c6, %c0_79] : memref<40x64xf32, #tpu.memory_space<vmem>>, vector<6x64xf32>
      tpu.vector_store %arg12[%c6, %c0_79], %101 {strides = array<i32>} : memref<40x64xf32, #tpu.memory_space<vmem>>, vector<6x64xf32>,
      %c64 = arith.constant 64 : index
      %c0_80 = arith.constant 0 : index
      %103 = tpu.strided_load %arg11[%c64, %c0_80] {strides = array<i32: 2, 1>} : memref<208x64xf32, #tpu.memory_space<vmem>>, vector<6x64xf32>
      %c65 = arith.constant 65 : index
      %c0_81 = arith.constant 0 : index
      %104 = tpu.strided_load %arg11[%c65, %c0_81] {strides = array<i32: 2, 1>} : memref<208x64xf32, #tpu.memory_space<vmem>>, vector<6x64xf32>
      %c80 = arith.constant 80 : index
      %c0_82 = arith.constant 0 : index
      %105 = tpu.strided_load %arg11[%c80, %c0_82] {strides = array<i32: 2, 1>} : memref<208x64xf32, #tpu.memory_space<vmem>>, vector<6x64xf32>
      %c81 = arith.constant 81 : index
      %c0_83 = arith.constant 0 : index
      %106 = tpu.strided_load %arg11[%c81, %c0_83] {strides = array<i32: 2, 1>} : memref<208x64xf32, #tpu.memory_space<vmem>>, vector<6x64xf32>
      %107 = arith.maximumf %103, %104 : vector<6x64xf32>
      %108 = arith.maximumf %105, %106 : vector<6x64xf32>
      %109 = arith.maximumf %107, %108 : vector<6x64xf32>
      %c0_84 = arith.constant 0 : index
      %c0_85 = arith.constant 0 : index
      %110 = vector.load %arg5[%c0_84, %c0_85] : memref<1x64xf32, #tpu.memory_space<vmem>>, vector<1x64xf32>
      %111 = vector.broadcast %110 : vector<1x64xf32> to vector<6x64xf32>
      %112 = arith.addf %109, %111 : vector<6x64xf32>
      %cst_86 = arith.constant 0.000000e+00 : f32
      %113 = vector.broadcast %cst_86 : f32 to vector<6x64xf32>
      %114 = arith.maximumf %112, %113 : vector<6x64xf32>
      %c12 = arith.constant 12 : index
      %c0_87 = arith.constant 0 : index
      %115 = vector.load %arg12[%c12, %c0_87] : memref<40x64xf32, #tpu.memory_space<vmem>>, vector<6x64xf32>
      tpu.vector_store %arg12[%c12, %c0_87], %114 {strides = array<i32>} : memref<40x64xf32, #tpu.memory_space<vmem>>, vector<6x64xf32>,
      %c96 = arith.constant 96 : index
      %c0_88 = arith.constant 0 : index
      %116 = tpu.strided_load %arg11[%c96, %c0_88] {strides = array<i32: 2, 1>} : memref<208x64xf32, #tpu.memory_space<vmem>>, vector<6x64xf32>
      %c97 = arith.constant 97 : index
      %c0_89 = arith.constant 0 : index
      %117 = tpu.strided_load %arg11[%c97, %c0_89] {strides = array<i32: 2, 1>} : memref<208x64xf32, #tpu.memory_space<vmem>>, vector<6x64xf32>
      %c112 = arith.constant 112 : index
      %c0_90 = arith.constant 0 : index
      %118 = tpu.strided_load %arg11[%c112, %c0_90] {strides = array<i32: 2, 1>} : memref<208x64xf32, #tpu.memory_space<vmem>>, vector<6x64xf32>
      %c113 = arith.constant 113 : index
      %c0_91 = arith.constant 0 : index
      %119 = tpu.strided_load %arg11[%c113, %c0_91] {strides = array<i32: 2, 1>} : memref<208x64xf32, #tpu.memory_space<vmem>>, vector<6x64xf32>
      %120 = arith.maximumf %116, %117 : vector<6x64xf32>
      %121 = arith.maximumf %118, %119 : vector<6x64xf32>
      %122 = arith.maximumf %120, %121 : vector<6x64xf32>
      %c0_92 = arith.constant 0 : index
      %c0_93 = arith.constant 0 : index
      %123 = vector.load %arg5[%c0_92, %c0_93] : memref<1x64xf32, #tpu.memory_space<vmem>>, vector<1x64xf32>
      %124 = vector.broadcast %123 : vector<1x64xf32> to vector<6x64xf32>
      %125 = arith.addf %122, %124 : vector<6x64xf32>
      %cst_94 = arith.constant 0.000000e+00 : f32
      %126 = vector.broadcast %cst_94 : f32 to vector<6x64xf32>
      %127 = arith.maximumf %125, %126 : vector<6x64xf32>
      %c18_95 = arith.constant 18 : index
      %c0_96 = arith.constant 0 : index
      %128 = vector.load %arg12[%c18_95, %c0_96] : memref<40x64xf32, #tpu.memory_space<vmem>>, vector<6x64xf32>
      tpu.vector_store %arg12[%c18_95, %c0_96], %127 {strides = array<i32>} : memref<40x64xf32, #tpu.memory_space<vmem>>, vector<6x64xf32>,
      %c128 = arith.constant 128 : index
      %c0_97 = arith.constant 0 : index
      %129 = tpu.strided_load %arg11[%c128, %c0_97] {strides = array<i32: 2, 1>} : memref<208x64xf32, #tpu.memory_space<vmem>>, vector<6x64xf32>
      %c129 = arith.constant 129 : index
      %c0_98 = arith.constant 0 : index
      %130 = tpu.strided_load %arg11[%c129, %c0_98] {strides = array<i32: 2, 1>} : memref<208x64xf32, #tpu.memory_space<vmem>>, vector<6x64xf32>
      %c144 = arith.constant 144 : index
      %c0_99 = arith.constant 0 : index
      %131 = tpu.strided_load %arg11[%c144, %c0_99] {strides = array<i32: 2, 1>} : memref<208x64xf32, #tpu.memory_space<vmem>>, vector<6x64xf32>
      %c145 = arith.constant 145 : index
      %c0_100 = arith.constant 0 : index
      %132 = tpu.strided_load %arg11[%c145, %c0_100] {strides = array<i32: 2, 1>} : memref<208x64xf32, #tpu.memory_space<vmem>>, vector<6x64xf32>
      %133 = arith.maximumf %129, %130 : vector<6x64xf32>
      %134 = arith.maximumf %131, %132 : vector<6x64xf32>
      %135 = arith.maximumf %133, %134 : vector<6x64xf32>
      %c0_101 = arith.constant 0 : index
      %c0_102 = arith.constant 0 : index
      %136 = vector.load %arg5[%c0_101, %c0_102] : memref<1x64xf32, #tpu.memory_space<vmem>>, vector<1x64xf32>
      %137 = vector.broadcast %136 : vector<1x64xf32> to vector<6x64xf32>
      %138 = arith.addf %135, %137 : vector<6x64xf32>
      %cst_103 = arith.constant 0.000000e+00 : f32
      %139 = vector.broadcast %cst_103 : f32 to vector<6x64xf32>
      %140 = arith.maximumf %138, %139 : vector<6x64xf32>
      %c24 = arith.constant 24 : index
      %c0_104 = arith.constant 0 : index
      %141 = vector.load %arg12[%c24, %c0_104] : memref<40x64xf32, #tpu.memory_space<vmem>>, vector<6x64xf32>
      tpu.vector_store %arg12[%c24, %c0_104], %140 {strides = array<i32>} : memref<40x64xf32, #tpu.memory_space<vmem>>, vector<6x64xf32>,
      %c160 = arith.constant 160 : index
      %c0_105 = arith.constant 0 : index
      %142 = tpu.strided_load %arg11[%c160, %c0_105] {strides = array<i32: 2, 1>} : memref<208x64xf32, #tpu.memory_space<vmem>>, vector<6x64xf32>
      %c161 = arith.constant 161 : index
      %c0_106 = arith.constant 0 : index
      %143 = tpu.strided_load %arg11[%c161, %c0_106] {strides = array<i32: 2, 1>} : memref<208x64xf32, #tpu.memory_space<vmem>>, vector<6x64xf32>
      %c176 = arith.constant 176 : index
      %c0_107 = arith.constant 0 : index
      %144 = tpu.strided_load %arg11[%c176, %c0_107] {strides = array<i32: 2, 1>} : memref<208x64xf32, #tpu.memory_space<vmem>>, vector<6x64xf32>
      %c177 = arith.constant 177 : index
      %c0_108 = arith.constant 0 : index
      %145 = tpu.strided_load %arg11[%c177, %c0_108] {strides = array<i32: 2, 1>} : memref<208x64xf32, #tpu.memory_space<vmem>>, vector<6x64xf32>
      %146 = arith.maximumf %142, %143 : vector<6x64xf32>
      %147 = arith.maximumf %144, %145 : vector<6x64xf32>
      %148 = arith.maximumf %146, %147 : vector<6x64xf32>
      %c0_109 = arith.constant 0 : index
      %c0_110 = arith.constant 0 : index
      %149 = vector.load %arg5[%c0_109, %c0_110] : memref<1x64xf32, #tpu.memory_space<vmem>>, vector<1x64xf32>
      %150 = vector.broadcast %149 : vector<1x64xf32> to vector<6x64xf32>
      %151 = arith.addf %148, %150 : vector<6x64xf32>
      %cst_111 = arith.constant 0.000000e+00 : f32
      %152 = vector.broadcast %cst_111 : f32 to vector<6x64xf32>
      %153 = arith.maximumf %151, %152 : vector<6x64xf32>
      %c30 = arith.constant 30 : index
      %c0_112 = arith.constant 0 : index
      %154 = vector.load %arg12[%c30, %c0_112] : memref<40x64xf32, #tpu.memory_space<vmem>>, vector<6x64xf32>
      tpu.vector_store %arg12[%c30, %c0_112], %153 {strides = array<i32>} : memref<40x64xf32, #tpu.memory_space<vmem>>, vector<6x64xf32>,
      %c0_113 = arith.constant 0 : index
      %c0_114 = arith.constant 0 : index
      %155 = vector.load %arg12[%c0_113, %c0_114] : memref<40x64xf32, #tpu.memory_space<vmem>>, vector<24x64xf32>
      %156 = arith.truncf %155 : vector<24x64xf32> to vector<24x64xbf16>
      %c1_115 = arith.constant 1 : index
      %c0_116 = arith.constant 0 : index
      %157 = vector.load %arg12[%c1_115, %c0_116] : memref<40x64xf32, #tpu.memory_space<vmem>>, vector<24x64xf32>
      %158 = arith.truncf %157 : vector<24x64xf32> to vector<24x64xbf16>
      %c2_117 = arith.constant 2 : index
      %c0_118 = arith.constant 0 : index
      %159 = vector.load %arg12[%c2_117, %c0_118] : memref<40x64xf32, #tpu.memory_space<vmem>>, vector<24x64xf32>
      %160 = arith.truncf %159 : vector<24x64xf32> to vector<24x64xbf16>
      %161 = tpu.concatenate %156, %158, %160 in 1 : vector<24x64xbf16>, vector<24x64xbf16>, vector<24x64xbf16> -> vector<24x192xbf16>
      %c0_119 = arith.constant 0 : index
      %c0_120 = arith.constant 0 : index
      %c0_121 = arith.constant 0 : index
      %162 = vector.load %arg6[%c0_119, %c0_120, %c0_121] : memref<3x192x32xbf16, #tpu.memory_space<vmem>>, vector<1x192x32xbf16>
      %163 = vector.shape_cast %162 : vector<1x192x32xbf16> to vector<192x32xbf16>
      %cst_122 = arith.constant dense<0.000000e+00> : vector<24x32xf32>
      %164 = tpu.matmul %161, %163, %cst_122 {dimension_numbers = #tpu.dot_dimension_numbers<[1], [0], [0], [1], [0, 0, 1, 1], [], []>} : vector<24x192xbf16>, vector<192x32xbf16>, vector<24x32xf32> -> vector<24x32xf32>
      %c6_123 = arith.constant 6 : index
      %c0_124 = arith.constant 0 : index
      %165 = vector.load %arg12[%c6_123, %c0_124] : memref<40x64xf32, #tpu.memory_space<vmem>>, vector<24x64xf32>
      %166 = arith.truncf %165 : vector<24x64xf32> to vector<24x64xbf16>
      %c7 = arith.constant 7 : index
      %c0_125 = arith.constant 0 : index
      %167 = vector.load %arg12[%c7, %c0_125] : memref<40x64xf32, #tpu.memory_space<vmem>>, vector<24x64xf32>
      %168 = arith.truncf %167 : vector<24x64xf32> to vector<24x64xbf16>
      %c8 = arith.constant 8 : index
      %c0_126 = arith.constant 0 : index
      %169 = vector.load %arg12[%c8, %c0_126] : memref<40x64xf32, #tpu.memory_space<vmem>>, vector<24x64xf32>
      %170 = arith.truncf %169 : vector<24x64xf32> to vector<24x64xbf16>
      %171 = tpu.concatenate %166, %168, %170 in 1 : vector<24x64xbf16>, vector<24x64xbf16>, vector<24x64xbf16> -> vector<24x192xbf16>
      %c1_127 = arith.constant 1 : index
      %c0_128 = arith.constant 0 : index
      %c0_129 = arith.constant 0 : index
      %172 = vector.load %arg6[%c1_127, %c0_128, %c0_129] : memref<3x192x32xbf16, #tpu.memory_space<vmem>>, vector<1x192x32xbf16>
      %173 = vector.shape_cast %172 : vector<1x192x32xbf16> to vector<192x32xbf16>
      %cst_130 = arith.constant dense<0.000000e+00> : vector<24x32xf32>
      %174 = tpu.matmul %171, %173, %cst_130 {dimension_numbers = #tpu.dot_dimension_numbers<[1], [0], [0], [1], [0, 0, 1, 1], [], []>} : vector<24x192xbf16>, vector<192x32xbf16>, vector<24x32xf32> -> vector<24x32xf32>
      %175 = arith.addf %164, %174 : vector<24x32xf32>
      %c12_131 = arith.constant 12 : index
      %c0_132 = arith.constant 0 : index
      %176 = vector.load %arg12[%c12_131, %c0_132] : memref<40x64xf32, #tpu.memory_space<vmem>>, vector<24x64xf32>
      %177 = arith.truncf %176 : vector<24x64xf32> to vector<24x64xbf16>
      %c13 = arith.constant 13 : index
      %c0_133 = arith.constant 0 : index
      %178 = vector.load %arg12[%c13, %c0_133] : memref<40x64xf32, #tpu.memory_space<vmem>>, vector<24x64xf32>
      %179 = arith.truncf %178 : vector<24x64xf32> to vector<24x64xbf16>
      %c14 = arith.constant 14 : index
      %c0_134 = arith.constant 0 : index
      %180 = vector.load %arg12[%c14, %c0_134] : memref<40x64xf32, #tpu.memory_space<vmem>>, vector<24x64xf32>
      %181 = arith.truncf %180 : vector<24x64xf32> to vector<24x64xbf16>
      %182 = tpu.concatenate %177, %179, %181 in 1 : vector<24x64xbf16>, vector<24x64xbf16>, vector<24x64xbf16> -> vector<24x192xbf16>
      %c2_135 = arith.constant 2 : index
      %c0_136 = arith.constant 0 : index
      %c0_137 = arith.constant 0 : index
      %183 = vector.load %arg6[%c2_135, %c0_136, %c0_137] : memref<3x192x32xbf16, #tpu.memory_space<vmem>>, vector<1x192x32xbf16>
      %184 = vector.shape_cast %183 : vector<1x192x32xbf16> to vector<192x32xbf16>
      %cst_138 = arith.constant dense<0.000000e+00> : vector<24x32xf32>
      %185 = tpu.matmul %182, %184, %cst_138 {dimension_numbers = #tpu.dot_dimension_numbers<[1], [0], [0], [1], [0, 0, 1, 1], [], []>} : vector<24x192xbf16>, vector<192x32xbf16>, vector<24x32xf32> -> vector<24x32xf32>
      %186 = arith.addf %175, %185 : vector<24x32xf32>
      %187 = vector.extract_strided_slice %186 {offsets = [0, 0], sizes = [1, 32], strides = [1, 1]} : vector<24x32xf32> to vector<1x32xf32>
      %188 = vector.extract_strided_slice %186 {offsets = [1, 0], sizes = [1, 32], strides = [1, 1]} : vector<24x32xf32> to vector<1x32xf32>
      %189 = arith.maximumf %187, %188 : vector<1x32xf32>
      %190 = vector.extract_strided_slice %186 {offsets = [6, 0], sizes = [1, 32], strides = [1, 1]} : vector<24x32xf32> to vector<1x32xf32>
      %191 = vector.extract_strided_slice %186 {offsets = [7, 0], sizes = [1, 32], strides = [1, 1]} : vector<24x32xf32> to vector<1x32xf32>
      %192 = arith.maximumf %190, %191 : vector<1x32xf32>
      %193 = arith.maximumf %189, %192 : vector<1x32xf32>
      %c0_139 = arith.constant 0 : index
      %c0_140 = arith.constant 0 : index
      %194 = vector.load %arg7[%c0_139, %c0_140] : memref<1x32xf32, #tpu.memory_space<vmem>>, vector<1x32xf32>
      %195 = arith.addf %193, %194 : vector<1x32xf32>
      %cst_141 = arith.constant 0.000000e+00 : f32
      %196 = vector.broadcast %cst_141 : f32 to vector<1x32xf32>
      %197 = arith.maximumf %195, %196 : vector<1x32xf32>
      %198 = vector.extract_strided_slice %186 {offsets = [2, 0], sizes = [1, 32], strides = [1, 1]} : vector<24x32xf32> to vector<1x32xf32>
      %199 = vector.extract_strided_slice %186 {offsets = [3, 0], sizes = [1, 32], strides = [1, 1]} : vector<24x32xf32> to vector<1x32xf32>
      %200 = arith.maximumf %198, %199 : vector<1x32xf32>
      %201 = vector.extract_strided_slice %186 {offsets = [8, 0], sizes = [1, 32], strides = [1, 1]} : vector<24x32xf32> to vector<1x32xf32>
      %202 = vector.extract_strided_slice %186 {offsets = [9, 0], sizes = [1, 32], strides = [1, 1]} : vector<24x32xf32> to vector<1x32xf32>
      %203 = arith.maximumf %201, %202 : vector<1x32xf32>
      %204 = arith.maximumf %200, %203 : vector<1x32xf32>
      %c0_142 = arith.constant 0 : index
      %c0_143 = arith.constant 0 : index
      %205 = vector.load %arg7[%c0_142, %c0_143] : memref<1x32xf32, #tpu.memory_space<vmem>>, vector<1x32xf32>
      %206 = arith.addf %204, %205 : vector<1x32xf32>
      %cst_144 = arith.constant 0.000000e+00 : f32
      %207 = vector.broadcast %cst_144 : f32 to vector<1x32xf32>
      %208 = arith.maximumf %206, %207 : vector<1x32xf32>
      %209 = arith.addf %197, %208 : vector<1x32xf32>
      %210 = vector.extract_strided_slice %186 {offsets = [12, 0], sizes = [1, 32], strides = [1, 1]} : vector<24x32xf32> to vector<1x32xf32>
      %211 = vector.extract_strided_slice %186 {offsets = [13, 0], sizes = [1, 32], strides = [1, 1]} : vector<24x32xf32> to vector<1x32xf32>
      %212 = arith.maximumf %210, %211 : vector<1x32xf32>
      %213 = vector.extract_strided_slice %186 {offsets = [18, 0], sizes = [1, 32], strides = [1, 1]} : vector<24x32xf32> to vector<1x32xf32>
      %214 = vector.extract_strided_slice %186 {offsets = [19, 0], sizes = [1, 32], strides = [1, 1]} : vector<24x32xf32> to vector<1x32xf32>
      %215 = arith.maximumf %213, %214 : vector<1x32xf32>
      %216 = arith.maximumf %212, %215 : vector<1x32xf32>
      %c0_145 = arith.constant 0 : index
      %c0_146 = arith.constant 0 : index
      %217 = vector.load %arg7[%c0_145, %c0_146] : memref<1x32xf32, #tpu.memory_space<vmem>>, vector<1x32xf32>
      %218 = arith.addf %216, %217 : vector<1x32xf32>
      %cst_147 = arith.constant 0.000000e+00 : f32
      %219 = vector.broadcast %cst_147 : f32 to vector<1x32xf32>
      %220 = arith.maximumf %218, %219 : vector<1x32xf32>
      %221 = arith.addf %209, %220 : vector<1x32xf32>
      %222 = vector.extract_strided_slice %186 {offsets = [14, 0], sizes = [1, 32], strides = [1, 1]} : vector<24x32xf32> to vector<1x32xf32>
      %223 = vector.extract_strided_slice %186 {offsets = [15, 0], sizes = [1, 32], strides = [1, 1]} : vector<24x32xf32> to vector<1x32xf32>
      %224 = arith.maximumf %222, %223 : vector<1x32xf32>
      %225 = vector.extract_strided_slice %186 {offsets = [20, 0], sizes = [1, 32], strides = [1, 1]} : vector<24x32xf32> to vector<1x32xf32>
      %226 = vector.extract_strided_slice %186 {offsets = [21, 0], sizes = [1, 32], strides = [1, 1]} : vector<24x32xf32> to vector<1x32xf32>
      %227 = arith.maximumf %225, %226 : vector<1x32xf32>
      %228 = arith.maximumf %224, %227 : vector<1x32xf32>
      %c0_148 = arith.constant 0 : index
      %c0_149 = arith.constant 0 : index
      %229 = vector.load %arg7[%c0_148, %c0_149] : memref<1x32xf32, #tpu.memory_space<vmem>>, vector<1x32xf32>
      %230 = arith.addf %228, %229 : vector<1x32xf32>
      %cst_150 = arith.constant 0.000000e+00 : f32
      %231 = vector.broadcast %cst_150 : f32 to vector<1x32xf32>
      %232 = arith.maximumf %230, %231 : vector<1x32xf32>
      %233 = arith.addf %221, %232 : vector<1x32xf32>
      %cst_151 = arith.constant 2.500000e-01 : f32
      %234 = vector.broadcast %cst_151 : f32 to vector<1x32xf32>
      %235 = arith.mulf %233, %234 : vector<1x32xf32>
      %c0_152 = arith.constant 0 : index
      %236 = arith.index_cast %5 : i32 to index
      %c0_153 = arith.constant 0 : index
      %237 = vector.load %arg8[%c0_152, %236, %c0_153] : memref<1x2x32xf32, #tpu.memory_space<vmem>>, vector<1x1x32xf32>
      %238 = vector.shape_cast %237 : vector<1x1x32xf32> to vector<1x32xf32>
      %239 = vector.shape_cast %235 : vector<1x32xf32> to vector<1x1x32xf32>
      tpu.vector_store %arg8[%c0_152, %236, %c0_153], %239 {strides = array<i32>} : memref<1x2x32xf32, #tpu.memory_space<vmem>>, vector<1x1x32xf32>,
    }
    %c2_i32_2 = arith.constant 2 : i32
    return
  }
  func.func @transform_0(%arg0: i32) -> (i32, i32, i32) {
    %c0_i32 = arith.constant 0 : i32
    %c0_i32_0 = arith.constant 0 : i32
    %c0_i32_1 = arith.constant 0 : i32
    return %arg0, %c0_i32, %c0_i32_0 : i32, i32, i32
  }
  func.func @transform_1(%arg0: i32) -> (i32, i32) {
    %c0_i32 = arith.constant 0 : i32
    %c0_i32_0 = arith.constant 0 : i32
    %c0_i32_1 = arith.constant 0 : i32
    return %c0_i32, %c0_i32_0 : i32, i32
  }
  func.func @transform_2(%arg0: i32) -> (i32, i32) {
    %c0_i32 = arith.constant 0 : i32
    %c0_i32_0 = arith.constant 0 : i32
    %c0_i32_1 = arith.constant 0 : i32
    return %c0_i32, %c0_i32_0 : i32, i32
  }
  func.func @transform_3(%arg0: i32) -> (i32, i32, i32) {
    %c0_i32 = arith.constant 0 : i32
    %c0_i32_0 = arith.constant 0 : i32
    %c0_i32_1 = arith.constant 0 : i32
    %c0_i32_2 = arith.constant 0 : i32
    return %c0_i32, %c0_i32_0, %c0_i32_1 : i32, i32, i32
  }
  func.func @transform_4(%arg0: i32) -> (i32, i32) {
    %c0_i32 = arith.constant 0 : i32
    %c0_i32_0 = arith.constant 0 : i32
    %c0_i32_1 = arith.constant 0 : i32
    return %c0_i32, %c0_i32_0 : i32, i32
  }
  func.func @transform_5(%arg0: i32) -> (i32, i32, i32) {
    %c0_i32 = arith.constant 0 : i32
    %c0_i32_0 = arith.constant 0 : i32
    %c0_i32_1 = arith.constant 0 : i32
    %c0_i32_2 = arith.constant 0 : i32
    return %c0_i32, %c0_i32_0, %c0_i32_1 : i32, i32, i32
  }
  func.func @transform_6(%arg0: i32) -> (i32, i32) {
    %c0_i32 = arith.constant 0 : i32
    %c0_i32_0 = arith.constant 0 : i32
    %c0_i32_1 = arith.constant 0 : i32
    return %c0_i32, %c0_i32_0 : i32, i32
  }
  func.func @transform_7(%arg0: i32) -> (i32, i32, i32) {
    %c0_i32 = arith.constant 0 : i32
    %c0_i32_0 = arith.constant 0 : i32
    %c0_i32_1 = arith.constant 0 : i32
    return %arg0, %c0_i32, %c0_i32_0 : i32, i32, i32
  }
}

</mosaic_0001>

<llo_original>
// kernel: network_forward.1
$region0: #{network_forward.1}
  #allocation0 [shape = 'u32[]', space=smem, size = 0x4, offset = 0x4, fixed_abs, tag = 'smem constant byte address 0x4 - core index']
  #allocation1 [shape = 'u32[144,128]{1,0:T(1,128)}', space=vmem, size = 0x12000, scoped, tag = 'internal scratch']
  #allocation2 [shape = 'f32[1024,64]{1,0:T(8,128)}', space=vmem, size = 0x80000, scoped, tag = 'scratch operand']
  #allocation3 [shape = 'f32[264,64]{1,0:T(8,128)}', space=vmem, size = 0x21000, scoped, tag = 'scratch operand']
  #allocation4 [shape = 'f32[208,64]{1,0:T(8,128)}', space=vmem, size = 0x1a000, scoped, tag = 'scratch operand']
  #allocation5 [shape = 'f32[40,64]{1,0:T(8,128)}', space=vmem, size = 0x5000, scoped, tag = 'scratch operand']
  %s0 = inlined_call_operand.vmem [shape: bf16[4,1024,64], index: 0, kind: input, shape index: {}]
  %s1 = inlined_call_operand.vmem [shape: bf16[64,64], index: 1, kind: input, shape index: {}]
  %s2 = inlined_call_operand.vmem [shape: f32[1,64], index: 2, kind: input, shape index: {}]
  %s3 = inlined_call_operand.vmem [shape: bf16[4,256,64], index: 3, kind: input, shape index: {}]
  %s4 = inlined_call_operand.vmem [shape: f32[1,64], index: 4, kind: input, shape index: {}]
  %s5 = inlined_call_operand.vmem [shape: bf16[3,192,32], index: 5, kind: input, shape index: {}]
  %s6 = inlined_call_operand.vmem [shape: f32[1,32], index: 6, kind: input, shape index: {}]
  %s7 = inlined_call_operand.hbm [shape: f32[2,2,32], index: 7, kind: output, shape index: {}]
  %s8 = sld [smem:[#allocation0]]
  $region72: #{network_forward.1} parent=0
    _
  %s10 = ssub.s32 1, %s8
  %s11 = scalar_select 0, %s10, %s8
  $region1: #{network_forward.1} parent=0
    #allocation6 [shape = 'u8[2048]{0}', space=vmem, size = 0x800, scoped, tag = 'output window, operand 0']
    #allocation7 [shape = 's32[2]{0}', space=sflag, size = 0x8, scoped, tag = 'scoped memory for network_forward.1']
    %12 = vsyncpa [#allocation7], 0
    %s13 = scalar_lea.sflag [#allocation7], 1
    %14 = vsyncpa %s13, 0
    loop: start=0, step=1, limit=4
    $region2: #{network_forward.1} parent=1 // loop_pre_header
      _
    $region3: #{network_forward.1} parent=1 // loop_header
      %s16 = sphi 0, %s20
      %p17 = scmp.ge.s32.totalorder %s16, 4
      %s26 = sphi 0, %s28
      %s29 = sphi 0, %s26
      %s30 = sphi 0, %s29
      %s46 = sphi 0, %s30
      %s50 = sphi 0, %s50
      %s52 = sphi 0, %s50
      %s53 = sphi 0, %s52
      %s67 = sphi 0, %s53
      %s71 = sphi 0, %s71
      %s73 = sphi 0, %s71
      %s74 = sphi 0, %s73
      %s88 = sphi 0, %s74
      %s92 = sphi 0, %s92
      %s94 = sphi 0, %s92
      %s95 = sphi 0, %s94
      %s109 = sphi 0, %s95
      %s113 = sphi 0, %s113
      %s115 = sphi 0, %s113
      %s116 = sphi 0, %s115
      %s130 = sphi 0, %s116
      %s134 = sphi 0, %s134
      %s136 = sphi 0, %s134
      %s137 = sphi 0, %s136
      %s151 = sphi 0, %s137
      %s155 = sphi 0, %s155
      %s157 = sphi 0, %s155
      %s158 = sphi 0, %s157
      %s172 = sphi 0, %s158
      %s178 = sphi 0, %s180
      %s181 = sphi 0, %s178
      %s182 = sphi 0, %s181
      %s198 = sphi 0, %s182
    $region4: #{network_forward.1} parent=1 // loop_header_branch
      %19 = sbr.rel (%p17) target = $region8
    $region5: #{network_forward.1} parent=1 // loop_body
      %s21 = ssub.s32 %s16, 1
      %s22 = ssub.s32 %s16, 2
      %s23 = sadd.s32 %s16, 1
      %s24 = ssub.s32 %s16, %s23
      %p25 = scmp.eq.s32.totalorder %s24, 0
      %s27 = sadd.s32 %s26, 1
      %s28 = scalar_select %p25, %s26, %s27
      %p31 = pneg %p25
      %p32 = scmp.eq.s32.totalorder %s16, 1
      %p33 = por %p31, %p32
      %p34 = scmp.ne.s32.totalorder %s26, %s29
      %p35 = scmp.eq.s32.totalorder %s16, 0
      %p36 = por %p34, %p35
      %p37 = scmp.ne.s32.totalorder %s26, %s29
      %p38 = scmp.eq.s32.totalorder %s21, 1
      %p39 = por %p37, %p38
      %p40 = scmp.ne.s32.totalorder %s29, %s30
      %p41 = scmp.eq.s32.totalorder %s21, 0
      %p42 = por %p40, %p41
      %p43 = scmp.ne.s32.totalorder %s29, %s30
      %p44 = scmp.eq.s32.totalorder %s22, 1
      %p45 = por %p43, %p44
      %p47 = scmp.ne.s32.totalorder %s30, %s46
      %p48 = scmp.eq.s32.totalorder %s22, 0
      %p49 = por %p47, %p48
      %s51 = sadd.s32 %s50, 1
      %p54 = scmp.eq.s32.totalorder %s16, 1
      %p55 = scmp.ne.s32.totalorder %s50, %s52
      %p56 = scmp.eq.s32.totalorder %s16, 0
      %p57 = por %p55, %p56
      %p58 = scmp.ne.s32.totalorder %s50, %s52
      %p59 = scmp.eq.s32.totalorder %s21, 1
      %p60 = por %p58, %p59
      %p61 = scmp.ne.s32.totalorder %s52, %s53
      %p62 = scmp.eq.s32.totalorder %s21, 0
      %p63 = por %p61, %p62
      %p64 = scmp.ne.s32.totalorder %s52, %s53
      %p65 = scmp.eq.s32.totalorder %s22, 1
      %p66 = por %p64, %p65
      %p68 = scmp.ne.s32.totalorder %s53, %s67
      %p69 = scmp.eq.s32.totalorder %s22, 0
      %p70 = por %p68, %p69
      %s72 = sadd.s32 %s71, 1
      %p75 = scmp.eq.s32.totalorder %s16, 1
      %p76 = scmp.ne.s32.totalorder %s71, %s73
      %p77 = scmp.eq.s32.totalorder %s16, 0
      %p78 = por %p76, %p77
      %p79 = scmp.ne.s32.totalorder %s71, %s73
      %p80 = scmp.eq.s32.totalorder %s21, 1
      %p81 = por %p79, %p80
      %p82 = scmp.ne.s32.totalorder %s73, %s74
      %p83 = scmp.eq.s32.totalorder %s21, 0
      %p84 = por %p82, %p83
      %p85 = scmp.ne.s32.totalorder %s73, %s74
      %p86 = scmp.eq.s32.totalorder %s22, 1
      %p87 = por %p85, %p86
      %p89 = scmp.ne.s32.totalorder %s74, %s88
      %p90 = scmp.eq.s32.totalorder %s22, 0
      %p91 = por %p89, %p90
      %s93 = sadd.s32 %s92, 1
      %p96 = scmp.eq.s32.totalorder %s16, 1
      %p97 = scmp.ne.s32.totalorder %s92, %s94
      %p98 = scmp.eq.s32.totalorder %s16, 0
      %p99 = por %p97, %p98
      %p100 = scmp.ne.s32.totalorder %s92, %s94
      %p101 = scmp.eq.s32.totalorder %s21, 1
      %p102 = por %p100, %p101
      %p103 = scmp.ne.s32.totalorder %s94, %s95
      %p104 = scmp.eq.s32.totalorder %s21, 0
      %p105 = por %p103, %p104
      %p106 = scmp.ne.s32.totalorder %s94, %s95
      %p107 = scmp.eq.s32.totalorder %s22, 1
      %p108 = por %p106, %p107
      %p110 = scmp.ne.s32.totalorder %s95, %s109
      %p111 = scmp.eq.s32.totalorder %s22, 0
      %p112 = por %p110, %p111
      %s114 = sadd.s32 %s113, 1
      %p117 = scmp.eq.s32.totalorder %s16, 1
      %p118 = scmp.ne.s32.totalorder %s113, %s115
      %p119 = scmp.eq.s32.totalorder %s16, 0
      %p120 = por %p118, %p119
      %p121 = scmp.ne.s32.totalorder %s113, %s115
      %p122 = scmp.eq.s32.totalorder %s21, 1
      %p123 = por %p121, %p122
      %p124 = scmp.ne.s32.totalorder %s115, %s116
      %p125 = scmp.eq.s32.totalorder %s21, 0
      %p126 = por %p124, %p125
      %p127 = scmp.ne.s32.totalorder %s115, %s116
      %p128 = scmp.eq.s32.totalorder %s22, 1
      %p129 = por %p127, %p128
      %p131 = scmp.ne.s32.totalorder %s116, %s130
      %p132 = scmp.eq.s32.totalorder %s22, 0
      %p133 = por %p131, %p132
      %s135 = sadd.s32 %s134, 1
      %p138 = scmp.eq.s32.totalorder %s16, 1
      %p139 = scmp.ne.s32.totalorder %s134, %s136
      %p140 = scmp.eq.s32.totalorder %s16, 0
      %p141 = por %p139, %p140
      %p142 = scmp.ne.s32.totalorder %s134, %s136
      %p143 = scmp.eq.s32.totalorder %s21, 1
      %p144 = por %p142, %p143
      %p145 = scmp.ne.s32.totalorder %s136, %s137
      %p146 = scmp.eq.s32.totalorder %s21, 0
      %p147 = por %p145, %p146
      %p148 = scmp.ne.s32.totalorder %s136, %s137
      %p149 = scmp.eq.s32.totalorder %s22, 1
      %p150 = por %p148, %p149
      %p152 = scmp.ne.s32.totalorder %s137, %s151
      %p153 = scmp.eq.s32.totalorder %s22, 0
      %p154 = por %p152, %p153
      %s156 = sadd.s32 %s155, 1
      %p159 = scmp.eq.s32.totalorder %s16, 1
      %p160 = scmp.ne.s32.totalorder %s155, %s157
      %p161 = scmp.eq.s32.totalorder %s16, 0
      %p162 = por %p160, %p161
      %p163 = scmp.ne.s32.totalorder %s155, %s157
      %p164 = scmp.eq.s32.totalorder %s21, 1
      %p165 = por %p163, %p164
      %p166 = scmp.ne.s32.totalorder %s157, %s158
      %p167 = scmp.eq.s32.totalorder %s21, 0
      %p168 = por %p166, %p167
      %p169 = scmp.ne.s32.totalorder %s157, %s158
      %p170 = scmp.eq.s32.totalorder %s22, 1
      %p171 = por %p169, %p170
      %p173 = scmp.ne.s32.totalorder %s158, %s172
      %p174 = scmp.eq.s32.totalorder %s22, 0
      %p175 = por %p173, %p174
      %s176 = ssub.s32 %s16, %s23
      %p177 = scmp.eq.s32.totalorder %s176, 0
      %s179 = sadd.s32 %s178, 1
      %s180 = scalar_select %p177, %s178, %s179
      %p183 = pneg %p177
      %p184 = scmp.eq.s32.totalorder %s16, 1
      %p185 = por %p183, %p184
      %p186 = scmp.ne.s32.totalorder %s178, %s181
      %p187 = scmp.eq.s32.totalorder %s16, 0
      %p188 = por %p186, %p187
      %p189 = scmp.ne.s32.totalorder %s178, %s181
      %p190 = scmp.eq.s32.totalorder %s21, 1
      %p191 = por %p189, %p190
      %p192 = scmp.ne.s32.totalorder %s181, %s182
      %p193 = scmp.eq.s32.totalorder %s21, 0
      %p194 = por %p192, %p193
      %p195 = scmp.ne.s32.totalorder %s181, %s182
      %p196 = scmp.eq.s32.totalorder %s22, 1
      %p197 = por %p195, %p196
      %p199 = scmp.ne.s32.totalorder %s182, %s198
      %p200 = scmp.eq.s32.totalorder %s22, 0
      %p201 = por %p199, %p200
      %p202 = scmp.le.s32.totalorder 1, %s16
      %p203 = scmp.lt.s32.totalorder %s16, 3
      %p204 = pnand %p202, %p203
      %p205 = pneg %p204
      // Predicated region
      $region9: #{network_forward.1} parent=5 // pred_check
        _
      $region10: #{network_forward.1} parent=5 // pred_check_branch
        %207 = sbr.rel (%p204) target = $region12
      $region11: #{network_forward.1} parent=5 // pred_region
        %s208 = ssub.s32 %s16, 1
        // Predicated region
        $region13: #{network_forward.1} parent=11 // pred_check
          %p209 = pneg %p63
        $region14: #{network_forward.1} parent=11 // pred_check_branch
          %211 = sbr.rel (%p209) target = $region16
        $region15: #{network_forward.1} parent=11 // pred_region
          _
        $region16: #{network_forward.1} parent=11 // pred_fallthru
          _
        // Predicated region
        $region17: #{network_forward.1} parent=11 // pred_check
          %p212 = pneg %p84
        $region18: #{network_forward.1} parent=11 // pred_check_branch
          %214 = sbr.rel (%p212) target = $region20
        $region19: #{network_forward.1} parent=11 // pred_region
          _
        $region20: #{network_forward.1} parent=11 // pred_fallthru
          _
        // Predicated region
        $region21: #{network_forward.1} parent=11 // pred_check
          %p215 = pneg %p105
        $region22: #{network_forward.1} parent=11 // pred_check_branch
          %217 = sbr.rel (%p215) target = $region24
        $region23: #{network_forward.1} parent=11 // pred_region
          _
        $region24: #{network_forward.1} parent=11 // pred_fallthru
          _
        // Predicated region
        $region25: #{network_forward.1} parent=11 // pred_check
          %p218 = pneg %p126
        $region26: #{network_forward.1} parent=11 // pred_check_branch
          %220 = sbr.rel (%p218) target = $region28
        $region27: #{network_forward.1} parent=11 // pred_region
          _
        $region28: #{network_forward.1} parent=11 // pred_fallthru
          _
        // Predicated region
        $region29: #{network_forward.1} parent=11 // pred_check
          %p221 = pneg %p147
        $region30: #{network_forward.1} parent=11 // pred_check_branch
          %223 = sbr.rel (%p221) target = $region32
        $region31: #{network_forward.1} parent=11 // pred_region
          _
        $region32: #{network_forward.1} parent=11 // pred_fallthru
          _
        // Predicated region
        $region33: #{network_forward.1} parent=11 // pred_check
          %p224 = pneg %p168
        $region34: #{network_forward.1} parent=11 // pred_check_branch
          %226 = sbr.rel (%p224) target = $region36
        $region35: #{network_forward.1} parent=11 // pred_region
          _
        $region36: #{network_forward.1} parent=11 // pred_fallthru
          _
      $region12: #{network_forward.1} parent=5 // pred_fallthru
        _
      %p227 = scmp.lt.s32.totalorder %s16, 2
      // Predicated region
      $region37: #{network_forward.1} parent=5 // pred_check
        %p228 = pneg %p227
      $region38: #{network_forward.1} parent=5 // pred_check_branch
        %230 = sbr.rel (%p228) target = $region40
      $region39: #{network_forward.1} parent=5 // pred_region
        // Predicated region
        $region41: #{network_forward.1} parent=39 // pred_check
          %p231 = pneg %p36
        $region42: #{network_forward.1} parent=39 // pred_check_branch
          %233 = sbr.rel (%p231) target = $region44
        $region43: #{network_forward.1} parent=39 // pred_region
          %s234 = smul.u32 2, %s16
          %p235 = scmp.lt.s32.totalorder %s234, 3
          %s236 = scalar_select %p235, %s234, 3
          %s237 = smul.addr %s236, 128
          %s238 = smul.addr %s237, 4
          %s239 = scalar_lea.vmem %s0, %s238
          %s240 = smul.u32 2, %s16
        $region44: #{network_forward.1} parent=39 // pred_fallthru
          _
      $region40: #{network_forward.1} parent=5 // pred_fallthru
        _
      %p241 = scmp.le.s32.totalorder 1, %s16
      %p242 = scmp.lt.s32.totalorder %s16, 3
      %p243 = pnand %p241, %p242
      %p244 = pneg %p243
      // Predicated region
      $region45: #{network_forward.1} parent=5 // pred_check
        _
      $region46: #{network_forward.1} parent=5 // pred_check_branch
        %246 = sbr.rel (%p243) target = $region48
      $region47: #{network_forward.1} parent=5 // pred_region
        %s247 = ssub.s32 %s16, 1
        %s248 = smul.u32 2, %s21
        %p249 = scmp.lt.s32.totalorder %s248, 3
        %s250 = scalar_select %p249, %s248, 3
        %s251 = smul.addr %s250, 128
        %s252 = smul.addr %s251, 4
        %s253 = scalar_lea.vmem %s0, %s252
        %p254 = pneg %p42
        %p255 = pneg %p39
        %p256 = pneg %p63
        %p257 = pneg %p60
        %p258 = pneg %p84
        %p259 = pneg %p81
        %p260 = pneg %p105
        %p261 = pneg %p102
        %p262 = pneg %p126
        %p263 = pneg %p123
        %p264 = pneg %p147
        %p265 = pneg %p144
        %p266 = pneg %p168
        %p267 = pneg %p165
        %p268 = pneg %p194
        %p269 = pneg %p191
        %s270 = sand.u32 %s181, 1
        %s271 = scalar_lea.sflag [#allocation7], %s270
        %s272 = sand.u32 %s181, 1
        %s273 = smul.addr %s272, 2
        %s274 = scalar_lea.vmem [#allocation6], %s273
        %s275 = smul.u32 2, %s21
        %p276 = scmp.lt.s32.totalorder %s275, 3
        %s277 = scalar_select %p276, %s275, 3
        %s278 = smul.addr %s277, 128
        %s279 = smul.addr %s278, 4
        %s280 = scalar_lea.vmem %s0, %s279
        %s281 = smul.u32 2, %s21
        %p283 = scmp.eq.s32.totalorder %s21, 0
        // Predicated region
        $region49: #{network_forward.1} parent=47 // pred_check
          %p284 = pneg %p283
        $region50: #{network_forward.1} parent=47 // pred_check_branch
          %286 = sbr.rel (%p284) target = $region52
        $region51: #{network_forward.1} parent=47 // pred_region
          %vm287 = vcmask 523264
          %288 = vst.msk [vmem:[#allocation3 + $0x100] sm:$0xff] %vm287, 0.0
          %vm289 = vcmask 519168
          %290 = vst.msk [vmem:[#allocation5 + $0x24] sm:$0xf] %vm289, 0.0
        $region52: #{network_forward.1} parent=47 // pred_fallthru
          _
        loop: start=0, step=1, limit=2
        $region53: #{network_forward.1} parent=47 // loop_pre_header
          _
        $region54: #{network_forward.1} parent=47 // loop_header
          %s292 = sphi 0, %s296
          %p293 = scmp.ge.s32.totalorder %s292, 2
        $region55: #{network_forward.1} parent=47 // loop_header_branch
          %295 = sbr.rel (%p293) target = $region59
        $region56: #{network_forward.1} parent=47 // loop_body
          %s297 = smul.u32 %s292, 128
          %s298 = smul.addr %s297, 4
          %s299 = scalar_lea.vmem %s280, %s298
          %v300 = vld [vmem:[%s299] sm:$0xf]
          %v301 = vld [vmem:[%s299 + $0x4] sm:$0xf]
          %v302 = vld [vmem:[%s299 + $0x8] sm:$0xf]
          %v303 = vld [vmem:[%s299 + $0xc] sm:$0xf]
          %v304 = vld [vmem:[%s299 + $0x10] sm:$0xf]
          %v305 = vld [vmem:[%s299 + $0x14] sm:$0xf]
          %v306 = vld [vmem:[%s299 + $0x18] sm:$0xf]
          %v307 = vld [vmem:[%s299 + $0x1c] sm:$0xf]
          %v308 = vld [vmem:[%s299 + $0x20] sm:$0xf]
          %v309 = vld [vmem:[%s299 + $0x24] sm:$0xf]
          %v310 = vld [vmem:[%s299 + $0x28] sm:$0xf]
          %v311 = vld [vmem:[%s299 + $0x2c] sm:$0xf]
          %v312 = vld [vmem:[%s299 + $0x30] sm:$0xf]
          %v313 = vld [vmem:[%s299 + $0x34] sm:$0xf]
          %v314 = vld [vmem:[%s299 + $0x38] sm:$0xf]
          %v315 = vld [vmem:[%s299 + $0x3c] sm:$0xf]
          %v316 = vld [vmem:[%s299 + $0x40] sm:$0xf]
          %v317 = vld [vmem:[%s299 + $0x44] sm:$0xf]
          %v318 = vld [vmem:[%s299 + $0x48] sm:$0xf]
          %v319 = vld [vmem:[%s299 + $0x4c] sm:$0xf]
          %v320 = vld [vmem:[%s299 + $0x50] sm:$0xf]
          %v321 = vld [vmem:[%s299 + $0x54] sm:$0xf]
          %v322 = vld [vmem:[%s299 + $0x58] sm:$0xf]
          %v323 = vld [vmem:[%s299 + $0x5c] sm:$0xf]
          %v324 = vld [vmem:[%s299 + $0x60] sm:$0xf]
          %v325 = vld [vmem:[%s299 + $0x64] sm:$0xf]
          %v326 = vld [vmem:[%s299 + $0x68] sm:$0xf]
          %v327 = vld [vmem:[%s299 + $0x6c] sm:$0xf]
          %v328 = vld [vmem:[%s299 + $0x70] sm:$0xf]
          %v329 = vld [vmem:[%s299 + $0x74] sm:$0xf]
          %v330 = vld [vmem:[%s299 + $0x78] sm:$0xf]
          %v331 = vld [vmem:[%s299 + $0x7c] sm:$0xf]
          %v332 = vld [vmem:[%s299 + $0x80] sm:$0xf]
          %v333 = vld [vmem:[%s299 + $0x84] sm:$0xf]
          %v334 = vld [vmem:[%s299 + $0x88] sm:$0xf]
          %v335 = vld [vmem:[%s299 + $0x8c] sm:$0xf]
          %v336 = vld [vmem:[%s299 + $0x90] sm:$0xf]
          %v337 = vld [vmem:[%s299 + $0x94] sm:$0xf]
          %v338 = vld [vmem:[%s299 + $0x98] sm:$0xf]
          %v339 = vld [vmem:[%s299 + $0x9c] sm:$0xf]
          %v340 = vld [vmem:[%s299 + $0xa0] sm:$0xf]
          %v341 = vld [vmem:[%s299 + $0xa4] sm:$0xf]
          %v342 = vld [vmem:[%s299 + $0xa8] sm:$0xf]
          %v343 = vld [vmem:[%s299 + $0xac] sm:$0xf]
          %v344 = vld [vmem:[%s299 + $0xb0] sm:$0xf]
          %v345 = vld [vmem:[%s299 + $0xb4] sm:$0xf]
          %v346 = vld [vmem:[%s299 + $0xb8] sm:$0xf]
          %v347 = vld [vmem:[%s299 + $0xbc] sm:$0xf]
          %v348 = vld [vmem:[%s299 + $0xc0] sm:$0xf]
          %v349 = vld [vmem:[%s299 + $0xc4] sm:$0xf]
          %v350 = vld [vmem:[%s299 + $0xc8] sm:$0xf]
          %v351 = vld [vmem:[%s299 + $0xcc] sm:$0xf]
          %v352 = vld [vmem:[%s299 + $0xd0] sm:$0xf]
          %v353 = vld [vmem:[%s299 + $0xd4] sm:$0xf]
          %v354 = vld [vmem:[%s299 + $0xd8] sm:$0xf]
          %v355 = vld [vmem:[%s299 + $0xdc] sm:$0xf]
          %v356 = vld [vmem:[%s299 + $0xe0] sm:$0xf]
          %v357 = vld [vmem:[%s299 + $0xe4] sm:$0xf]
          %v358 = vld [vmem:[%s299 + $0xe8] sm:$0xf]
          %v359 = vld [vmem:[%s299 + $0xec] sm:$0xf]
          %v360 = vld [vmem:[%s299 + $0xf0] sm:$0xf]
          %v361 = vld [vmem:[%s299 + $0xf4] sm:$0xf]
          %v362 = vld [vmem:[%s299 + $0xf8] sm:$0xf]
          %v363 = vld [vmem:[%s299 + $0xfc] sm:$0xf]
          %v364 = vld [vmem:[%s299 + $0x100] sm:$0xf]
          %v365 = vld [vmem:[%s299 + $0x104] sm:$0xf]
          %v366 = vld [vmem:[%s299 + $0x108] sm:$0xf]
          %v367 = vld [vmem:[%s299 + $0x10c] sm:$0xf]
          %v368 = vld [vmem:[%s299 + $0x110] sm:$0xf]
          %v369 = vld [vmem:[%s299 + $0x114] sm:$0xf]
          %v370 = vld [vmem:[%s299 + $0x118] sm:$0xf]
          %v371 = vld [vmem:[%s299 + $0x11c] sm:$0xf]
          %v372 = vld [vmem:[%s299 + $0x120] sm:$0xf]
          %v373 = vld [vmem:[%s299 + $0x124] sm:$0xf]
          %v374 = vld [vmem:[%s299 + $0x128] sm:$0xf]
          %v375 = vld [vmem:[%s299 + $0x12c] sm:$0xf]
          %v376 = vld [vmem:[%s299 + $0x130] sm:$0xf]
          %v377 = vld [vmem:[%s299 + $0x134] sm:$0xf]
          %v378 = vld [vmem:[%s299 + $0x138] sm:$0xf]
          %v379 = vld [vmem:[%s299 + $0x13c] sm:$0xf]
          %v380 = vld [vmem:[%s299 + $0x140] sm:$0xf]
          %v381 = vld [vmem:[%s299 + $0x144] sm:$0xf]
          %v382 = vld [vmem:[%s299 + $0x148] sm:$0xf]
          %v383 = vld [vmem:[%s299 + $0x14c] sm:$0xf]
          %v384 = vld [vmem:[%s299 + $0x150] sm:$0xf]
          %v385 = vld [vmem:[%s299 + $0x154] sm:$0xf]
          %v386 = vld [vmem:[%s299 + $0x158] sm:$0xf]
          %v387 = vld [vmem:[%s299 + $0x15c] sm:$0xf]
          %v388 = vld [vmem:[%s299 + $0x160] sm:$0xf]
          %v389 = vld [vmem:[%s299 + $0x164] sm:$0xf]
          %v390 = vld [vmem:[%s299 + $0x168] sm:$0xf]
          %v391 = vld [vmem:[%s299 + $0x16c] sm:$0xf]
          %v392 = vld [vmem:[%s299 + $0x170] sm:$0xf]
          %v393 = vld [vmem:[%s299 + $0x174] sm:$0xf]
          %v394 = vld [vmem:[%s299 + $0x178] sm:$0xf]
          %v395 = vld [vmem:[%s299 + $0x17c] sm:$0xf]
          %v396 = vld [vmem:[%s299 + $0x180] sm:$0xf]
          %v397 = vld [vmem:[%s299 + $0x184] sm:$0xf]
          %v398 = vld [vmem:[%s299 + $0x188] sm:$0xf]
          %v399 = vld [vmem:[%s299 + $0x18c] sm:$0xf]
          %v400 = vld [vmem:[%s299 + $0x190] sm:$0xf]
          %v401 = vld [vmem:[%s299 + $0x194] sm:$0xf]
          %v402 = vld [vmem:[%s299 + $0x198] sm:$0xf]
          %v403 = vld [vmem:[%s299 + $0x19c] sm:$0xf]
          %v404 = vld [vmem:[%s299 + $0x1a0] sm:$0xf]
          %v405 = vld [vmem:[%s299 + $0x1a4] sm:$0xf]
          %v406 = vld [vmem:[%s299 + $0x1a8] sm:$0xf]
          %v407 = vld [vmem:[%s299 + $0x1ac] sm:$0xf]
          %v408 = vld [vmem:[%s299 + $0x1b0] sm:$0xf]
          %v409 = vld [vmem:[%s299 + $0x1b4] sm:$0xf]
          %v410 = vld [vmem:[%s299 + $0x1b8] sm:$0xf]
          %v411 = vld [vmem:[%s299 + $0x1bc] sm:$0xf]
          %v412 = vld [vmem:[%s299 + $0x1c0] sm:$0xf]
          %v413 = vld [vmem:[%s299 + $0x1c4] sm:$0xf]
          %v414 = vld [vmem:[%s299 + $0x1c8] sm:$0xf]
          %v415 = vld [vmem:[%s299 + $0x1cc] sm:$0xf]
          %v416 = vld [vmem:[%s299 + $0x1d0] sm:$0xf]
          %v417 = vld [vmem:[%s299 + $0x1d4] sm:$0xf]
          %v418 = vld [vmem:[%s299 + $0x1d8] sm:$0xf]
          %v419 = vld [vmem:[%s299 + $0x1dc] sm:$0xf]
          %v420 = vld [vmem:[%s299 + $0x1e0] sm:$0xf]
          %v421 = vld [vmem:[%s299 + $0x1e4] sm:$0xf]
          %v422 = vld [vmem:[%s299 + $0x1e8] sm:$0xf]
          %v423 = vld [vmem:[%s299 + $0x1ec] sm:$0xf]
          %v424 = vld [vmem:[%s299 + $0x1f0] sm:$0xf]
          %v425 = vld [vmem:[%s299 + $0x1f4] sm:$0xf]
          %v426 = vld [vmem:[%s299 + $0x1f8] sm:$0xf]
          %v427 = vld [vmem:[%s299 + $0x1fc] sm:$0xf]
          %v428 = vld [vmem:[%s1] sm:$0xf]
          %v429 = vld [vmem:[%s1 + $0x4] sm:$0xf]
          %v430 = vld [vmem:[%s1 + $0x8] sm:$0xf]
          %v431 = vld [vmem:[%s1 + $0xc] sm:$0xf]
          %v432 = vld [vmem:[%s1 + $0x10] sm:$0xf]
          %v433 = vld [vmem:[%s1 + $0x14] sm:$0xf]
          %v434 = vld [vmem:[%s1 + $0x18] sm:$0xf]
          %v435 = vld [vmem:[%s1 + $0x1c] sm:$0xf]
          %v564 = vunpack.c.l.b16 %v300
          %v565 = vunpack.c.l.b16 %v301
          %v566 = vunpack.c.l.b16 %v302
          %v567 = vunpack.c.l.b16 %v303
          %v568 = vunpack.c.l.b16 %v304
          %v569 = vunpack.c.l.b16 %v305
          %v570 = vunpack.c.l.b16 %v306
          %v571 = vunpack.c.l.b16 %v307
          %v572 = vunpack.c.l.b16 %v308
          %v573 = vunpack.c.l.b16 %v309
          %v574 = vunpack.c.l.b16 %v310
          %v575 = vunpack.c.l.b16 %v311
          %v576 = vunpack.c.l.b16 %v312
          %v577 = vunpack.c.l.b16 %v313
          %v578 = vunpack.c.l.b16 %v314
          %v579 = vunpack.c.l.b16 %v315
          %v580 = vunpack.c.l.b16 %v316
          %v581 = vunpack.c.l.b16 %v317
          %v582 = vunpack.c.l.b16 %v318
          %v583 = vunpack.c.l.b16 %v319
          %v584 = vunpack.c.l.b16 %v320
          %v585 = vunpack.c.l.b16 %v321
          %v586 = vunpack.c.l.b16 %v322
          %v587 = vunpack.c.l.b16 %v323
          %v588 = vunpack.c.l.b16 %v324
          %v589 = vunpack.c.l.b16 %v325
          %v590 = vunpack.c.l.b16 %v326
          %v591 = vunpack.c.l.b16 %v327
          %v592 = vunpack.c.l.b16 %v328
          %v593 = vunpack.c.l.b16 %v329
          %v594 = vunpack.c.l.b16 %v330
          %v595 = vunpack.c.l.b16 %v331
          %v596 = vunpack.c.l.b16 %v332
          %v597 = vunpack.c.l.b16 %v333
          %v598 = vunpack.c.l.b16 %v334
          %v599 = vunpack.c.l.b16 %v335
          %v600 = vunpack.c.l.b16 %v336
          %v601 = vunpack.c.l.b16 %v337
          %v602 = vunpack.c.l.b16 %v338
          %v603 = vunpack.c.l.b16 %v339
          %v604 = vunpack.c.l.b16 %v340
          %v605 = vunpack.c.l.b16 %v341
          %v606 = vunpack.c.l.b16 %v342
          %v607 = vunpack.c.l.b16 %v343
          %v608 = vunpack.c.l.b16 %v344
          %v609 = vunpack.c.l.b16 %v345
          %v610 = vunpack.c.l.b16 %v346
          %v611 = vunpack.c.l.b16 %v347
          %v612 = vunpack.c.l.b16 %v348
          %v613 = vunpack.c.l.b16 %v349
          %v614 = vunpack.c.l.b16 %v350
          %v615 = vunpack.c.l.b16 %v351
          %v616 = vunpack.c.l.b16 %v352
          %v617 = vunpack.c.l.b16 %v353
          %v618 = vunpack.c.l.b16 %v354
          %v619 = vunpack.c.l.b16 %v355
          %v620 = vunpack.c.l.b16 %v356
          %v621 = vunpack.c.l.b16 %v357
          %v622 = vunpack.c.l.b16 %v358
          %v623 = vunpack.c.l.b16 %v359
          %v624 = vunpack.c.l.b16 %v360
          %v625 = vunpack.c.l.b16 %v361
          %v626 = vunpack.c.l.b16 %v362
          %v627 = vunpack.c.l.b16 %v363
          %v628 = vunpack.c.l.b16 %v364
          %v629 = vunpack.c.l.b16 %v365
          %v630 = vunpack.c.l.b16 %v366
          %v631 = vunpack.c.l.b16 %v367
          %v632 = vunpack.c.l.b16 %v368
          %v633 = vunpack.c.l.b16 %v369
          %v634 = vunpack.c.l.b16 %v370
          %v635 = vunpack.c.l.b16 %v371
          %v636 = vunpack.c.l.b16 %v372
          %v637 = vunpack.c.l.b16 %v373
          %v638 = vunpack.c.l.b16 %v374
          %v639 = vunpack.c.l.b16 %v375
          %v640 = vunpack.c.l.b16 %v376
          %v641 = vunpack.c.l.b16 %v377
          %v642 = vunpack.c.l.b16 %v378
          %v643 = vunpack.c.l.b16 %v379
          %v644 = vunpack.c.l.b16 %v380
          %v645 = vunpack.c.l.b16 %v381
          %v646 = vunpack.c.l.b16 %v382
          %v647 = vunpack.c.l.b16 %v383
          %v648 = vunpack.c.l.b16 %v384
          %v649 = vunpack.c.l.b16 %v385
          %v650 = vunpack.c.l.b16 %v386
          %v651 = vunpack.c.l.b16 %v387
          %v652 = vunpack.c.l.b16 %v388
          %v653 = vunpack.c.l.b16 %v389
          %v654 = vunpack.c.l.b16 %v390
          %v655 = vunpack.c.l.b16 %v391
          %v656 = vunpack.c.l.b16 %v392
          %v657 = vunpack.c.l.b16 %v393
          %v658 = vunpack.c.l.b16 %v394
          %v659 = vunpack.c.l.b16 %v395
          %v660 = vunpack.c.l.b16 %v396
          %v661 = vunpack.c.l.b16 %v397
          %v662 = vunpack.c.l.b16 %v398
          %v663 = vunpack.c.l.b16 %v399
          %v664 = vunpack.c.l.b16 %v400
          %v665 = vunpack.c.l.b16 %v401
          %v666 = vunpack.c.l.b16 %v402
          %v667 = vunpack.c.l.b16 %v403
          %v668 = vunpack.c.l.b16 %v404
          %v669 = vunpack.c.l.b16 %v405
          %v670 = vunpack.c.l.b16 %v406
          %v671 = vunpack.c.l.b16 %v407
          %v672 = vunpack.c.l.b16 %v408
          %v673 = vunpack.c.l.b16 %v409
          %v674 = vunpack.c.l.b16 %v410
          %v675 = vunpack.c.l.b16 %v411
          %v676 = vunpack.c.l.b16 %v412
          %v677 = vunpack.c.l.b16 %v413
          %v678 = vunpack.c.l.b16 %v414
          %v679 = vunpack.c.l.b16 %v415
          %v680 = vunpack.c.l.b16 %v416
          %v681 = vunpack.c.l.b16 %v417
          %v682 = vunpack.c.l.b16 %v418
          %v683 = vunpack.c.l.b16 %v419
          %v684 = vunpack.c.l.b16 %v420
          %v685 = vunpack.c.l.b16 %v421
          %v686 = vunpack.c.l.b16 %v422
          %v687 = vunpack.c.l.b16 %v423
          %v688 = vunpack.c.l.b16 %v424
          %v689 = vunpack.c.l.b16 %v425
          %v690 = vunpack.c.l.b16 %v426
          %v691 = vunpack.c.l.b16 %v427
          %v692 = vpack.c.b16 %v565, %v564
          %v693 = vpack.c.b16 %v567, %v566
          %v694 = vpack.c.b16 %v569, %v568
          %v695 = vpack.c.b16 %v571, %v570
          %v696 = vpack.c.b16 %v573, %v572
          %v697 = vpack.c.b16 %v575, %v574
          %v698 = vpack.c.b16 %v577, %v576
          %v699 = vpack.c.b16 %v579, %v578
          %v700 = vpack.c.b16 %v581, %v580
          %v701 = vpack.c.b16 %v583, %v582
          %v702 = vpack.c.b16 %v585, %v584
          %v703 = vpack.c.b16 %v587, %v586
          %v704 = vpack.c.b16 %v589, %v588
          %v705 = vpack.c.b16 %v591, %v590
          %v706 = vpack.c.b16 %v593, %v592
          %v707 = vpack.c.b16 %v595, %v594
          %v708 = vpack.c.b16 %v597, %v596
          %v709 = vpack.c.b16 %v599, %v598
          %v710 = vpack.c.b16 %v601, %v600
          %v711 = vpack.c.b16 %v603, %v602
          %v712 = vpack.c.b16 %v605, %v604
          %v713 = vpack.c.b16 %v607, %v606
          %v714 = vpack.c.b16 %v609, %v608
          %v715 = vpack.c.b16 %v611, %v610
          %v716 = vpack.c.b16 %v613, %v612
          %v717 = vpack.c.b16 %v615, %v614
          %v718 = vpack.c.b16 %v617, %v616
          %v719 = vpack.c.b16 %v619, %v618
          %v720 = vpack.c.b16 %v621, %v620
          %v721 = vpack.c.b16 %v623, %v622
          %v722 = vpack.c.b16 %v625, %v624
          %v723 = vpack.c.b16 %v627, %v626
          %v724 = vpack.c.b16 %v629, %v628
          %v725 = vpack.c.b16 %v631, %v630
          %v726 = vpack.c.b16 %v633, %v632
          %v727 = vpack.c.b16 %v635, %v634
          %v728 = vpack.c.b16 %v637, %v636
          %v729 = vpack.c.b16 %v639, %v638
          %v730 = vpack.c.b16 %v641, %v640
          %v731 = vpack.c.b16 %v643, %v642
          %v732 = vpack.c.b16 %v645, %v644
          %v733 = vpack.c.b16 %v647, %v646
          %v734 = vpack.c.b16 %v649, %v648
          %v735 = vpack.c.b16 %v651, %v650
          %v736 = vpack.c.b16 %v653, %v652
          %v737 = vpack.c.b16 %v655, %v654
          %v738 = vpack.c.b16 %v657, %v656
          %v739 = vpack.c.b16 %v659, %v658
          %v740 = vpack.c.b16 %v661, %v660
          %v741 = vpack.c.b16 %v663, %v662
          %v742 = vpack.c.b16 %v665, %v664
          %v743 = vpack.c.b16 %v667, %v666
          %v744 = vpack.c.b16 %v669, %v668
          %v745 = vpack.c.b16 %v671, %v670
          %v746 = vpack.c.b16 %v673, %v672
          %v747 = vpack.c.b16 %v675, %v674
          %v748 = vpack.c.b16 %v677, %v676
          %v749 = vpack.c.b16 %v679, %v678
          %v750 = vpack.c.b16 %v681, %v680
          %v751 = vpack.c.b16 %v683, %v682
          %v752 = vpack.c.b16 %v685, %v684
          %v753 = vpack.c.b16 %v687, %v686
          %v754 = vpack.c.b16 %v689, %v688
          %v755 = vpack.c.b16 %v691, %v690
          %v764 = vunpack.c.l.b16 %v428
          %v765 = vunpack.c.l.b16 %v429
          %v766 = vunpack.c.l.b16 %v430
          %v767 = vunpack.c.l.b16 %v431
          %v768 = vunpack.c.l.b16 %v432
          %v769 = vunpack.c.l.b16 %v433
          %v770 = vunpack.c.l.b16 %v434
          %v771 = vunpack.c.l.b16 %v435
          %v772 = vpack.c.b16 %v765, %v764
          %v773 = vpack.c.b16 %v767, %v766
          %v774 = vpack.c.b16 %v769, %v768
          %v775 = vpack.c.b16 %v771, %v770
          %vm780 = vcmask 523264
          %v782 = vsel %vm780, %v692, 0
          %v785 = vsel %vm780, %v693, 0
          %v788 = vsel %vm780, %v694, 0
          %v791 = vsel %vm780, %v695, 0
          %v794 = vsel %vm780, %v696, 0
          %v797 = vsel %vm780, %v697, 0
          %v800 = vsel %vm780, %v698, 0
          %v803 = vsel %vm780, %v699, 0
          %v806 = vsel %vm780, %v700, 0
          %v809 = vsel %vm780, %v701, 0
          %v812 = vsel %vm780, %v702, 0
          %v815 = vsel %vm780, %v703, 0
          %v818 = vsel %vm780, %v704, 0
          %v821 = vsel %vm780, %v705, 0
          %v824 = vsel %vm780, %v706, 0
          %v827 = vsel %vm780, %v707, 0
          %v830 = vsel %vm780, %v708, 0
          %v833 = vsel %vm780, %v709, 0
          %v836 = vsel %vm780, %v710, 0
          %v839 = vsel %vm780, %v711, 0
          %v842 = vsel %vm780, %v712, 0
          %v845 = vsel %vm780, %v713, 0
          %v848 = vsel %vm780, %v714, 0
          %v851 = vsel %vm780, %v715, 0
          %v854 = vsel %vm780, %v716, 0
          %v857 = vsel %vm780, %v717, 0
          %v860 = vsel %vm780, %v718, 0
          %v863 = vsel %vm780, %v719, 0
          %v866 = vsel %vm780, %v720, 0
          %v869 = vsel %vm780, %v721, 0
          %v872 = vsel %vm780, %v722, 0
          %v875 = vsel %vm780, %v723, 0
          %v878 = vsel %vm780, %v724, 0
          %v881 = vsel %vm780, %v725, 0
          %v884 = vsel %vm780, %v726, 0
          %v887 = vsel %vm780, %v727, 0
          %v890 = vsel %vm780, %v728, 0
          %v893 = vsel %vm780, %v729, 0
          %v896 = vsel %vm780, %v730, 0
          %v899 = vsel %vm780, %v731, 0
          %v902 = vsel %vm780, %v732, 0
          %v905 = vsel %vm780, %v733, 0
          %v908 = vsel %vm780, %v734, 0
          %v911 = vsel %vm780, %v735, 0
          %v914 = vsel %vm780, %v736, 0
          %v917 = vsel %vm780, %v737, 0
          %v920 = vsel %vm780, %v738, 0
          %v923 = vsel %vm780, %v739, 0
          %v926 = vsel %vm780, %v740, 0
          %v929 = vsel %vm780, %v741, 0
          %v932 = vsel %vm780, %v742, 0
          %v935 = vsel %vm780, %v743, 0
          %v938 = vsel %vm780, %v744, 0
          %v941 = vsel %vm780, %v745, 0
          %v944 = vsel %vm780, %v746, 0
          %v947 = vsel %vm780, %v747, 0
          %v950 = vsel %vm780, %v748, 0
          %v953 = vsel %vm780, %v749, 0
          %v956 = vsel %vm780, %v750, 0
          %v959 = vsel %vm780, %v751, 0
          %v962 = vsel %vm780, %v752, 0
          %v965 = vsel %vm780, %v753, 0
          %v968 = vsel %vm780, %v754, 0
          %v971 = vsel %vm780, %v755, 0
          %973 = vmatprep.subr.bf16.mxu0 0
          %974 = vmatpush1.bf16.msra.mxu0 %v772
          %975 = vmatprep.subr.bf16.mxu0 0
          %976 = vmatpush1.bf16.msra.mxu0 %v773
          %977 = vmatprep.subr.bf16.mxu0 0
          %978 = vmatpush1.bf16.msra.mxu0 %v774
          %979 = vmatprep.subr.bf16.mxu0 0
          %980 = vmatpush1.bf16.msra.mxu0 %v775
          %981 = vmatprep.subr.bf16.mxu0 0
          %982 = vmatpush1.bf16.msra.mxu0 0
          %983 = vmatprep.subr.bf16.mxu0 0
          %984 = vmatpush1.bf16.msra.mxu0 0
          %985 = vmatprep.subr.bf16.mxu0 0
          %986 = vmatpush1.bf16.msra.mxu0 0
          %987 = vmatprep.subr.bf16.mxu0 0
          %988 = vmatpush1.bf16.msra.mxu0 0
          %989 = vmatprep.subr.bf16.mxu0 0
          %990 = vmatpush1.bf16.msra.mxu0 0
          %991 = vmatprep.subr.bf16.mxu0 0
          %992 = vmatpush1.bf16.msra.mxu0 0
          %993 = vmatprep.subr.bf16.mxu0 0
          %994 = vmatpush1.bf16.msra.mxu0 0
          %995 = vmatprep.subr.bf16.mxu0 0
          %996 = vmatpush1.bf16.msra.mxu0 0
          %997 = vmatprep.subr.bf16.mxu0 0
          %998 = vmatpush1.bf16.msra.mxu0 0
          %999 = vmatprep.subr.bf16.mxu0 0
          %1000 = vmatpush1.bf16.msra.mxu0 0
          %1001 = vmatprep.subr.bf16.mxu0 0
          %1002 = vmatpush1.bf16.msra.mxu0 0
          %1003 = vmatprep.subr.bf16.mxu0 0
          %1004 = vmatpush1.bf16.msra.mxu0 0
          %1005 = vmatprep.mubr.bf16.mxu0 0
          %1006 = vmatmul.mubr.bf16.gmra.mrb[0].mxu0 %v782
          %v1007 = vpop.f32.mrb[0].mxu0
          %v1008 = vadd.f32 0.0, %v1007
          %v1009 = vpop.f32.mrb[0].mxu0
          %v1010 = vpop.f32.mrb[0].mxu0
          %v1011 = vadd.f32 0.0, %v1010
          %v1012 = vpop.f32.mrb[0].mxu0
          %1013 = vmatprep.mubr.bf16.mxu0 0
          %1014 = vmatmul.mubr.bf16.gmra.mrb[0].mxu0 %v785
          %v1015 = vpop.f32.mrb[0].mxu0
          %v1016 = vadd.f32 0.0, %v1015
          %v1017 = vpop.f32.mrb[0].mxu0
          %v1018 = vpop.f32.mrb[0].mxu0
          %v1019 = vadd.f32 0.0, %v1018
          %v1020 = vpop.f32.mrb[0].mxu0
          %1021 = vmatprep.mubr.bf16.mxu0 0
          %1022 = vmatmul.mubr.bf16.gmra.mrb[0].mxu0 %v788
          %v1023 = vpop.f32.mrb[0].mxu0
          %v1024 = vadd.f32 0.0, %v1023
          %v1025 = vpop.f32.mrb[0].mxu0
          %v1026 = vpop.f32.mrb[0].mxu0
          %v1027 = vadd.f32 0.0, %v1026
          %v1028 = vpop.f32.mrb[0].mxu0
          %1029 = vmatprep.mubr.bf16.mxu0 0
          %1030 = vmatmul.mubr.bf16.gmra.mrb[0].mxu0 %v791
          %v1031 = vpop.f32.mrb[0].mxu0
          %v1032 = vadd.f32 0.0, %v1031
          %v1033 = vpop.f32.mrb[0].mxu0
          %v1034 = vpop.f32.mrb[0].mxu0
          %v1035 = vadd.f32 0.0, %v1034
          %v1036 = vpop.f32.mrb[0].mxu0
          %1037 = vmatprep.mubr.bf16.mxu0 0
          %1038 = vmatmul.mubr.bf16.gmra.mrb[0].mxu0 %v794
          %v1039 = vpop.f32.mrb[0].mxu0
          %v1040 = vadd.f32 0.0, %v1039
          %v1041 = vpop.f32.mrb[0].mxu0
          %v1042 = vpop.f32.mrb[0].mxu0
          %v1043 = vadd.f32 0.0, %v1042
          %v1044 = vpop.f32.mrb[0].mxu0
          %1045 = vmatprep.mubr.bf16.mxu0 0
          %1046 = vmatmul.mubr.bf16.gmra.mrb[0].mxu0 %v797
          %v1047 = vpop.f32.mrb[0].mxu0
          %v1048 = vadd.f32 0.0, %v1047
          %v1049 = vpop.f32.mrb[0].mxu0
          %v1050 = vpop.f32.mrb[0].mxu0
          %v1051 = vadd.f32 0.0, %v1050
          %v1052 = vpop.f32.mrb[0].mxu0
          %1053 = vmatprep.mubr.bf16.mxu0 0
          %1054 = vmatmul.mubr.bf16.gmra.mrb[0].mxu0 %v800
          %v1055 = vpop.f32.mrb[0].mxu0
          %v1056 = vadd.f32 0.0, %v1055
          %v1057 = vpop.f32.mrb[0].mxu0
          %v1058 = vpop.f32.mrb[0].mxu0
          %v1059 = vadd.f32 0.0, %v1058
          %v1060 = vpop.f32.mrb[0].mxu0
          %1061 = vmatprep.mubr.bf16.mxu0 0
          %1062 = vmatmul.mubr.bf16.gmra.mrb[0].mxu0 %v803
          %v1063 = vpop.f32.mrb[0].mxu0
          %v1064 = vadd.f32 0.0, %v1063
          %v1065 = vpop.f32.mrb[0].mxu0
          %v1066 = vpop.f32.mrb[0].mxu0
          %v1067 = vadd.f32 0.0, %v1066
          %v1068 = vpop.f32.mrb[0].mxu0
          %1069 = vmatprep.mubr.bf16.mxu0 0
          %1070 = vmatmul.mubr.bf16.gmra.mrb[0].mxu0 %v806
          %v1071 = vpop.f32.mrb[0].mxu0
          %v1072 = vadd.f32 0.0, %v1071
          %v1073 = vpop.f32.mrb[0].mxu0
          %v1074 = vpop.f32.mrb[0].mxu0
          %v1075 = vadd.f32 0.0, %v1074
          %v1076 = vpop.f32.mrb[0].mxu0
          %1077 = vmatprep.mubr.bf16.mxu0 0
          %1078 = vmatmul.mubr.bf16.gmra.mrb[0].mxu0 %v809
          %v1079 = vpop.f32.mrb[0].mxu0
          %v1080 = vadd.f32 0.0, %v1079
          %v1081 = vpop.f32.mrb[0].mxu0
          %v1082 = vpop.f32.mrb[0].mxu0
          %v1083 = vadd.f32 0.0, %v1082
          %v1084 = vpop.f32.mrb[0].mxu0
          %1085 = vmatprep.mubr.bf16.mxu0 0
          %1086 = vmatmul.mubr.bf16.gmra.mrb[0].mxu0 %v812
          %v1087 = vpop.f32.mrb[0].mxu0
          %v1088 = vadd.f32 0.0, %v1087
          %v1089 = vpop.f32.mrb[0].mxu0
          %v1090 = vpop.f32.mrb[0].mxu0
          %v1091 = vadd.f32 0.0, %v1090
          %v1092 = vpop.f32.mrb[0].mxu0
          %1093 = vmatprep.mubr.bf16.mxu0 0
          %1094 = vmatmul.mubr.bf16.gmra.mrb[0].mxu0 %v815
          %v1095 = vpop.f32.mrb[0].mxu0
          %v1096 = vadd.f32 0.0, %v1095
          %v1097 = vpop.f32.mrb[0].mxu0
          %v1098 = vpop.f32.mrb[0].mxu0
          %v1099 = vadd.f32 0.0, %v1098
          %v1100 = vpop.f32.mrb[0].mxu0
          %1101 = vmatprep.mubr.bf16.mxu0 0
          %1102 = vmatmul.mubr.bf16.gmra.mrb[0].mxu0 %v818
          %v1103 = vpop.f32.mrb[0].mxu0
          %v1104 = vadd.f32 0.0, %v1103
          %v1105 = vpop.f32.mrb[0].mxu0
          %v1106 = vpop.f32.mrb[0].mxu0
          %v1107 = vadd.f32 0.0, %v1106
          %v1108 = vpop.f32.mrb[0].mxu0
          %1109 = vmatprep.mubr.bf16.mxu0 0
          %1110 = vmatmul.mubr.bf16.gmra.mrb[0].mxu0 %v821
          %v1111 = vpop.f32.mrb[0].mxu0
          %v1112 = vadd.f32 0.0, %v1111
          %v1113 = vpop.f32.mrb[0].mxu0
          %v1114 = vpop.f32.mrb[0].mxu0
          %v1115 = vadd.f32 0.0, %v1114
          %v1116 = vpop.f32.mrb[0].mxu0
          %1117 = vmatprep.mubr.bf16.mxu0 0
          %1118 = vmatmul.mubr.bf16.gmra.mrb[0].mxu0 %v824
          %v1119 = vpop.f32.mrb[0].mxu0
          %v1120 = vadd.f32 0.0, %v1119
          %v1121 = vpop.f32.mrb[0].mxu0
          %v1122 = vpop.f32.mrb[0].mxu0
          %v1123 = vadd.f32 0.0, %v1122
          %v1124 = vpop.f32.mrb[0].mxu0
          %1125 = vmatprep.mubr.bf16.mxu0 0
          %1126 = vmatmul.mubr.bf16.gmra.mrb[0].mxu0 %v827
          %v1127 = vpop.f32.mrb[0].mxu0
          %v1128 = vadd.f32 0.0, %v1127
          %v1129 = vpop.f32.mrb[0].mxu0
          %v1130 = vpop.f32.mrb[0].mxu0
          %v1131 = vadd.f32 0.0, %v1130
          %v1132 = vpop.f32.mrb[0].mxu0
          %1133 = vmatprep.mubr.bf16.mxu0 0
          %1134 = vmatmul.mubr.bf16.gmra.mrb[0].mxu0 %v830
          %v1135 = vpop.f32.mrb[0].mxu0
          %v1136 = vadd.f32 0.0, %v1135
          %v1137 = vpop.f32.mrb[0].mxu0
          %v1138 = vpop.f32.mrb[0].mxu0
          %v1139 = vadd.f32 0.0, %v1138
          %v1140 = vpop.f32.mrb[0].mxu0
          %1141 = vmatprep.mubr.bf16.mxu0 0
          %1142 = vmatmul.mubr.bf16.gmra.mrb[0].mxu0 %v833
          %v1143 = vpop.f32.mrb[0].mxu0
          %v1144 = vadd.f32 0.0, %v1143
          %v1145 = vpop.f32.mrb[0].mxu0
          %v1146 = vpop.f32.mrb[0].mxu0
          %v1147 = vadd.f32 0.0, %v1146
          %v1148 = vpop.f32.mrb[0].mxu0
          %1149 = vmatprep.mubr.bf16.mxu0 0
          %1150 = vmatmul.mubr.bf16.gmra.mrb[0].mxu0 %v836
          %v1151 = vpop.f32.mrb[0].mxu0
          %v1152 = vadd.f32 0.0, %v1151
          %v1153 = vpop.f32.mrb[0].mxu0
          %v1154 = vpop.f32.mrb[0].mxu0
          %v1155 = vadd.f32 0.0, %v1154
          %v1156 = vpop.f32.mrb[0].mxu0
          %1157 = vmatprep.mubr.bf16.mxu0 0
          %1158 = vmatmul.mubr.bf16.gmra.mrb[0].mxu0 %v839
          %v1159 = vpop.f32.mrb[0].mxu0
          %v1160 = vadd.f32 0.0, %v1159
          %v1161 = vpop.f32.mrb[0].mxu0
          %v1162 = vpop.f32.mrb[0].mxu0
          %v1163 = vadd.f32 0.0, %v1162
          %v1164 = vpop.f32.mrb[0].mxu0
          %1165 = vmatprep.mubr.bf16.mxu0 0
          %1166 = vmatmul.mubr.bf16.gmra.mrb[0].mxu0 %v842
          %v1167 = vpop.f32.mrb[0].mxu0
          %v1168 = vadd.f32 0.0, %v1167
          %v1169 = vpop.f32.mrb[0].mxu0
          %v1170 = vpop.f32.mrb[0].mxu0
          %v1171 = vadd.f32 0.0, %v1170
          %v1172 = vpop.f32.mrb[0].mxu0
          %1173 = vmatprep.mubr.bf16.mxu0 0
          %1174 = vmatmul.mubr.bf16.gmra.mrb[0].mxu0 %v845
          %v1175 = vpop.f32.mrb[0].mxu0
          %v1176 = vadd.f32 0.0, %v1175
          %v1177 = vpop.f32.mrb[0].mxu0
          %v1178 = vpop.f32.mrb[0].mxu0
          %v1179 = vadd.f32 0.0, %v1178
          %v1180 = vpop.f32.mrb[0].mxu0
          %1181 = vmatprep.mubr.bf16.mxu0 0
          %1182 = vmatmul.mubr.bf16.gmra.mrb[0].mxu0 %v848
          %v1183 = vpop.f32.mrb[0].mxu0
          %v1184 = vadd.f32 0.0, %v1183
          %v1185 = vpop.f32.mrb[0].mxu0
          %v1186 = vpop.f32.mrb[0].mxu0
          %v1187 = vadd.f32 0.0, %v1186
          %v1188 = vpop.f32.mrb[0].mxu0
          %1189 = vmatprep.mubr.bf16.mxu0 0
          %1190 = vmatmul.mubr.bf16.gmra.mrb[0].mxu0 %v851
          %v1191 = vpop.f32.mrb[0].mxu0
          %v1192 = vadd.f32 0.0, %v1191
          %v1193 = vpop.f32.mrb[0].mxu0
          %v1194 = vpop.f32.mrb[0].mxu0
          %v1195 = vadd.f32 0.0, %v1194
          %v1196 = vpop.f32.mrb[0].mxu0
          %1197 = vmatprep.mubr.bf16.mxu0 0
          %1198 = vmatmul.mubr.bf16.gmra.mrb[0].mxu0 %v854
          %v1199 = vpop.f32.mrb[0].mxu0
          %v1200 = vadd.f32 0.0, %v1199
          %v1201 = vpop.f32.mrb[0].mxu0
          %v1202 = vpop.f32.mrb[0].mxu0
          %v1203 = vadd.f32 0.0, %v1202
          %v1204 = vpop.f32.mrb[0].mxu0
          %1205 = vmatprep.mubr.bf16.mxu0 0
          %1206 = vmatmul.mubr.bf16.gmra.mrb[0].mxu0 %v857
          %v1207 = vpop.f32.mrb[0].mxu0
          %v1208 = vadd.f32 0.0, %v1207
          %v1209 = vpop.f32.mrb[0].mxu0
          %v1210 = vpop.f32.mrb[0].mxu0
          %v1211 = vadd.f32 0.0, %v1210
          %v1212 = vpop.f32.mrb[0].mxu0
          %1213 = vmatprep.mubr.bf16.mxu0 0
          %1214 = vmatmul.mubr.bf16.gmra.mrb[0].mxu0 %v860
          %v1215 = vpop.f32.mrb[0].mxu0
          %v1216 = vadd.f32 0.0, %v1215
          %v1217 = vpop.f32.mrb[0].mxu0
          %v1218 = vpop.f32.mrb[0].mxu0
          %v1219 = vadd.f32 0.0, %v1218
          %v1220 = vpop.f32.mrb[0].mxu0
          %1221 = vmatprep.mubr.bf16.mxu0 0
          %1222 = vmatmul.mubr.bf16.gmra.mrb[0].mxu0 %v863
          %v1223 = vpop.f32.mrb[0].mxu0
          %v1224 = vadd.f32 0.0, %v1223
          %v1225 = vpop.f32.mrb[0].mxu0
          %v1226 = vpop.f32.mrb[0].mxu0
          %v1227 = vadd.f32 0.0, %v1226
          %v1228 = vpop.f32.mrb[0].mxu0
          %1229 = vmatprep.mubr.bf16.mxu0 0
          %1230 = vmatmul.mubr.bf16.gmra.mrb[0].mxu0 %v866
          %v1231 = vpop.f32.mrb[0].mxu0
          %v1232 = vadd.f32 0.0, %v1231
          %v1233 = vpop.f32.mrb[0].mxu0
          %v1234 = vpop.f32.mrb[0].mxu0
          %v1235 = vadd.f32 0.0, %v1234
          %v1236 = vpop.f32.mrb[0].mxu0
          %1237 = vmatprep.mubr.bf16.mxu0 0
          %1238 = vmatmul.mubr.bf16.gmra.mrb[0].mxu0 %v869
          %v1239 = vpop.f32.mrb[0].mxu0
          %v1240 = vadd.f32 0.0, %v1239
          %v1241 = vpop.f32.mrb[0].mxu0
          %v1242 = vpop.f32.mrb[0].mxu0
          %v1243 = vadd.f32 0.0, %v1242
          %v1244 = vpop.f32.mrb[0].mxu0
          %1245 = vmatprep.mubr.bf16.mxu0 0
          %1246 = vmatmul.mubr.bf16.gmra.mrb[0].mxu0 %v872
          %v1247 = vpop.f32.mrb[0].mxu0
          %v1248 = vadd.f32 0.0, %v1247
          %v1249 = vpop.f32.mrb[0].mxu0
          %v1250 = vpop.f32.mrb[0].mxu0
          %v1251 = vadd.f32 0.0, %v1250
          %v1252 = vpop.f32.mrb[0].mxu0
          %1253 = vmatprep.mubr.bf16.mxu0 0
          %1254 = vmatmul.mubr.bf16.gmra.mrb[0].mxu0 %v875
          %v1255 = vpop.f32.mrb[0].mxu0
          %v1256 = vadd.f32 0.0, %v1255
          %v1257 = vpop.f32.mrb[0].mxu0
          %v1258 = vpop.f32.mrb[0].mxu0
          %v1259 = vadd.f32 0.0, %v1258
          %v1260 = vpop.f32.mrb[0].mxu0
          %1261 = vmatprep.mubr.bf16.mxu0 0
          %1262 = vmatmul.mubr.bf16.gmra.mrb[0].mxu0 %v878
          %v1263 = vpop.f32.mrb[0].mxu0
          %v1264 = vadd.f32 0.0, %v1263
          %v1265 = vpop.f32.mrb[0].mxu0
          %v1266 = vpop.f32.mrb[0].mxu0
          %v1267 = vadd.f32 0.0, %v1266
          %v1268 = vpop.f32.mrb[0].mxu0
          %1269 = vmatprep.mubr.bf16.mxu0 0
          %1270 = vmatmul.mubr.bf16.gmra.mrb[0].mxu0 %v881
          %v1271 = vpop.f32.mrb[0].mxu0
          %v1272 = vadd.f32 0.0, %v1271
          %v1273 = vpop.f32.mrb[0].mxu0
          %v1274 = vpop.f32.mrb[0].mxu0
          %v1275 = vadd.f32 0.0, %v1274
          %v1276 = vpop.f32.mrb[0].mxu0
          %1277 = vmatprep.mubr.bf16.mxu0 0
          %1278 = vmatmul.mubr.bf16.gmra.mrb[0].mxu0 %v884
          %v1279 = vpop.f32.mrb[0].mxu0
          %v1280 = vadd.f32 0.0, %v1279
          %v1281 = vpop.f32.mrb[0].mxu0
          %v1282 = vpop.f32.mrb[0].mxu0
          %v1283 = vadd.f32 0.0, %v1282
          %v1284 = vpop.f32.mrb[0].mxu0
          %1285 = vmatprep.mubr.bf16.mxu0 0
          %1286 = vmatmul.mubr.bf16.gmra.mrb[0].mxu0 %v887
          %v1287 = vpop.f32.mrb[0].mxu0
          %v1288 = vadd.f32 0.0, %v1287
          %v1289 = vpop.f32.mrb[0].mxu0
          %v1290 = vpop.f32.mrb[0].mxu0
          %v1291 = vadd.f32 0.0, %v1290
          %v1292 = vpop.f32.mrb[0].mxu0
          %1293 = vmatprep.mubr.bf16.mxu0 0
          %1294 = vmatmul.mubr.bf16.gmra.mrb[0].mxu0 %v890
          %v1295 = vpop.f32.mrb[0].mxu0
          %v1296 = vadd.f32 0.0, %v1295
          %v1297 = vpop.f32.mrb[0].mxu0
          %v1298 = vpop.f32.mrb[0].mxu0
          %v1299 = vadd.f32 0.0, %v1298
          %v1300 = vpop.f32.mrb[0].mxu0
          %1301 = vmatprep.mubr.bf16.mxu0 0
          %1302 = vmatmul.mubr.bf16.gmra.mrb[0].mxu0 %v893
          %v1303 = vpop.f32.mrb[0].mxu0
          %v1304 = vadd.f32 0.0, %v1303
          %v1305 = vpop.f32.mrb[0].mxu0
          %v1306 = vpop.f32.mrb[0].mxu0
          %v1307 = vadd.f32 0.0, %v1306
          %v1308 = vpop.f32.mrb[0].mxu0
          %1309 = vmatprep.mubr.bf16.mxu0 0
          %1310 = vmatmul.mubr.bf16.gmra.mrb[0].mxu0 %v896
          %v1311 = vpop.f32.mrb[0].mxu0
          %v1312 = vadd.f32 0.0, %v1311
          %v1313 = vpop.f32.mrb[0].mxu0
          %v1314 = vpop.f32.mrb[0].mxu0
          %v1315 = vadd.f32 0.0, %v1314
          %v1316 = vpop.f32.mrb[0].mxu0
          %1317 = vmatprep.mubr.bf16.mxu0 0
          %1318 = vmatmul.mubr.bf16.gmra.mrb[0].mxu0 %v899
          %v1319 = vpop.f32.mrb[0].mxu0
          %v1320 = vadd.f32 0.0, %v1319
          %v1321 = vpop.f32.mrb[0].mxu0
          %v1322 = vpop.f32.mrb[0].mxu0
          %v1323 = vadd.f32 0.0, %v1322
          %v1324 = vpop.f32.mrb[0].mxu0
          %1325 = vmatprep.mubr.bf16.mxu0 0
          %1326 = vmatmul.mubr.bf16.gmra.mrb[0].mxu0 %v902
          %v1327 = vpop.f32.mrb[0].mxu0
          %v1328 = vadd.f32 0.0, %v1327
          %v1329 = vpop.f32.mrb[0].mxu0
          %v1330 = vpop.f32.mrb[0].mxu0
          %v1331 = vadd.f32 0.0, %v1330
          %v1332 = vpop.f32.mrb[0].mxu0
          %1333 = vmatprep.mubr.bf16.mxu0 0
          %1334 = vmatmul.mubr.bf16.gmra.mrb[0].mxu0 %v905
          %v1335 = vpop.f32.mrb[0].mxu0
          %v1336 = vadd.f32 0.0, %v1335
          %v1337 = vpop.f32.mrb[0].mxu0
          %v1338 = vpop.f32.mrb[0].mxu0
          %v1339 = vadd.f32 0.0, %v1338
          %v1340 = vpop.f32.mrb[0].mxu0
          %1341 = vmatprep.mubr.bf16.mxu0 0
          %1342 = vmatmul.mubr.bf16.gmra.mrb[0].mxu0 %v908
          %v1343 = vpop.f32.mrb[0].mxu0
          %v1344 = vadd.f32 0.0, %v1343
          %v1345 = vpop.f32.mrb[0].mxu0
          %v1346 = vpop.f32.mrb[0].mxu0
          %v1347 = vadd.f32 0.0, %v1346
          %v1348 = vpop.f32.mrb[0].mxu0
          %1349 = vmatprep.mubr.bf16.mxu0 0
          %1350 = vmatmul.mubr.bf16.gmra.mrb[0].mxu0 %v911
          %v1351 = vpop.f32.mrb[0].mxu0
          %v1352 = vadd.f32 0.0, %v1351
          %v1353 = vpop.f32.mrb[0].mxu0
          %v1354 = vpop.f32.mrb[0].mxu0
          %v1355 = vadd.f32 0.0, %v1354
          %v1356 = vpop.f32.mrb[0].mxu0
          %1357 = vmatprep.mubr.bf16.mxu0 0
          %1358 = vmatmul.mubr.bf16.gmra.mrb[0].mxu0 %v914
          %v1359 = vpop.f32.mrb[0].mxu0
          %v1360 = vadd.f32 0.0, %v1359
          %v1361 = vpop.f32.mrb[0].mxu0
          %v1362 = vpop.f32.mrb[0].mxu0
          %v1363 = vadd.f32 0.0, %v1362
          %v1364 = vpop.f32.mrb[0].mxu0
          %1365 = vmatprep.mubr.bf16.mxu0 0
          %1366 = vmatmul.mubr.bf16.gmra.mrb[0].mxu0 %v917
          %v1367 = vpop.f32.mrb[0].mxu0
          %v1368 = vadd.f32 0.0, %v1367
          %v1369 = vpop.f32.mrb[0].mxu0
          %v1370 = vpop.f32.mrb[0].mxu0
          %v1371 = vadd.f32 0.0, %v1370
          %v1372 = vpop.f32.mrb[0].mxu0
          %1373 = vmatprep.mubr.bf16.mxu0 0
          %1374 = vmatmul.mubr.bf16.gmra.mrb[0].mxu0 %v920
          %v1375 = vpop.f32.mrb[0].mxu0
          %v1376 = vadd.f32 0.0, %v1375
          %v1377 = vpop.f32.mrb[0].mxu0
          %v1378 = vpop.f32.mrb[0].mxu0
          %v1379 = vadd.f32 0.0, %v1378
          %v1380 = vpop.f32.mrb[0].mxu0
          %1381 = vmatprep.mubr.bf16.mxu0 0
          %1382 = vmatmul.mubr.bf16.gmra.mrb[0].mxu0 %v923
          %v1383 = vpop.f32.mrb[0].mxu0
          %v1384 = vadd.f32 0.0, %v1383
          %v1385 = vpop.f32.mrb[0].mxu0
          %v1386 = vpop.f32.mrb[0].mxu0
          %v1387 = vadd.f32 0.0, %v1386
          %v1388 = vpop.f32.mrb[0].mxu0
          %1389 = vmatprep.mubr.bf16.mxu0 0
          %1390 = vmatmul.mubr.bf16.gmra.mrb[0].mxu0 %v926
          %v1391 = vpop.f32.mrb[0].mxu0
          %v1392 = vadd.f32 0.0, %v1391
          %v1393 = vpop.f32.mrb[0].mxu0
          %v1394 = vpop.f32.mrb[0].mxu0
          %v1395 = vadd.f32 0.0, %v1394
          %v1396 = vpop.f32.mrb[0].mxu0
          %1397 = vmatprep.mubr.bf16.mxu0 0
          %1398 = vmatmul.mubr.bf16.gmra.mrb[0].mxu0 %v929
          %v1399 = vpop.f32.mrb[0].mxu0
          %v1400 = vadd.f32 0.0, %v1399
          %v1401 = vpop.f32.mrb[0].mxu0
          %v1402 = vpop.f32.mrb[0].mxu0
          %v1403 = vadd.f32 0.0, %v1402
          %v1404 = vpop.f32.mrb[0].mxu0
          %1405 = vmatprep.mubr.bf16.mxu0 0
          %1406 = vmatmul.mubr.bf16.gmra.mrb[0].mxu0 %v932
          %v1407 = vpop.f32.mrb[0].mxu0
          %v1408 = vadd.f32 0.0, %v1407
          %v1409 = vpop.f32.mrb[0].mxu0
          %v1410 = vpop.f32.mrb[0].mxu0
          %v1411 = vadd.f32 0.0, %v1410
          %v1412 = vpop.f32.mrb[0].mxu0
          %1413 = vmatprep.mubr.bf16.mxu0 0
          %1414 = vmatmul.mubr.bf16.gmra.mrb[0].mxu0 %v935
          %v1415 = vpop.f32.mrb[0].mxu0
          %v1416 = vadd.f32 0.0, %v1415
          %v1417 = vpop.f32.mrb[0].mxu0
          %v1418 = vpop.f32.mrb[0].mxu0
          %v1419 = vadd.f32 0.0, %v1418
          %v1420 = vpop.f32.mrb[0].mxu0
          %1421 = vmatprep.mubr.bf16.mxu0 0
          %1422 = vmatmul.mubr.bf16.gmra.mrb[0].mxu0 %v938
          %v1423 = vpop.f32.mrb[0].mxu0
          %v1424 = vadd.f32 0.0, %v1423
          %v1425 = vpop.f32.mrb[0].mxu0
          %v1426 = vpop.f32.mrb[0].mxu0
          %v1427 = vadd.f32 0.0, %v1426
          %v1428 = vpop.f32.mrb[0].mxu0
          %1429 = vmatprep.mubr.bf16.mxu0 0
          %1430 = vmatmul.mubr.bf16.gmra.mrb[0].mxu0 %v941
          %v1431 = vpop.f32.mrb[0].mxu0
          %v1432 = vadd.f32 0.0, %v1431
          %v1433 = vpop.f32.mrb[0].mxu0
          %v1434 = vpop.f32.mrb[0].mxu0
          %v1435 = vadd.f32 0.0, %v1434
          %v1436 = vpop.f32.mrb[0].mxu0
          %1437 = vmatprep.mubr.bf16.mxu0 0
          %1438 = vmatmul.mubr.bf16.gmra.mrb[0].mxu0 %v944
          %v1439 = vpop.f32.mrb[0].mxu0
          %v1440 = vadd.f32 0.0, %v1439
          %v1441 = vpop.f32.mrb[0].mxu0
          %v1442 = vpop.f32.mrb[0].mxu0
          %v1443 = vadd.f32 0.0, %v1442
          %v1444 = vpop.f32.mrb[0].mxu0
          %1445 = vmatprep.mubr.bf16.mxu0 0
          %1446 = vmatmul.mubr.bf16.gmra.mrb[0].mxu0 %v947
          %v1447 = vpop.f32.mrb[0].mxu0
          %v1448 = vadd.f32 0.0, %v1447
          %v1449 = vpop.f32.mrb[0].mxu0
          %v1450 = vpop.f32.mrb[0].mxu0
          %v1451 = vadd.f32 0.0, %v1450
          %v1452 = vpop.f32.mrb[0].mxu0
          %1453 = vmatprep.mubr.bf16.mxu0 0
          %1454 = vmatmul.mubr.bf16.gmra.mrb[0].mxu0 %v950
          %v1455 = vpop.f32.mrb[0].mxu0
          %v1456 = vadd.f32 0.0, %v1455
          %v1457 = vpop.f32.mrb[0].mxu0
          %v1458 = vpop.f32.mrb[0].mxu0
          %v1459 = vadd.f32 0.0, %v1458
          %v1460 = vpop.f32.mrb[0].mxu0
          %1461 = vmatprep.mubr.bf16.mxu0 0
          %1462 = vmatmul.mubr.bf16.gmra.mrb[0].mxu0 %v953
          %v1463 = vpop.f32.mrb[0].mxu0
          %v1464 = vadd.f32 0.0, %v1463
          %v1465 = vpop.f32.mrb[0].mxu0
          %v1466 = vpop.f32.mrb[0].mxu0
          %v1467 = vadd.f32 0.0, %v1466
          %v1468 = vpop.f32.mrb[0].mxu0
          %1469 = vmatprep.mubr.bf16.mxu0 0
          %1470 = vmatmul.mubr.bf16.gmra.mrb[0].mxu0 %v956
          %v1471 = vpop.f32.mrb[0].mxu0
          %v1472 = vadd.f32 0.0, %v1471
          %v1473 = vpop.f32.mrb[0].mxu0
          %v1474 = vpop.f32.mrb[0].mxu0
          %v1475 = vadd.f32 0.0, %v1474
          %v1476 = vpop.f32.mrb[0].mxu0
          %1477 = vmatprep.mubr.bf16.mxu0 0
          %1478 = vmatmul.mubr.bf16.gmra.mrb[0].mxu0 %v959
          %v1479 = vpop.f32.mrb[0].mxu0
          %v1480 = vadd.f32 0.0, %v1479
          %v1481 = vpop.f32.mrb[0].mxu0
          %v1482 = vpop.f32.mrb[0].mxu0
          %v1483 = vadd.f32 0.0, %v1482
          %v1484 = vpop.f32.mrb[0].mxu0
          %1485 = vmatprep.mubr.bf16.mxu0 0
          %1486 = vmatmul.mubr.bf16.gmra.mrb[0].mxu0 %v962
          %v1487 = vpop.f32.mrb[0].mxu0
          %v1488 = vadd.f32 0.0, %v1487
          %v1489 = vpop.f32.mrb[0].mxu0
          %v1490 = vpop.f32.mrb[0].mxu0
          %v1491 = vadd.f32 0.0, %v1490
          %v1492 = vpop.f32.mrb[0].mxu0
          %1493 = vmatprep.mubr.bf16.mxu0 0
          %1494 = vmatmul.mubr.bf16.gmra.mrb[0].mxu0 %v965
          %v1495 = vpop.f32.mrb[0].mxu0
          %v1496 = vadd.f32 0.0, %v1495
          %v1497 = vpop.f32.mrb[0].mxu0
          %v1498 = vpop.f32.mrb[0].mxu0
          %v1499 = vadd.f32 0.0, %v1498
          %v1500 = vpop.f32.mrb[0].mxu0
          %1501 = vmatprep.mubr.bf16.mxu0 0
          %1502 = vmatmul.mubr.bf16.gmra.mrb[0].mxu0 %v968
          %v1503 = vpop.f32.mrb[0].mxu0
          %v1504 = vadd.f32 0.0, %v1503
          %v1505 = vpop.f32.mrb[0].mxu0
          %v1506 = vpop.f32.mrb[0].mxu0
          %v1507 = vadd.f32 0.0, %v1506
          %v1508 = vpop.f32.mrb[0].mxu0
          %1509 = vmatprep.mubr.bf16.mxu0 0
          %1510 = vmatmul.mubr.bf16.gmra.mrb[0].mxu0 %v971
          %v1511 = vpop.f32.mrb[0].mxu0
          %v1512 = vadd.f32 0.0, %v1511
          %v1513 = vpop.f32.mrb[0].mxu0
          %v1514 = vpop.f32.mrb[0].mxu0
          %v1515 = vadd.f32 0.0, %v1514
          %v1516 = vpop.f32.mrb[0].mxu0
          %1517 = vdwg.mxu0
          %1518 = vst.msk [vmem:[#allocation2] sm:$0xff] %vm780, %v1008
          %1519 = vst.msk [vmem:[#allocation2 + $0x8] sm:$0xff] %vm780, %v1011
          %1520 = vst.msk [vmem:[#allocation2 + $0x10] sm:$0xff] %vm780, %v1016
          %1521 = vst.msk [vmem:[#allocation2 + $0x18] sm:$0xff] %vm780, %v1019
          %1522 = vst.msk [vmem:[#allocation2 + $0x20] sm:$0xff] %vm780, %v1024
          %1523 = vst.msk [vmem:[#allocation2 + $0x28] sm:$0xff] %vm780, %v1027
          %1524 = vst.msk [vmem:[#allocation2 + $0x30] sm:$0xff] %vm780, %v1032
          %1525 = vst.msk [vmem:[#allocation2 + $0x38] sm:$0xff] %vm780, %v1035
          %1526 = vst.msk [vmem:[#allocation2 + $0x40] sm:$0xff] %vm780, %v1040
          %1527 = vst.msk [vmem:[#allocation2 + $0x48] sm:$0xff] %vm780, %v1043
          %1528 = vst.msk [vmem:[#allocation2 + $0x50] sm:$0xff] %vm780, %v1048
          %1529 = vst.msk [vmem:[#allocation2 + $0x58] sm:$0xff] %vm780, %v1051
          %1530 = vst.msk [vmem:[#allocation2 + $0x60] sm:$0xff] %vm780, %v1056
          %1531 = vst.msk [vmem:[#allocation2 + $0x68] sm:$0xff] %vm780, %v1059
          %1532 = vst.msk [vmem:[#allocation2 + $0x70] sm:$0xff] %vm780, %v1064
          %1533 = vst.msk [vmem:[#allocation2 + $0x78] sm:$0xff] %vm780, %v1067
          %1534 = vst.msk [vmem:[#allocation2 + $0x80] sm:$0xff] %vm780, %v1072
          %1535 = vst.msk [vmem:[#allocation2 + $0x88] sm:$0xff] %vm780, %v1075
          %1536 = vst.msk [vmem:[#allocation2 + $0x90] sm:$0xff] %vm780, %v1080
          %1537 = vst.msk [vmem:[#allocation2 + $0x98] sm:$0xff] %vm780, %v1083
          %1538 = vst.msk [vmem:[#allocation2 + $0xa0] sm:$0xff] %vm780, %v1088
          %1539 = vst.msk [vmem:[#allocation2 + $0xa8] sm:$0xff] %vm780, %v1091
          %1540 = vst.msk [vmem:[#allocation2 + $0xb0] sm:$0xff] %vm780, %v1096
          %1541 = vst.msk [vmem:[#allocation2 + $0xb8] sm:$0xff] %vm780, %v1099
          %1542 = vst.msk [vmem:[#allocation2 + $0xc0] sm:$0xff] %vm780, %v1104
          %1543 = vst.msk [vmem:[#allocation2 + $0xc8] sm:$0xff] %vm780, %v1107
          %1544 = vst.msk [vmem:[#allocation2 + $0xd0] sm:$0xff] %vm780, %v1112
          %1545 = vst.msk [vmem:[#allocation2 + $0xd8] sm:$0xff] %vm780, %v1115
          %1546 = vst.msk [vmem:[#allocation2 + $0xe0] sm:$0xff] %vm780, %v1120
          %1547 = vst.msk [vmem:[#allocation2 + $0xe8] sm:$0xff] %vm780, %v1123
          %1548 = vst.msk [vmem:[#allocation2 + $0xf0] sm:$0xff] %vm780, %v1128
          %1549 = vst.msk [vmem:[#allocation2 + $0xf8] sm:$0xff] %vm780, %v1131
          %1550 = vst.msk [vmem:[#allocation2 + $0x100] sm:$0xff] %vm780, %v1136
          %1551 = vst.msk [vmem:[#allocation2 + $0x108] sm:$0xff] %vm780, %v1139
          %1552 = vst.msk [vmem:[#allocation2 + $0x110] sm:$0xff] %vm780, %v1144
          %1553 = vst.msk [vmem:[#allocation2 + $0x118] sm:$0xff] %vm780, %v1147
          %1554 = vst.msk [vmem:[#allocation2 + $0x120] sm:$0xff] %vm780, %v1152
          %1555 = vst.msk [vmem:[#allocation2 + $0x128] sm:$0xff] %vm780, %v1155
          %1556 = vst.msk [vmem:[#allocation2 + $0x130] sm:$0xff] %vm780, %v1160
          %1557 = vst.msk [vmem:[#allocation2 + $0x138] sm:$0xff] %vm780, %v1163
          %1558 = vst.msk [vmem:[#allocation2 + $0x140] sm:$0xff] %vm780, %v1168
          %1559 = vst.msk [vmem:[#allocation2 + $0x148] sm:$0xff] %vm780, %v1171
          %1560 = vst.msk [vmem:[#allocation2 + $0x150] sm:$0xff] %vm780, %v1176
          %1561 = vst.msk [vmem:[#allocation2 + $0x158] sm:$0xff] %vm780, %v1179
          %1562 = vst.msk [vmem:[#allocation2 + $0x160] sm:$0xff] %vm780, %v1184
          %1563 = vst.msk [vmem:[#allocation2 + $0x168] sm:$0xff] %vm780, %v1187
          %1564 = vst.msk [vmem:[#allocation2 + $0x170] sm:$0xff] %vm780, %v1192
          %1565 = vst.msk [vmem:[#allocation2 + $0x178] sm:$0xff] %vm780, %v1195
          %1566 = vst.msk [vmem:[#allocation2 + $0x180] sm:$0xff] %vm780, %v1200
          %1567 = vst.msk [vmem:[#allocation2 + $0x188] sm:$0xff] %vm780, %v1203
          %1568 = vst.msk [vmem:[#allocation2 + $0x190] sm:$0xff] %vm780, %v1208
          %1569 = vst.msk [vmem:[#allocation2 + $0x198] sm:$0xff] %vm780, %v1211
          %1570 = vst.msk [vmem:[#allocation2 + $0x1a0] sm:$0xff] %vm780, %v1216
          %1571 = vst.msk [vmem:[#allocation2 + $0x1a8] sm:$0xff] %vm780, %v1219
          %1572 = vst.msk [vmem:[#allocation2 + $0x1b0] sm:$0xff] %vm780, %v1224
          %1573 = vst.msk [vmem:[#allocation2 + $0x1b8] sm:$0xff] %vm780, %v1227
          %1574 = vst.msk [vmem:[#allocation2 + $0x1c0] sm:$0xff] %vm780, %v1232
          %1575 = vst.msk [vmem:[#allocation2 + $0x1c8] sm:$0xff] %vm780, %v1235
          %1576 = vst.msk [vmem:[#allocation2 + $0x1d0] sm:$0xff] %vm780, %v1240
          %1577 = vst.msk [vmem:[#allocation2 + $0x1d8] sm:$0xff] %vm780, %v1243
          %1578 = vst.msk [vmem:[#allocation2 + $0x1e0] sm:$0xff] %vm780, %v1248
          %1579 = vst.msk [vmem:[#allocation2 + $0x1e8] sm:$0xff] %vm780, %v1251
          %1580 = vst.msk [vmem:[#allocation2 + $0x1f0] sm:$0xff] %vm780, %v1256
          %1581 = vst.msk [vmem:[#allocation2 + $0x1f8] sm:$0xff] %vm780, %v1259
          %1582 = vst.msk [vmem:[#allocation2 + $0x200] sm:$0xff] %vm780, %v1264
          %1583 = vst.msk [vmem:[#allocation2 + $0x208] sm:$0xff] %vm780, %v1267
          %1584 = vst.msk [vmem:[#allocation2 + $0x210] sm:$0xff] %vm780, %v1272
          %1585 = vst.msk [vmem:[#allocation2 + $0x218] sm:$0xff] %vm780, %v1275
          %1586 = vst.msk [vmem:[#allocation2 + $0x220] sm:$0xff] %vm780, %v1280
          %1587 = vst.msk [vmem:[#allocation2 + $0x228] sm:$0xff] %vm780, %v1283
          %1588 = vst.msk [vmem:[#allocation2 + $0x230] sm:$0xff] %vm780, %v1288
          %1589 = vst.msk [vmem:[#allocation2 + $0x238] sm:$0xff] %vm780, %v1291
          %1590 = vst.msk [vmem:[#allocation2 + $0x240] sm:$0xff] %vm780, %v1296
          %1591 = vst.msk [vmem:[#allocation2 + $0x248] sm:$0xff] %vm780, %v1299
          %1592 = vst.msk [vmem:[#allocation2 + $0x250] sm:$0xff] %vm780, %v1304
          %1593 = vst.msk [vmem:[#allocation2 + $0x258] sm:$0xff] %vm780, %v1307
          %1594 = vst.msk [vmem:[#allocation2 + $0x260] sm:$0xff] %vm780, %v1312
          %1595 = vst.msk [vmem:[#allocation2 + $0x268] sm:$0xff] %vm780, %v1315
          %1596 = vst.msk [vmem:[#allocation2 + $0x270] sm:$0xff] %vm780, %v1320
          %1597 = vst.msk [vmem:[#allocation2 + $0x278] sm:$0xff] %vm780, %v1323
          %1598 = vst.msk [vmem:[#allocation2 + $0x280] sm:$0xff] %vm780, %v1328
          %1599 = vst.msk [vmem:[#allocation2 + $0x288] sm:$0xff] %vm780, %v1331
          %1600 = vst.msk [vmem:[#allocation2 + $0x290] sm:$0xff] %vm780, %v1336
          %1601 = vst.msk [vmem:[#allocation2 + $0x298] sm:$0xff] %vm780, %v1339
          %1602 = vst.msk [vmem:[#allocation2 + $0x2a0] sm:$0xff] %vm780, %v1344
          %1603 = vst.msk [vmem:[#allocation2 + $0x2a8] sm:$0xff] %vm780, %v1347
          %1604 = vst.msk [vmem:[#allocation2 + $0x2b0] sm:$0xff] %vm780, %v1352
          %1605 = vst.msk [vmem:[#allocation2 + $0x2b8] sm:$0xff] %vm780, %v1355
          %1606 = vst.msk [vmem:[#allocation2 + $0x2c0] sm:$0xff] %vm780, %v1360
          %1607 = vst.msk [vmem:[#allocation2 + $0x2c8] sm:$0xff] %vm780, %v1363
          %1608 = vst.msk [vmem:[#allocation2 + $0x2d0] sm:$0xff] %vm780, %v1368
          %1609 = vst.msk [vmem:[#allocation2 + $0x2d8] sm:$0xff] %vm780, %v1371
          %1610 = vst.msk [vmem:[#allocation2 + $0x2e0] sm:$0xff] %vm780, %v1376
          %1611 = vst.msk [vmem:[#allocation2 + $0x2e8] sm:$0xff] %vm780, %v1379
          %1612 = vst.msk [vmem:[#allocation2 + $0x2f0] sm:$0xff] %vm780, %v1384
          %1613 = vst.msk [vmem:[#allocation2 + $0x2f8] sm:$0xff] %vm780, %v1387
          %1614 = vst.msk [vmem:[#allocation2 + $0x300] sm:$0xff] %vm780, %v1392
          %1615 = vst.msk [vmem:[#allocation2 + $0x308] sm:$0xff] %vm780, %v1395
          %1616 = vst.msk [vmem:[#allocation2 + $0x310] sm:$0xff] %vm780, %v1400
          %1617 = vst.msk [vmem:[#allocation2 + $0x318] sm:$0xff] %vm780, %v1403
          %1618 = vst.msk [vmem:[#allocation2 + $0x320] sm:$0xff] %vm780, %v1408
          %1619 = vst.msk [vmem:[#allocation2 + $0x328] sm:$0xff] %vm780, %v1411
          %1620 = vst.msk [vmem:[#allocation2 + $0x330] sm:$0xff] %vm780, %v1416
          %1621 = vst.msk [vmem:[#allocation2 + $0x338] sm:$0xff] %vm780, %v1419
          %1622 = vst.msk [vmem:[#allocation2 + $0x340] sm:$0xff] %vm780, %v1424
          %1623 = vst.msk [vmem:[#allocation2 + $0x348] sm:$0xff] %vm780, %v1427
          %1624 = vst.msk [vmem:[#allocation2 + $0x350] sm:$0xff] %vm780, %v1432
          %1625 = vst.msk [vmem:[#allocation2 + $0x358] sm:$0xff] %vm780, %v1435
          %1626 = vst.msk [vmem:[#allocation2 + $0x360] sm:$0xff] %vm780, %v1440
          %1627 = vst.msk [vmem:[#allocation2 + $0x368] sm:$0xff] %vm780, %v1443
          %1628 = vst.msk [vmem:[#allocation2 + $0x370] sm:$0xff] %vm780, %v1448
          %1629 = vst.msk [vmem:[#allocation2 + $0x378] sm:$0xff] %vm780, %v1451
          %1630 = vst.msk [vmem:[#allocation2 + $0x380] sm:$0xff] %vm780, %v1456
          %1631 = vst.msk [vmem:[#allocation2 + $0x388] sm:$0xff] %vm780, %v1459
          %1632 = vst.msk [vmem:[#allocation2 + $0x390] sm:$0xff] %vm780, %v1464
          %1633 = vst.msk [vmem:[#allocation2 + $0x398] sm:$0xff] %vm780, %v1467
          %1634 = vst.msk [vmem:[#allocation2 + $0x3a0] sm:$0xff] %vm780, %v1472
          %1635 = vst.msk [vmem:[#allocation2 + $0x3a8] sm:$0xff] %vm780, %v1475
          %1636 = vst.msk [vmem:[#allocation2 + $0x3b0] sm:$0xff] %vm780, %v1480
          %1637 = vst.msk [vmem:[#allocation2 + $0x3b8] sm:$0xff] %vm780, %v1483
          %1638 = vst.msk [vmem:[#allocation2 + $0x3c0] sm:$0xff] %vm780, %v1488
          %1639 = vst.msk [vmem:[#allocation2 + $0x3c8] sm:$0xff] %vm780, %v1491
          %1640 = vst.msk [vmem:[#allocation2 + $0x3d0] sm:$0xff] %vm780, %v1496
          %1641 = vst.msk [vmem:[#allocation2 + $0x3d8] sm:$0xff] %vm780, %v1499
          %1642 = vst.msk [vmem:[#allocation2 + $0x3e0] sm:$0xff] %vm780, %v1504
          %1643 = vst.msk [vmem:[#allocation2 + $0x3e8] sm:$0xff] %vm780, %v1507
          %1644 = vst.msk [vmem:[#allocation2 + $0x3f0] sm:$0xff] %vm780, %v1512
          %1645 = vst.msk [vmem:[#allocation2 + $0x3f8] sm:$0xff] %vm780, %v1515
          %v1646 = vld [vmem:[#allocation2] sm:$0xff]
          %v1647 = vld [vmem:[#allocation2 + $0x8] sm:$0xff]
          %v1648 = vld [vmem:[#allocation2 + $0x10] sm:$0xff]
          %v1649 = vld [vmem:[#allocation2 + $0x18] sm:$0xff]
          %v1650 = vld [vmem:[#allocation2 + $0x20] sm:$0xff]
          %v1651 = vld [vmem:[#allocation2 + $0x28] sm:$0xff]
          %v1652 = vld [vmem:[#allocation2 + $0x30] sm:$0xff]
          %v1653 = vld [vmem:[#allocation2 + $0x38] sm:$0xff]
          %v1654 = vld [vmem:[#allocation2 + $0x40] sm:$0xff]
          %v1655 = vld [vmem:[#allocation2 + $0x48] sm:$0xff]
          %v1656 = vld [vmem:[#allocation2 + $0x50] sm:$0xff]
          %v1657 = vld [vmem:[#allocation2 + $0x58] sm:$0xff]
          %v1658 = vld [vmem:[#allocation2 + $0x60] sm:$0xff]
          %v1659 = vld [vmem:[#allocation2 + $0x68] sm:$0xff]
          %v1660 = vld [vmem:[#allocation2 + $0x70] sm:$0xff]
          %v1661 = vld [vmem:[#allocation2 + $0x78] sm:$0xff]
          %v1662 = vld [vmem:[#allocation2 + $0x80] sm:$0xff]
          %v1663 = vld [vmem:[#allocation2 + $0x88] sm:$0xff]
          %v1664 = vld [vmem:[#allocation2 + $0x90] sm:$0xff]
          %v1665 = vld [vmem:[#allocation2 + $0x98] sm:$0xff]
          %v1666 = vld [vmem:[#allocation2 + $0xa0] sm:$0xff]
          %v1667 = vld [vmem:[#allocation2 + $0xa8] sm:$0xff]
          %v1668 = vld [vmem:[#allocation2 + $0xb0] sm:$0xff]
          %v1669 = vld [vmem:[#allocation2 + $0xb8] sm:$0xff]
          %v1670 = vld [vmem:[#allocation2 + $0xc0] sm:$0xff]
          %v1671 = vld [vmem:[#allocation2 + $0xc8] sm:$0xff]
          %v1672 = vld [vmem:[#allocation2 + $0xd0] sm:$0xff]
          %v1673 = vld [vmem:[#allocation2 + $0xd8] sm:$0xff]
          %v1674 = vld [vmem:[#allocation2 + $0xe0] sm:$0xff]
          %v1675 = vld [vmem:[#allocation2 + $0xe8] sm:$0xff]
          %v1676 = vld [vmem:[#allocation2 + $0xf0] sm:$0xff]
          %v1677 = vld [vmem:[#allocation2 + $0xf8] sm:$0xff]
          %v1678 = vld [vmem:[#allocation2 + $0x100] sm:$0xff]
          %v1679 = vld [vmem:[#allocation2 + $0x108] sm:$0xff]
          %v1680 = vld [vmem:[#allocation2 + $0x110] sm:$0xff]
          %v1681 = vld [vmem:[#allocation2 + $0x118] sm:$0xff]
          %v1682 = vld [vmem:[#allocation2 + $0x120] sm:$0xff]
          %v1683 = vld [vmem:[#allocation2 + $0x128] sm:$0xff]
          %v1684 = vld [vmem:[#allocation2 + $0x130] sm:$0xff]
          %v1685 = vld [vmem:[#allocation2 + $0x138] sm:$0xff]
          %v1686 = vld [vmem:[#allocation2 + $0x140] sm:$0xff]
          %v1687 = vld [vmem:[#allocation2 + $0x148] sm:$0xff]
          %v1688 = vld [vmem:[#allocation2 + $0x150] sm:$0xff]
          %v1689 = vld [vmem:[#allocation2 + $0x158] sm:$0xff]
          %v1690 = vld [vmem:[#allocation2 + $0x160] sm:$0xff]
          %v1691 = vld [vmem:[#allocation2 + $0x168] sm:$0xff]
          %v1692 = vld [vmem:[#allocation2 + $0x170] sm:$0xff]
          %v1693 = vld [vmem:[#allocation2 + $0x178] sm:$0xff]
          %v1694 = vld [vmem:[#allocation2 + $0x180] sm:$0xff]
          %v1695 = vld [vmem:[#allocation2 + $0x188] sm:$0xff]
          %v1696 = vld [vmem:[#allocation2 + $0x190] sm:$0xff]
          %v1697 = vld [vmem:[#allocation2 + $0x198] sm:$0xff]
          %v1698 = vld [vmem:[#allocation2 + $0x1a0] sm:$0xff]
          %v1699 = vld [vmem:[#allocation2 + $0x1a8] sm:$0xff]
          %v1700 = vld [vmem:[#allocation2 + $0x1b0] sm:$0xff]
          %v1701 = vld [vmem:[#allocation2 + $0x1b8] sm:$0xff]
          %v1702 = vld [vmem:[#allocation2 + $0x1c0] sm:$0xff]
          %v1703 = vld [vmem:[#allocation2 + $0x1c8] sm:$0xff]
          %v1704 = vld [vmem:[#allocation2 + $0x1d0] sm:$0xff]
          %v1705 = vld [vmem:[#allocation2 + $0x1d8] sm:$0xff]
          %v1706 = vld [vmem:[#allocation2 + $0x1e0] sm:$0xff]
          %v1707 = vld [vmem:[#allocation2 + $0x1e8] sm:$0xff]
          %v1708 = vld [vmem:[#allocation2 + $0x1f0] sm:$0xff]
          %v1709 = vld [vmem:[#allocation2 + $0x1f8] sm:$0xff]
          %v1710 = vmax.f32 %v1646, %v1678
          %v1711 = vmax.f32 %v1647, %v1679
          %v1712 = vmax.f32 %v1648, %v1680
          %v1713 = vmax.f32 %v1649, %v1681
          %v1714 = vmax.f32 %v1650, %v1682
          %v1715 = vmax.f32 %v1651, %v1683
          %v1716 = vmax.f32 %v1652, %v1684
          %v1717 = vmax.f32 %v1653, %v1685
          %v1718 = vmax.f32 %v1654, %v1686
          %v1719 = vmax.f32 %v1655, %v1687
          %v1720 = vmax.f32 %v1656, %v1688
          %v1721 = vmax.f32 %v1657, %v1689
          %v1722 = vmax.f32 %v1658, %v1690
          %v1723 = vmax.f32 %v1659, %v1691
          %v1724 = vmax.f32 %v1660, %v1692
          %v1725 = vmax.f32 %v1661, %v1693
          %v1726 = vmax.f32 %v1662, %v1694
          %v1727 = vmax.f32 %v1663, %v1695
          %v1728 = vmax.f32 %v1664, %v1696
          %v1729 = vmax.f32 %v1665, %v1697
          %v1730 = vmax.f32 %v1666, %v1698
          %v1731 = vmax.f32 %v1667, %v1699
          %v1732 = vmax.f32 %v1668, %v1700
          %v1733 = vmax.f32 %v1669, %v1701
          %v1734 = vmax.f32 %v1670, %v1702
          %v1735 = vmax.f32 %v1671, %v1703
          %v1736 = vmax.f32 %v1672, %v1704
          %v1737 = vmax.f32 %v1673, %v1705
          %v1738 = vmax.f32 %v1674, %v1706
          %v1739 = vmax.f32 %v1675, %v1707
          %v1740 = vmax.f32 %v1676, %v1708
          %v1741 = vmax.f32 %v1677, %v1709
          %v1742 = vld [vmem:[#allocation2 + $0x200] sm:$0xff]
          %v1743 = vld [vmem:[#allocation2 + $0x208] sm:$0xff]
          %v1744 = vld [vmem:[#allocation2 + $0x210] sm:$0xff]
          %v1745 = vld [vmem:[#allocation2 + $0x218] sm:$0xff]
          %v1746 = vld [vmem:[#allocation2 + $0x220] sm:$0xff]
          %v1747 = vld [vmem:[#allocation2 + $0x228] sm:$0xff]
          %v1748 = vld [vmem:[#allocation2 + $0x230] sm:$0xff]
          %v1749 = vld [vmem:[#allocation2 + $0x238] sm:$0xff]
          %v1750 = vld [vmem:[#allocation2 + $0x240] sm:$0xff]
          %v1751 = vld [vmem:[#allocation2 + $0x248] sm:$0xff]
          %v1752 = vld [vmem:[#allocation2 + $0x250] sm:$0xff]
          %v1753 = vld [vmem:[#allocation2 + $0x258] sm:$0xff]
          %v1754 = vld [vmem:[#allocation2 + $0x260] sm:$0xff]
          %v1755 = vld [vmem:[#allocation2 + $0x268] sm:$0xff]
          %v1756 = vld [vmem:[#allocation2 + $0x270] sm:$0xff]
          %v1757 = vld [vmem:[#allocation2 + $0x278] sm:$0xff]
          %v1758 = vld [vmem:[#allocation2 + $0x280] sm:$0xff]
          %v1759 = vld [vmem:[#allocation2 + $0x288] sm:$0xff]
          %v1760 = vld [vmem:[#allocation2 + $0x290] sm:$0xff]
          %v1761 = vld [vmem:[#allocation2 + $0x298] sm:$0xff]
          %v1762 = vld [vmem:[#allocation2 + $0x2a0] sm:$0xff]
          %v1763 = vld [vmem:[#allocation2 + $0x2a8] sm:$0xff]
          %v1764 = vld [vmem:[#allocation2 + $0x2b0] sm:$0xff]
          %v1765 = vld [vmem:[#allocation2 + $0x2b8] sm:$0xff]
          %v1766 = vld [vmem:[#allocation2 + $0x2c0] sm:$0xff]
          %v1767 = vld [vmem:[#allocation2 + $0x2c8] sm:$0xff]
          %v1768 = vld [vmem:[#allocation2 + $0x2d0] sm:$0xff]
          %v1769 = vld [vmem:[#allocation2 + $0x2d8] sm:$0xff]
          %v1770 = vld [vmem:[#allocation2 + $0x2e0] sm:$0xff]
          %v1771 = vld [vmem:[#allocation2 + $0x2e8] sm:$0xff]
          %v1772 = vld [vmem:[#allocation2 + $0x2f0] sm:$0xff]
          %v1773 = vld [vmem:[#allocation2 + $0x2f8] sm:$0xff]
          %v1774 = vld [vmem:[#allocation2 + $0x300] sm:$0xff]
          %v1775 = vld [vmem:[#allocation2 + $0x308] sm:$0xff]
          %v1776 = vld [vmem:[#allocation2 + $0x310] sm:$0xff]
          %v1777 = vld [vmem:[#allocation2 + $0x318] sm:$0xff]
          %v1778 = vld [vmem:[#allocation2 + $0x320] sm:$0xff]
          %v1779 = vld [vmem:[#allocation2 + $0x328] sm:$0xff]
          %v1780 = vld [vmem:[#allocation2 + $0x330] sm:$0xff]
          %v1781 = vld [vmem:[#allocation2 + $0x338] sm:$0xff]
          %v1782 = vld [vmem:[#allocation2 + $0x340] sm:$0xff]
          %v1783 = vld [vmem:[#allocation2 + $0x348] sm:$0xff]
          %v1784 = vld [vmem:[#allocation2 + $0x350] sm:$0xff]
          %v1785 = vld [vmem:[#allocation2 + $0x358] sm:$0xff]
          %v1786 = vld [vmem:[#allocation2 + $0x360] sm:$0xff]
          %v1787 = vld [vmem:[#allocation2 + $0x368] sm:$0xff]
          %v1788 = vld [vmem:[#allocation2 + $0x370] sm:$0xff]
          %v1789 = vld [vmem:[#allocation2 + $0x378] sm:$0xff]
          %v1790 = vld [vmem:[#allocation2 + $0x380] sm:$0xff]
          %v1791 = vld [vmem:[#allocation2 + $0x388] sm:$0xff]
          %v1792 = vld [vmem:[#allocation2 + $0x390] sm:$0xff]
          %v1793 = vld [vmem:[#allocation2 + $0x398] sm:$0xff]
          %v1794 = vld [vmem:[#allocation2 + $0x3a0] sm:$0xff]
          %v1795 = vld [vmem:[#allocation2 + $0x3a8] sm:$0xff]
          %v1796 = vld [vmem:[#allocation2 + $0x3b0] sm:$0xff]
          %v1797 = vld [vmem:[#allocation2 + $0x3b8] sm:$0xff]
          %v1798 = vld [vmem:[#allocation2 + $0x3c0] sm:$0xff]
          %v1799 = vld [vmem:[#allocation2 + $0x3c8] sm:$0xff]
          %v1800 = vld [vmem:[#allocation2 + $0x3d0] sm:$0xff]
          %v1801 = vld [vmem:[#allocation2 + $0x3d8] sm:$0xff]
          %v1802 = vld [vmem:[#allocation2 + $0x3e0] sm:$0xff]
          %v1803 = vld [vmem:[#allocation2 + $0x3e8] sm:$0xff]
          %v1804 = vld [vmem:[#allocation2 + $0x3f0] sm:$0xff]
          %v1805 = vld [vmem:[#allocation2 + $0x3f8] sm:$0xff]
          %v1806 = vmax.f32 %v1742, %v1774
          %v1807 = vmax.f32 %v1743, %v1775
          %v1808 = vmax.f32 %v1744, %v1776
          %v1809 = vmax.f32 %v1745, %v1777
          %v1810 = vmax.f32 %v1746, %v1778
          %v1811 = vmax.f32 %v1747, %v1779
          %v1812 = vmax.f32 %v1748, %v1780
          %v1813 = vmax.f32 %v1749, %v1781
          %v1814 = vmax.f32 %v1750, %v1782
          %v1815 = vmax.f32 %v1751, %v1783
          %v1816 = vmax.f32 %v1752, %v1784
          %v1817 = vmax.f32 %v1753, %v1785
          %v1818 = vmax.f32 %v1754, %v1786
          %v1819 = vmax.f32 %v1755, %v1787
          %v1820 = vmax.f32 %v1756, %v1788
          %v1821 = vmax.f32 %v1757, %v1789
          %v1822 = vmax.f32 %v1758, %v1790
          %v1823 = vmax.f32 %v1759, %v1791
          %v1824 = vmax.f32 %v1760, %v1792
          %v1825 = vmax.f32 %v1761, %v1793
          %v1826 = vmax.f32 %v1762, %v1794
          %v1827 = vmax.f32 %v1763, %v1795
          %v1828 = vmax.f32 %v1764, %v1796
          %v1829 = vmax.f32 %v1765, %v1797
          %v1830 = vmax.f32 %v1766, %v1798
          %v1831 = vmax.f32 %v1767, %v1799
          %v1832 = vmax.f32 %v1768, %v1800
          %v1833 = vmax.f32 %v1769, %v1801
          %v1834 = vmax.f32 %v1770, %v1802
          %v1835 = vmax.f32 %v1771, %v1803
          %v1836 = vmax.f32 %v1772, %v1804
          %v1837 = vmax.f32 %v1773, %v1805
          %v1838 = vmax.f32 %v1710, %v1806
          %v1839 = vmax.f32 %v1711, %v1807
          %v1840 = vmax.f32 %v1712, %v1808
          %v1841 = vmax.f32 %v1713, %v1809
          %v1842 = vmax.f32 %v1714, %v1810
          %v1843 = vmax.f32 %v1715, %v1811
          %v1844 = vmax.f32 %v1716, %v1812
          %v1845 = vmax.f32 %v1717, %v1813
          %v1846 = vmax.f32 %v1718, %v1814
          %v1847 = vmax.f32 %v1719, %v1815
          %v1848 = vmax.f32 %v1720, %v1816
          %v1849 = vmax.f32 %v1721, %v1817
          %v1850 = vmax.f32 %v1722, %v1818
          %v1851 = vmax.f32 %v1723, %v1819
          %v1852 = vmax.f32 %v1724, %v1820
          %v1853 = vmax.f32 %v1725, %v1821
          %v1854 = vmax.f32 %v1726, %v1822
          %v1855 = vmax.f32 %v1727, %v1823
          %v1856 = vmax.f32 %v1728, %v1824
          %v1857 = vmax.f32 %v1729, %v1825
          %v1858 = vmax.f32 %v1730, %v1826
          %v1859 = vmax.f32 %v1731, %v1827
          %v1860 = vmax.f32 %v1732, %v1828
          %v1861 = vmax.f32 %v1733, %v1829
          %v1862 = vmax.f32 %v1734, %v1830
          %v1863 = vmax.f32 %v1735, %v1831
          %v1864 = vmax.f32 %v1736, %v1832
          %v1865 = vmax.f32 %v1737, %v1833
          %v1866 = vmax.f32 %v1738, %v1834
          %v1867 = vmax.f32 %v1739, %v1835
          %v1868 = vmax.f32 %v1740, %v1836
          %v1869 = vmax.f32 %v1741, %v1837
          %v1870 = vld [vmem:[%s2] sm:$0x1]
          %v1872 = vlaneseq
          %v1873 = vshrl.u32 %v1872, 7
          %v1874 = vsub.s32 0, %v1873
          %v1875 = vrot.slane %v1870, %v1874
          %v1877 = vadd.f32 %v1838, %v1875
          %v1878 = vadd.f32 %v1839, %v1875
          %v1879 = vadd.f32 %v1840, %v1875
          %v1880 = vadd.f32 %v1841, %v1875
          %v1881 = vadd.f32 %v1842, %v1875
          %v1882 = vadd.f32 %v1843, %v1875
          %v1883 = vadd.f32 %v1844, %v1875
          %v1884 = vadd.f32 %v1845, %v1875
          %v1885 = vadd.f32 %v1846, %v1875
          %v1886 = vadd.f32 %v1847, %v1875
          %v1887 = vadd.f32 %v1848, %v1875
          %v1888 = vadd.f32 %v1849, %v1875
          %v1889 = vadd.f32 %v1850, %v1875
          %v1890 = vadd.f32 %v1851, %v1875
          %v1891 = vadd.f32 %v1852, %v1875
          %v1892 = vadd.f32 %v1853, %v1875
          %v1893 = vadd.f32 %v1854, %v1875
          %v1894 = vadd.f32 %v1855, %v1875
          %v1895 = vadd.f32 %v1856, %v1875
          %v1896 = vadd.f32 %v1857, %v1875
          %v1897 = vadd.f32 %v1858, %v1875
          %v1898 = vadd.f32 %v1859, %v1875
          %v1899 = vadd.f32 %v1860, %v1875
          %v1900 = vadd.f32 %v1861, %v1875
          %v1901 = vadd.f32 %v1862, %v1875
          %v1902 = vadd.f32 %v1863, %v1875
          %v1903 = vadd.f32 %v1864, %v1875
          %v1904 = vadd.f32 %v1865, %v1875
          %v1905 = vadd.f32 %v1866, %v1875
          %v1906 = vadd.f32 %v1867, %v1875
          %v1907 = vadd.f32 %v1868, %v1875
          %v1908 = vadd.f32 %v1869, %v1875
          %v1909 = vmax.f32 %v1877, 0.0
          %v1910 = vmax.f32 %v1878, 0.0
          %v1911 = vmax.f32 %v1879, 0.0
          %v1912 = vmax.f32 %v1880, 0.0
          %v1913 = vmax.f32 %v1881, 0.0
          %v1914 = vmax.f32 %v1882, 0.0
          %v1915 = vmax.f32 %v1883, 0.0
          %v1916 = vmax.f32 %v1884, 0.0
          %v1917 = vmax.f32 %v1885, 0.0
          %v1918 = vmax.f32 %v1886, 0.0
          %v1919 = vmax.f32 %v1887, 0.0
          %v1920 = vmax.f32 %v1888, 0.0
          %v1921 = vmax.f32 %v1889, 0.0
          %v1922 = vmax.f32 %v1890, 0.0
          %v1923 = vmax.f32 %v1891, 0.0
          %v1924 = vmax.f32 %v1892, 0.0
          %v1925 = vmax.f32 %v1893, 0.0
          %v1926 = vmax.f32 %v1894, 0.0
          %v1927 = vmax.f32 %v1895, 0.0
          %v1928 = vmax.f32 %v1896, 0.0
          %v1929 = vmax.f32 %v1897, 0.0
          %v1930 = vmax.f32 %v1898, 0.0
          %v1931 = vmax.f32 %v1899, 0.0
          %v1932 = vmax.f32 %v1900, 0.0
          %v1933 = vmax.f32 %v1901, 0.0
          %v1934 = vmax.f32 %v1902, 0.0
          %v1935 = vmax.f32 %v1903, 0.0
          %v1936 = vmax.f32 %v1904, 0.0
          %v1937 = vmax.f32 %v1905, 0.0
          %v1938 = vmax.f32 %v1906, 0.0
          %v1939 = vmax.f32 %v1907, 0.0
          %v1940 = vmax.f32 %v1908, 0.0
          %1941 = vst.msk [vmem:[#allocation3] sm:$0xff] %vm780, %v1909
          %1942 = vst.msk [vmem:[#allocation3 + $0x8] sm:$0xff] %vm780, %v1910
          %1943 = vst.msk [vmem:[#allocation3 + $0x10] sm:$0xff] %vm780, %v1911
          %1944 = vst.msk [vmem:[#allocation3 + $0x18] sm:$0xff] %vm780, %v1912
          %1945 = vst.msk [vmem:[#allocation3 + $0x20] sm:$0xff] %vm780, %v1913
          %1946 = vst.msk [vmem:[#allocation3 + $0x28] sm:$0xff] %vm780, %v1914
          %1947 = vst.msk [vmem:[#allocation3 + $0x30] sm:$0xff] %vm780, %v1915
          %1948 = vst.msk [vmem:[#allocation3 + $0x38] sm:$0xff] %vm780, %v1916
          %1949 = vst.msk [vmem:[#allocation3 + $0x40] sm:$0xff] %vm780, %v1917
          %1950 = vst.msk [vmem:[#allocation3 + $0x48] sm:$0xff] %vm780, %v1918
          %1951 = vst.msk [vmem:[#allocation3 + $0x50] sm:$0xff] %vm780, %v1919
          %1952 = vst.msk [vmem:[#allocation3 + $0x58] sm:$0xff] %vm780, %v1920
          %1953 = vst.msk [vmem:[#allocation3 + $0x60] sm:$0xff] %vm780, %v1921
          %1954 = vst.msk [vmem:[#allocation3 + $0x68] sm:$0xff] %vm780, %v1922
          %1955 = vst.msk [vmem:[#allocation3 + $0x70] sm:$0xff] %vm780, %v1923
          %1956 = vst.msk [vmem:[#allocation3 + $0x78] sm:$0xff] %vm780, %v1924
          %1957 = vst.msk [vmem:[#allocation3 + $0x80] sm:$0xff] %vm780, %v1925
          %1958 = vst.msk [vmem:[#allocation3 + $0x88] sm:$0xff] %vm780, %v1926
          %1959 = vst.msk [vmem:[#allocation3 + $0x90] sm:$0xff] %vm780, %v1927
          %1960 = vst.msk [vmem:[#allocation3 + $0x98] sm:$0xff] %vm780, %v1928
          %1961 = vst.msk [vmem:[#allocation3 + $0xa0] sm:$0xff] %vm780, %v1929
          %1962 = vst.msk [vmem:[#allocation3 + $0xa8] sm:$0xff] %vm780, %v1930
          %1963 = vst.msk [vmem:[#allocation3 + $0xb0] sm:$0xff] %vm780, %v1931
          %1964 = vst.msk [vmem:[#allocation3 + $0xb8] sm:$0xff] %vm780, %v1932
          %1965 = vst.msk [vmem:[#allocation3 + $0xc0] sm:$0xff] %vm780, %v1933
          %1966 = vst.msk [vmem:[#allocation3 + $0xc8] sm:$0xff] %vm780, %v1934
          %1967 = vst.msk [vmem:[#allocation3 + $0xd0] sm:$0xff] %vm780, %v1935
          %1968 = vst.msk [vmem:[#allocation3 + $0xd8] sm:$0xff] %vm780, %v1936
          %1969 = vst.msk [vmem:[#allocation3 + $0xe0] sm:$0xff] %vm780, %v1937
          %1970 = vst.msk [vmem:[#allocation3 + $0xe8] sm:$0xff] %vm780, %v1938
          %1971 = vst.msk [vmem:[#allocation3 + $0xf0] sm:$0xff] %vm780, %v1939
          %1972 = vst.msk [vmem:[#allocation3 + $0xf8] sm:$0xff] %vm780, %v1940
          %v1973 = vld [vmem:[#allocation3] sm:$0xff]
          %v1974 = vld [vmem:[#allocation3 + $0x8] sm:$0xff]
          %v1975 = vld [vmem:[#allocation3 + $0x10] sm:$0xff]
          %v1976 = vld [vmem:[#allocation3 + $0x18] sm:$0xff]
          %v1977 = vld [vmem:[#allocation3 + $0x20] sm:$0xff]
          %v1978 = vld [vmem:[#allocation3 + $0x28] sm:$0xff]
          %v1979 = vld [vmem:[#allocation3 + $0x30] sm:$0xff]
          %v1980 = vld [vmem:[#allocation3 + $0x38] sm:$0xff]
          %v1981 = vld [vmem:[#allocation3 + $0x40] sm:$0xff]
          %v1982 = vld [vmem:[#allocation3 + $0x48] sm:$0xff]
          %v1983 = vld [vmem:[#allocation3 + $0x50] sm:$0xff]
          %v1984 = vld [vmem:[#allocation3 + $0x58] sm:$0xff]
          %v1985 = vld [vmem:[#allocation3 + $0x60] sm:$0xff]
          %v1986 = vld [vmem:[#allocation3 + $0x68] sm:$0xff]
          %v1987 = vld [vmem:[#allocation3 + $0x70] sm:$0xff]
          %v1988 = vld [vmem:[#allocation3 + $0x78] sm:$0xff]
          %v1989 = vld [vmem:[#allocation3 + $0x80] sm:$0xff]
          %v1990 = vld [vmem:[#allocation3 + $0x88] sm:$0xff]
          %v1991 = vld [vmem:[#allocation3 + $0x90] sm:$0xff]
          %v1992 = vld [vmem:[#allocation3 + $0x98] sm:$0xff]
          %v1993 = vld [vmem:[#allocation3 + $0xa0] sm:$0xff]
          %v1994 = vld [vmem:[#allocation3 + $0xa8] sm:$0xff]
          %v1995 = vld [vmem:[#allocation3 + $0xb0] sm:$0xff]
          %v1996 = vld [vmem:[#allocation3 + $0xb8] sm:$0xff]
          %v1997 = vld [vmem:[#allocation3 + $0xc0] sm:$0xff]
          %v1998 = vld [vmem:[#allocation3 + $0xc8] sm:$0xff]
          %v1999 = vpack.c.bf16 %v1974, %v1973
          %v2000 = vpack.c.bf16 %v1976, %v1975
          %v2001 = vpack.c.bf16 %v1978, %v1977
          %v2002 = vpack.c.bf16 %v1980, %v1979
          %v2003 = vpack.c.bf16 %v1982, %v1981
          %v2004 = vpack.c.bf16 %v1984, %v1983
          %v2005 = vpack.c.bf16 %v1986, %v1985
          %v2006 = vpack.c.bf16 %v1988, %v1987
          %v2007 = vpack.c.bf16 %v1990, %v1989
          %v2008 = vpack.c.bf16 %v1992, %v1991
          %v2009 = vpack.c.bf16 %v1994, %v1993
          %v2010 = vpack.c.bf16 %v1996, %v1995
          %v2011 = vpack.c.bf16 %v1998, %v1997
          %v2012 = vld [vmem:[#allocation3 + $0x1] sm:$0xff]
          %v2013 = vld [vmem:[#allocation3 + $0x9] sm:$0xff]
          %v2014 = vld [vmem:[#allocation3 + $0x11] sm:$0xff]
          %v2015 = vld [vmem:[#allocation3 + $0x19] sm:$0xff]
          %v2016 = vld [vmem:[#allocation3 + $0x21] sm:$0xff]
          %v2017 = vld [vmem:[#allocation3 + $0x29] sm:$0xff]
          %v2018 = vld [vmem:[#allocation3 + $0x31] sm:$0xff]
          %v2019 = vld [vmem:[#allocation3 + $0x39] sm:$0xff]
          %v2020 = vld [vmem:[#allocation3 + $0x41] sm:$0xff]
          %v2021 = vld [vmem:[#allocation3 + $0x49] sm:$0xff]
          %v2022 = vld [vmem:[#allocation3 + $0x51] sm:$0xff]
          %v2023 = vld [vmem:[#allocation3 + $0x59] sm:$0xff]
          %v2024 = vld [vmem:[#allocation3 + $0x61] sm:$0xff]
          %v2025 = vld [vmem:[#allocation3 + $0x69] sm:$0xff]
          %v2026 = vld [vmem:[#allocation3 + $0x71] sm:$0xff]
          %v2027 = vld [vmem:[#allocation3 + $0x79] sm:$0xff]
          %v2028 = vld [vmem:[#allocation3 + $0x81] sm:$0xff]
          %v2029 = vld [vmem:[#allocation3 + $0x89] sm:$0xff]
          %v2030 = vld [vmem:[#allocation3 + $0x91] sm:$0xff]
          %v2031 = vld [vmem:[#allocation3 + $0x99] sm:$0xff]
          %v2032 = vld [vmem:[#allocation3 + $0xa1] sm:$0xff]
          %v2033 = vld [vmem:[#allocation3 + $0xa9] sm:$0xff]
          %v2034 = vld [vmem:[#allocation3 + $0xb1] sm:$0xff]
          %v2035 = vld [vmem:[#allocation3 + $0xb9] sm:$0xff]
          %v2036 = vld [vmem:[#allocation3 + $0xc1] sm:$0xff]
          %v2037 = vld [vmem:[#allocation3 + $0xc9] sm:$0xff]
          %v2038 = vpack.c.bf16 %v2013, %v2012
          %v2039 = vpack.c.bf16 %v2015, %v2014
          %v2040 = vpack.c.bf16 %v2017, %v2016
          %v2041 = vpack.c.bf16 %v2019, %v2018
          %v2042 = vpack.c.bf16 %v2021, %v2020
          %v2043 = vpack.c.bf16 %v2023, %v2022
          %v2044 = vpack.c.bf16 %v2025, %v2024
          %v2045 = vpack.c.bf16 %v2027, %v2026
          %v2046 = vpack.c.bf16 %v2029, %v2028
          %v2047 = vpack.c.bf16 %v2031, %v2030
          %v2048 = vpack.c.bf16 %v2033, %v2032
          %v2049 = vpack.c.bf16 %v2035, %v2034
          %v2050 = vpack.c.bf16 %v2037, %v2036
          %v2051 = vld [vmem:[#allocation3 + $0x2] sm:$0xff]
          %v2052 = vld [vmem:[#allocation3 + $0xa] sm:$0xff]
          %v2053 = vld [vmem:[#allocation3 + $0x12] sm:$0xff]
          %v2054 = vld [vmem:[#allocation3 + $0x1a] sm:$0xff]
          %v2055 = vld [vmem:[#allocation3 + $0x22] sm:$0xff]
          %v2056 = vld [vmem:[#allocation3 + $0x2a] sm:$0xff]
          %v2057 = vld [vmem:[#allocation3 + $0x32] sm:$0xff]
          %v2058 = vld [vmem:[#allocation3 + $0x3a] sm:$0xff]
          %v2059 = vld [vmem:[#allocation3 + $0x42] sm:$0xff]
          %v2060 = vld [vmem:[#allocation3 + $0x4a] sm:$0xff]
          %v2061 = vld [vmem:[#allocation3 + $0x52] sm:$0xff]
          %v2062 = vld [vmem:[#allocation3 + $0x5a] sm:$0xff]
          %v2063 = vld [vmem:[#allocation3 + $0x62] sm:$0xff]
          %v2064 = vld [vmem:[#allocation3 + $0x6a] sm:$0xff]
          %v2065 = vld [vmem:[#allocation3 + $0x72] sm:$0xff]
          %v2066 = vld [vmem:[#allocation3 + $0x7a] sm:$0xff]
          %v2067 = vld [vmem:[#allocation3 + $0x82] sm:$0xff]
          %v2068 = vld [vmem:[#allocation3 + $0x8a] sm:$0xff]
          %v2069 = vld [vmem:[#allocation3 + $0x92] sm:$0xff]
          %v2070 = vld [vmem:[#allocation3 + $0x9a] sm:$0xff]
          %v2071 = vld [vmem:[#allocation3 + $0xa2] sm:$0xff]
          %v2072 = vld [vmem:[#allocation3 + $0xaa] sm:$0xff]
          %v2073 = vld [vmem:[#allocation3 + $0xb2] sm:$0xff]
          %v2074 = vld [vmem:[#allocation3 + $0xba] sm:$0xff]
          %v2075 = vld [vmem:[#allocation3 + $0xc2] sm:$0xff]
          %v2076 = vld [vmem:[#allocation3 + $0xca] sm:$0xff]
          %v2077 = vpack.c.bf16 %v2052, %v2051
          %v2078 = vpack.c.bf16 %v2054, %v2053
          %v2079 = vpack.c.bf16 %v2056, %v2055
          %v2080 = vpack.c.bf16 %v2058, %v2057
          %v2081 = vpack.c.bf16 %v2060, %v2059
          %v2082 = vpack.c.bf16 %v2062, %v2061
          %v2083 = vpack.c.bf16 %v2064, %v2063
          %v2084 = vpack.c.bf16 %v2066, %v2065
          %v2085 = vpack.c.bf16 %v2068, %v2067
          %v2086 = vpack.c.bf16 %v2070, %v2069
          %v2087 = vpack.c.bf16 %v2072, %v2071
          %v2088 = vpack.c.bf16 %v2074, %v2073
          %v2089 = vpack.c.bf16 %v2076, %v2075
          %v2090 = vld [vmem:[#allocation3 + $0x3] sm:$0xff]
          %v2091 = vld [vmem:[#allocation3 + $0xb] sm:$0xff]
          %v2092 = vld [vmem:[#allocation3 + $0x13] sm:$0xff]
          %v2093 = vld [vmem:[#allocation3 + $0x1b] sm:$0xff]
          %v2094 = vld [vmem:[#allocation3 + $0x23] sm:$0xff]
          %v2095 = vld [vmem:[#allocation3 + $0x2b] sm:$0xff]
          %v2096 = vld [vmem:[#allocation3 + $0x33] sm:$0xff]
          %v2097 = vld [vmem:[#allocation3 + $0x3b] sm:$0xff]
          %v2098 = vld [vmem:[#allocation3 + $0x43] sm:$0xff]
          %v2099 = vld [vmem:[#allocation3 + $0x4b] sm:$0xff]
          %v2100 = vld [vmem:[#allocation3 + $0x53] sm:$0xff]
          %v2101 = vld [vmem:[#allocation3 + $0x5b] sm:$0xff]
          %v2102 = vld [vmem:[#allocation3 + $0x63] sm:$0xff]
          %v2103 = vld [vmem:[#allocation3 + $0x6b] sm:$0xff]
          %v2104 = vld [vmem:[#allocation3 + $0x73] sm:$0xff]
          %v2105 = vld [vmem:[#allocation3 + $0x7b] sm:$0xff]
          %v2106 = vld [vmem:[#allocation3 + $0x83] sm:$0xff]
          %v2107 = vld [vmem:[#allocation3 + $0x8b] sm:$0xff]
          %v2108 = vld [vmem:[#allocation3 + $0x93] sm:$0xff]
          %v2109 = vld [vmem:[#allocation3 + $0x9b] sm:$0xff]
          %v2110 = vld [vmem:[#allocation3 + $0xa3] sm:$0xff]
          %v2111 = vld [vmem:[#allocation3 + $0xab] sm:$0xff]
          %v2112 = vld [vmem:[#allocation3 + $0xb3] sm:$0xff]
          %v2113 = vld [vmem:[#allocation3 + $0xbb] sm:$0xff]
          %v2114 = vld [vmem:[#allocation3 + $0xc3] sm:$0xff]
          %v2115 = vld [vmem:[#allocation3 + $0xcb] sm:$0xff]
          %v2116 = vpack.c.bf16 %v2091, %v2090
          %v2117 = vpack.c.bf16 %v2093, %v2092
          %v2118 = vpack.c.bf16 %v2095, %v2094
          %v2119 = vpack.c.bf16 %v2097, %v2096
          %v2120 = vpack.c.bf16 %v2099, %v2098
          %v2121 = vpack.c.bf16 %v2101, %v2100
          %v2122 = vpack.c.bf16 %v2103, %v2102
          %v2123 = vpack.c.bf16 %v2105, %v2104
          %v2124 = vpack.c.bf16 %v2107, %v2106
          %v2125 = vpack.c.bf16 %v2109, %v2108
          %v2126 = vpack.c.bf16 %v2111, %v2110
          %v2127 = vpack.c.bf16 %v2113, %v2112
          %v2128 = vpack.c.bf16 %v2115, %v2114
          %2142 = vrot.lane.b32.xlu0 %v2038, 64
          %v2143 = vpop.permute.xlu0 %2142
          %2144 = vrot.lane.b32.xlu0 %v2039, 64
          %v2145 = vpop.permute.xlu0 %2144
          %2146 = vrot.lane.b32.xlu0 %v2040, 64
          %v2147 = vpop.permute.xlu0 %2146
          %2148 = vrot.lane.b32.xlu0 %v2041, 64
          %v2149 = vpop.permute.xlu0 %2148
          %2150 = vrot.lane.b32.xlu0 %v2042, 64
          %v2151 = vpop.permute.xlu0 %2150
          %2152 = vrot.lane.b32.xlu0 %v2043, 64
          %v2153 = vpop.permute.xlu0 %2152
          %2154 = vrot.lane.b32.xlu0 %v2044, 64
          %v2155 = vpop.permute.xlu0 %2154
          %2156 = vrot.lane.b32.xlu0 %v2045, 64
          %v2157 = vpop.permute.xlu0 %2156
          %2158 = vrot.lane.b32.xlu0 %v2046, 64
          %v2159 = vpop.permute.xlu0 %2158
          %2160 = vrot.lane.b32.xlu0 %v2047, 64
          %v2161 = vpop.permute.xlu0 %2160
          %2162 = vrot.lane.b32.xlu0 %v2048, 64
          %v2163 = vpop.permute.xlu0 %2162
          %2164 = vrot.lane.b32.xlu0 %v2049, 64
          %v2165 = vpop.permute.xlu0 %2164
          %2166 = vrot.lane.b32.xlu0 %v2050, 64
          %v2167 = vpop.permute.xlu0 %2166
          %2181 = vrot.lane.b32.xlu0 %v2116, 64
          %v2182 = vpop.permute.xlu0 %2181
          %2183 = vrot.lane.b32.xlu0 %v2117, 64
          %v2184 = vpop.permute.xlu0 %2183
          %2185 = vrot.lane.b32.xlu0 %v2118, 64
          %v2186 = vpop.permute.xlu0 %2185
          %2187 = vrot.lane.b32.xlu0 %v2119, 64
          %v2188 = vpop.permute.xlu0 %2187
          %2189 = vrot.lane.b32.xlu0 %v2120, 64
          %v2190 = vpop.permute.xlu0 %2189
          %2191 = vrot.lane.b32.xlu0 %v2121, 64
          %v2192 = vpop.permute.xlu0 %2191
          %2193 = vrot.lane.b32.xlu0 %v2122, 64
          %v2194 = vpop.permute.xlu0 %2193
          %2195 = vrot.lane.b32.xlu0 %v2123, 64
          %v2196 = vpop.permute.xlu0 %2195
          %2197 = vrot.lane.b32.xlu0 %v2124, 64
          %v2198 = vpop.permute.xlu0 %2197
          %2199 = vrot.lane.b32.xlu0 %v2125, 64
          %v2200 = vpop.permute.xlu0 %2199
          %2201 = vrot.lane.b32.xlu0 %v2126, 64
          %v2202 = vpop.permute.xlu0 %2201
          %2203 = vrot.lane.b32.xlu0 %v2127, 64
          %v2204 = vpop.permute.xlu0 %2203
          %2205 = vrot.lane.b32.xlu0 %v2128, 64
          %v2206 = vpop.permute.xlu0 %2205
          %v2209 = vsel %vm780, %v1999, %v2143
          %v2213 = vsel %vm780, %v2000, %v2145
          %v2217 = vsel %vm780, %v2001, %v2147
          %v2221 = vsel %vm780, %v2002, %v2149
          %v2225 = vsel %vm780, %v2003, %v2151
          %v2229 = vsel %vm780, %v2004, %v2153
          %v2233 = vsel %vm780, %v2005, %v2155
          %v2237 = vsel %vm780, %v2006, %v2157
          %v2241 = vsel %vm780, %v2007, %v2159
          %v2245 = vsel %vm780, %v2008, %v2161
          %v2249 = vsel %vm780, %v2009, %v2163
          %v2253 = vsel %vm780, %v2010, %v2165
          %v2257 = vsel %vm780, %v2011, %v2167
          %v2261 = vsel %vm780, %v2077, %v2182
          %v2265 = vsel %vm780, %v2078, %v2184
          %v2269 = vsel %vm780, %v2079, %v2186
          %v2273 = vsel %vm780, %v2080, %v2188
          %v2277 = vsel %vm780, %v2081, %v2190
          %v2281 = vsel %vm780, %v2082, %v2192
          %v2285 = vsel %vm780, %v2083, %v2194
          %v2289 = vsel %vm780, %v2084, %v2196
          %v2293 = vsel %vm780, %v2085, %v2198
          %v2297 = vsel %vm780, %v2086, %v2200
          %v2301 = vsel %vm780, %v2087, %v2202
          %v2305 = vsel %vm780, %v2088, %v2204
          %v2309 = vsel %vm780, %v2089, %v2206
          %v2311 = vld [vmem:[%s3] sm:$0xf]
          %v2312 = vld [vmem:[%s3 + $0x4] sm:$0xf]
          %v2313 = vld [vmem:[%s3 + $0x8] sm:$0xf]
          %v2314 = vld [vmem:[%s3 + $0xc] sm:$0xf]
          %v2315 = vld [vmem:[%s3 + $0x10] sm:$0xf]
          %v2316 = vld [vmem:[%s3 + $0x14] sm:$0xf]
          %v2317 = vld [vmem:[%s3 + $0x18] sm:$0xf]
          %v2318 = vld [vmem:[%s3 + $0x1c] sm:$0xf]
          %v2319 = vld [vmem:[%s3 + $0x20] sm:$0xf]
          %v2320 = vld [vmem:[%s3 + $0x24] sm:$0xf]
          %v2321 = vld [vmem:[%s3 + $0x28] sm:$0xf]
          %v2322 = vld [vmem:[%s3 + $0x2c] sm:$0xf]
          %v2323 = vld [vmem:[%s3 + $0x30] sm:$0xf]
          %v2324 = vld [vmem:[%s3 + $0x34] sm:$0xf]
          %v2325 = vld [vmem:[%s3 + $0x38] sm:$0xf]
          %v2326 = vld [vmem:[%s3 + $0x3c] sm:$0xf]
          %v2327 = vld [vmem:[%s3 + $0x40] sm:$0xf]
          %v2328 = vld [vmem:[%s3 + $0x44] sm:$0xf]
          %v2329 = vld [vmem:[%s3 + $0x48] sm:$0xf]
          %v2330 = vld [vmem:[%s3 + $0x4c] sm:$0xf]
          %v2331 = vld [vmem:[%s3 + $0x50] sm:$0xf]
          %v2332 = vld [vmem:[%s3 + $0x54] sm:$0xf]
          %v2333 = vld [vmem:[%s3 + $0x58] sm:$0xf]
          %v2334 = vld [vmem:[%s3 + $0x5c] sm:$0xf]
          %v2335 = vld [vmem:[%s3 + $0x60] sm:$0xf]
          %v2336 = vld [vmem:[%s3 + $0x64] sm:$0xf]
          %v2337 = vld [vmem:[%s3 + $0x68] sm:$0xf]
          %v2338 = vld [vmem:[%s3 + $0x6c] sm:$0xf]
          %v2339 = vld [vmem:[%s3 + $0x70] sm:$0xf]
          %v2340 = vld [vmem:[%s3 + $0x74] sm:$0xf]
          %v2341 = vld [vmem:[%s3 + $0x78] sm:$0xf]
          %v2342 = vld [vmem:[%s3 + $0x7c] sm:$0xf]
          %v2343 = vld [vmem:[#allocation3 + $0xd0] sm:$0xff]
          %v2344 = vld [vmem:[#allocation3 + $0xd8] sm:$0xff]
          %v2345 = vpack.c.bf16 %v2344, %v2343
          %v2346 = vld [vmem:[#allocation3 + $0xd1] sm:$0xff]
          %v2347 = vld [vmem:[#allocation3 + $0xd9] sm:$0xff]
          %v2348 = vpack.c.bf16 %v2347, %v2346
          %v2349 = vld [vmem:[#allocation3 + $0xd2] sm:$0xff]
          %v2350 = vld [vmem:[#allocation3 + $0xda] sm:$0xff]
          %v2351 = vpack.c.bf16 %v2350, %v2349
          %v2352 = vld [vmem:[#allocation3 + $0xd3] sm:$0xff]
          %v2353 = vld [vmem:[#allocation3 + $0xdb] sm:$0xff]
          %v2354 = vpack.c.bf16 %v2353, %v2352
          %2356 = vrot.lane.b32.xlu0 %v2348, 64
          %v2357 = vpop.permute.xlu0 %2356
          %2359 = vrot.lane.b32.xlu0 %v2354, 64
          %v2360 = vpop.permute.xlu0 %2359
          %v2363 = vsel %vm780, %v2345, %v2357
          %v2367 = vsel %vm780, %v2351, %v2360
          %s2369 = scalar_lea.vmem %s3, 128
          %v2370 = vld [vmem:[%s2369] sm:$0xf]
          %v2371 = vld [vmem:[%s2369 + $0x4] sm:$0xf]
          %v2372 = vld [vmem:[%s2369 + $0x8] sm:$0xf]
          %v2373 = vld [vmem:[%s2369 + $0xc] sm:$0xf]
          %v2374 = vld [vmem:[%s2369 + $0x10] sm:$0xf]
          %v2375 = vld [vmem:[%s2369 + $0x14] sm:$0xf]
          %v2376 = vld [vmem:[%s2369 + $0x18] sm:$0xf]
          %v2377 = vld [vmem:[%s2369 + $0x1c] sm:$0xf]
          %v2378 = vld [vmem:[%s2369 + $0x20] sm:$0xf]
          %v2379 = vld [vmem:[%s2369 + $0x24] sm:$0xf]
          %v2380 = vld [vmem:[%s2369 + $0x28] sm:$0xf]
          %v2381 = vld [vmem:[%s2369 + $0x2c] sm:$0xf]
          %v2382 = vld [vmem:[%s2369 + $0x30] sm:$0xf]
          %v2383 = vld [vmem:[%s2369 + $0x34] sm:$0xf]
          %v2384 = vld [vmem:[%s2369 + $0x38] sm:$0xf]
          %v2385 = vld [vmem:[%s2369 + $0x3c] sm:$0xf]
          %v2386 = vld [vmem:[%s2369 + $0x40] sm:$0xf]
          %v2387 = vld [vmem:[%s2369 + $0x44] sm:$0xf]
          %v2388 = vld [vmem:[%s2369 + $0x48] sm:$0xf]
          %v2389 = vld [vmem:[%s2369 + $0x4c] sm:$0xf]
          %v2390 = vld [vmem:[%s2369 + $0x50] sm:$0xf]
          %v2391 = vld [vmem:[%s2369 + $0x54] sm:$0xf]
          %v2392 = vld [vmem:[%s2369 + $0x58] sm:$0xf]
          %v2393 = vld [vmem:[%s2369 + $0x5c] sm:$0xf]
          %v2394 = vld [vmem:[%s2369 + $0x60] sm:$0xf]
          %v2395 = vld [vmem:[%s2369 + $0x64] sm:$0xf]
          %v2396 = vld [vmem:[%s2369 + $0x68] sm:$0xf]
          %v2397 = vld [vmem:[%s2369 + $0x6c] sm:$0xf]
          %v2398 = vld [vmem:[%s2369 + $0x70] sm:$0xf]
          %v2399 = vld [vmem:[%s2369 + $0x74] sm:$0xf]
          %v2400 = vld [vmem:[%s2369 + $0x78] sm:$0xf]
          %v2401 = vld [vmem:[%s2369 + $0x7c] sm:$0xf]
          %v2434 = vunpack.c.l.b16 %v2370
          %v2435 = vunpack.c.l.b16 %v2371
          %v2436 = vunpack.c.l.b16 %v2372
          %v2437 = vunpack.c.l.b16 %v2373
          %v2438 = vunpack.c.l.b16 %v2374
          %v2439 = vunpack.c.l.b16 %v2375
          %v2440 = vunpack.c.l.b16 %v2376
          %v2441 = vunpack.c.l.b16 %v2377
          %v2442 = vunpack.c.l.b16 %v2378
          %v2443 = vunpack.c.l.b16 %v2379
          %v2444 = vunpack.c.l.b16 %v2380
          %v2445 = vunpack.c.l.b16 %v2381
          %v2446 = vunpack.c.l.b16 %v2382
          %v2447 = vunpack.c.l.b16 %v2383
          %v2448 = vunpack.c.l.b16 %v2384
          %v2449 = vunpack.c.l.b16 %v2385
          %v2450 = vunpack.c.l.b16 %v2386
          %v2451 = vunpack.c.l.b16 %v2387
          %v2452 = vunpack.c.l.b16 %v2388
          %v2453 = vunpack.c.l.b16 %v2389
          %v2454 = vunpack.c.l.b16 %v2390
          %v2455 = vunpack.c.l.b16 %v2391
          %v2456 = vunpack.c.l.b16 %v2392
          %v2457 = vunpack.c.l.b16 %v2393
          %v2458 = vunpack.c.l.b16 %v2394
          %v2459 = vunpack.c.l.b16 %v2395
          %v2460 = vunpack.c.l.b16 %v2396
          %v2461 = vunpack.c.l.b16 %v2397
          %v2462 = vunpack.c.l.b16 %v2398
          %v2463 = vunpack.c.l.b16 %v2399
          %v2464 = vunpack.c.l.b16 %v2400
          %v2465 = vunpack.c.l.b16 %v2401
          %v2466 = vpack.c.b16 %v2435, %v2434
          %v2467 = vpack.c.b16 %v2437, %v2436
          %v2468 = vpack.c.b16 %v2439, %v2438
          %v2469 = vpack.c.b16 %v2441, %v2440
          %v2470 = vpack.c.b16 %v2443, %v2442
          %v2471 = vpack.c.b16 %v2445, %v2444
          %v2472 = vpack.c.b16 %v2447, %v2446
          %v2473 = vpack.c.b16 %v2449, %v2448
          %v2474 = vpack.c.b16 %v2451, %v2450
          %v2475 = vpack.c.b16 %v2453, %v2452
          %v2476 = vpack.c.b16 %v2455, %v2454
          %v2477 = vpack.c.b16 %v2457, %v2456
          %v2478 = vpack.c.b16 %v2459, %v2458
          %v2479 = vpack.c.b16 %v2461, %v2460
          %v2480 = vpack.c.b16 %v2463, %v2462
          %v2481 = vpack.c.b16 %v2465, %v2464
          %2498 = vmatprep.subr.bf16.mxu0 0
          %2499 = vmatpush1.bf16.msra.mxu0 %v2466
          %2500 = vmatprep.subr.bf16.mxu0 0
          %2501 = vmatpush1.bf16.msra.mxu0 %v2467
          %2502 = vmatprep.subr.bf16.mxu0 0
          %2503 = vmatpush1.bf16.msra.mxu0 %v2468
          %2504 = vmatprep.subr.bf16.mxu0 0
          %2505 = vmatpush1.bf16.msra.mxu0 %v2469
          %2506 = vmatprep.subr.bf16.mxu0 0
          %2507 = vmatpush1.bf16.msra.mxu0 %v2470
          %2508 = vmatprep.subr.bf16.mxu0 0
          %2509 = vmatpush1.bf16.msra.mxu0 %v2471
          %2510 = vmatprep.subr.bf16.mxu0 0
          %2511 = vmatpush1.bf16.msra.mxu0 %v2472
          %2512 = vmatprep.subr.bf16.mxu0 0
          %2513 = vmatpush1.bf16.msra.mxu0 %v2473
          %2514 = vmatprep.subr.bf16.mxu0 0
          %2515 = vmatpush1.bf16.msra.mxu0 %v2474
          %2516 = vmatprep.subr.bf16.mxu0 0
          %2517 = vmatpush1.bf16.msra.mxu0 %v2475
          %2518 = vmatprep.subr.bf16.mxu0 0
          %2519 = vmatpush1.bf16.msra.mxu0 %v2476
          %2520 = vmatprep.subr.bf16.mxu0 0
          %2521 = vmatpush1.bf16.msra.mxu0 %v2477
          %2522 = vmatprep.subr.bf16.mxu0 0
          %2523 = vmatpush1.bf16.msra.mxu0 %v2478
          %2524 = vmatprep.subr.bf16.mxu0 0
          %2525 = vmatpush1.bf16.msra.mxu0 %v2479
          %2526 = vmatprep.subr.bf16.mxu0 0
          %2527 = vmatpush1.bf16.msra.mxu0 %v2480
          %2528 = vmatprep.subr.bf16.mxu0 0
          %2529 = vmatpush1.bf16.msra.mxu0 %v2481
          %2530 = vmatprep.mubr.bf16.mxu0 %v2265
          %2531 = vmatmul.mubr.bf16.gmra.mrb[0].mxu0 %v2213
          %v2532 = vpop.f32.mrb[0].mxu0
          %v2533 = vadd.f32 0.0, %v2532
          %v2534 = vpop.f32.mrb[0].mxu0
          %v2535 = vpop.f32.mrb[0].mxu0
          %v2536 = vadd.f32 0.0, %v2535
          %v2537 = vpop.f32.mrb[0].mxu0
          %2538 = vmatprep.mubr.bf16.mxu0 %v2269
          %2539 = vmatmul.mubr.bf16.gmra.mrb[0].mxu0 %v2217
          %v2540 = vpop.f32.mrb[0].mxu0
          %v2541 = vadd.f32 0.0, %v2540
          %v2542 = vpop.f32.mrb[0].mxu0
          %v2543 = vpop.f32.mrb[0].mxu0
          %v2544 = vadd.f32 0.0, %v2543
          %v2545 = vpop.f32.mrb[0].mxu0
          %2546 = vmatprep.mubr.bf16.mxu0 %v2273
          %2547 = vmatmul.mubr.bf16.gmra.mrb[0].mxu0 %v2221
          %v2548 = vpop.f32.mrb[0].mxu0
          %v2549 = vadd.f32 0.0, %v2548
          %v2550 = vpop.f32.mrb[0].mxu0
          %v2551 = vpop.f32.mrb[0].mxu0
          %v2552 = vadd.f32 0.0, %v2551
          %v2553 = vpop.f32.mrb[0].mxu0
          %2554 = vmatprep.mubr.bf16.mxu0 %v2277
          %2555 = vmatmul.mubr.bf16.gmra.mrb[0].mxu0 %v2225
          %v2556 = vpop.f32.mrb[0].mxu0
          %v2557 = vadd.f32 0.0, %v2556
          %v2558 = vpop.f32.mrb[0].mxu0
          %v2559 = vpop.f32.mrb[0].mxu0
          %v2560 = vadd.f32 0.0, %v2559
          %v2561 = vpop.f32.mrb[0].mxu0
          %2562 = vmatprep.mubr.bf16.mxu0 %v2281
          %2563 = vmatmul.mubr.bf16.gmra.mrb[0].mxu0 %v2229
          %v2564 = vpop.f32.mrb[0].mxu0
          %v2565 = vadd.f32 0.0, %v2564
          %v2566 = vpop.f32.mrb[0].mxu0
          %v2567 = vpop.f32.mrb[0].mxu0
          %v2568 = vadd.f32 0.0, %v2567
          %v2569 = vpop.f32.mrb[0].mxu0
          %2570 = vmatprep.mubr.bf16.mxu0 %v2285
          %2571 = vmatmul.mubr.bf16.gmra.mrb[0].mxu0 %v2233
          %v2572 = vpop.f32.mrb[0].mxu0
          %v2573 = vadd.f32 0.0, %v2572
          %v2574 = vpop.f32.mrb[0].mxu0
          %v2575 = vpop.f32.mrb[0].mxu0
          %v2576 = vadd.f32 0.0, %v2575
          %v2577 = vpop.f32.mrb[0].mxu0
          %2578 = vmatprep.mubr.bf16.mxu0 %v2289
          %2579 = vmatmul.mubr.bf16.gmra.mrb[0].mxu0 %v2237
          %v2580 = vpop.f32.mrb[0].mxu0
          %v2581 = vadd.f32 0.0, %v2580
          %v2582 = vpop.f32.mrb[0].mxu0
          %v2583 = vpop.f32.mrb[0].mxu0
          %v2584 = vadd.f32 0.0, %v2583
          %v2585 = vpop.f32.mrb[0].mxu0
          %2586 = vmatprep.mubr.bf16.mxu0 %v2293
          %2587 = vmatmul.mubr.bf16.gmra.mrb[0].mxu0 %v2241
          %v2588 = vpop.f32.mrb[0].mxu0
          %v2589 = vadd.f32 0.0, %v2588
          %v2590 = vpop.f32.mrb[0].mxu0
          %v2591 = vpop.f32.mrb[0].mxu0
          %v2592 = vadd.f32 0.0, %v2591
          %v2593 = vpop.f32.mrb[0].mxu0
          %2594 = vmatprep.mubr.bf16.mxu0 %v2297
          %2595 = vmatmul.mubr.bf16.gmra.mrb[0].mxu0 %v2245
          %v2596 = vpop.f32.mrb[0].mxu0
          %v2597 = vadd.f32 0.0, %v2596
          %v2598 = vpop.f32.mrb[0].mxu0
          %v2599 = vpop.f32.mrb[0].mxu0
          %v2600 = vadd.f32 0.0, %v2599
          %v2601 = vpop.f32.mrb[0].mxu0
          %2602 = vmatprep.mubr.bf16.mxu0 %v2301
          %2603 = vmatmul.mubr.bf16.gmra.mrb[0].mxu0 %v2249
          %v2604 = vpop.f32.mrb[0].mxu0
          %v2605 = vadd.f32 0.0, %v2604
          %v2606 = vpop.f32.mrb[0].mxu0
          %v2607 = vpop.f32.mrb[0].mxu0
          %v2608 = vadd.f32 0.0, %v2607
          %v2609 = vpop.f32.mrb[0].mxu0
          %2610 = vmatprep.mubr.bf16.mxu0 %v2305
          %2611 = vmatmul.mubr.bf16.gmra.mrb[0].mxu0 %v2253
          %v2612 = vpop.f32.mrb[0].mxu0
          %v2613 = vadd.f32 0.0, %v2612
          %v2614 = vpop.f32.mrb[0].mxu0
          %v2615 = vpop.f32.mrb[0].mxu0
          %v2616 = vadd.f32 0.0, %v2615
          %v2617 = vpop.f32.mrb[0].mxu0
          %2618 = vmatprep.mubr.bf16.mxu0 %v2309
          %2619 = vmatmul.mubr.bf16.gmra.mrb[0].mxu0 %v2257
          %v2620 = vpop.f32.mrb[0].mxu0
          %v2621 = vadd.f32 0.0, %v2620
          %v2622 = vpop.f32.mrb[0].mxu0
          %v2623 = vpop.f32.mrb[0].mxu0
          %v2624 = vadd.f32 0.0, %v2623
          %v2625 = vpop.f32.mrb[0].mxu0
          %2626 = vmatprep.mubr.bf16.mxu0 %v2367
          %2627 = vmatmul.mubr.bf16.gmra.mrb[0].mxu0 %v2363
          %v2628 = vpop.f32.mrb[0].mxu0
          %v2629 = vadd.f32 0.0, %v2628
          %v2630 = vpop.f32.mrb[0].mxu0
          %v2631 = vpop.f32.mrb[0].mxu0
          %v2632 = vadd.f32 0.0, %v2631
          %v2633 = vpop.f32.mrb[0].mxu0
          %2634 = vdwg.mxu0
          %v2667 = vunpack.c.l.b16 %v2311
          %v2668 = vunpack.c.l.b16 %v2312
          %v2669 = vunpack.c.l.b16 %v2313
          %v2670 = vunpack.c.l.b16 %v2314
          %v2671 = vunpack.c.l.b16 %v2315
          %v2672 = vunpack.c.l.b16 %v2316
          %v2673 = vunpack.c.l.b16 %v2317
          %v2674 = vunpack.c.l.b16 %v2318
          %v2675 = vunpack.c.l.b16 %v2319
          %v2676 = vunpack.c.l.b16 %v2320
          %v2677 = vunpack.c.l.b16 %v2321
          %v2678 = vunpack.c.l.b16 %v2322
          %v2679 = vunpack.c.l.b16 %v2323
          %v2680 = vunpack.c.l.b16 %v2324
          %v2681 = vunpack.c.l.b16 %v2325
          %v2682 = vunpack.c.l.b16 %v2326
          %v2683 = vunpack.c.l.b16 %v2327
          %v2684 = vunpack.c.l.b16 %v2328
          %v2685 = vunpack.c.l.b16 %v2329
          %v2686 = vunpack.c.l.b16 %v2330
          %v2687 = vunpack.c.l.b16 %v2331
          %v2688 = vunpack.c.l.b16 %v2332
          %v2689 = vunpack.c.l.b16 %v2333
          %v2690 = vunpack.c.l.b16 %v2334
          %v2691 = vunpack.c.l.b16 %v2335
          %v2692 = vunpack.c.l.b16 %v2336
          %v2693 = vunpack.c.l.b16 %v2337
          %v2694 = vunpack.c.l.b16 %v2338
          %v2695 = vunpack.c.l.b16 %v2339
          %v2696 = vunpack.c.l.b16 %v2340
          %v2697 = vunpack.c.l.b16 %v2341
          %v2698 = vunpack.c.l.b16 %v2342
          %v2699 = vpack.c.b16 %v2668, %v2667
          %v2700 = vpack.c.b16 %v2670, %v2669
          %v2701 = vpack.c.b16 %v2672, %v2671
          %v2702 = vpack.c.b16 %v2674, %v2673
          %v2703 = vpack.c.b16 %v2676, %v2675
          %v2704 = vpack.c.b16 %v2678, %v2677
          %v2705 = vpack.c.b16 %v2680, %v2679
          %v2706 = vpack.c.b16 %v2682, %v2681
          %v2707 = vpack.c.b16 %v2684, %v2683
          %v2708 = vpack.c.b16 %v2686, %v2685
          %v2709 = vpack.c.b16 %v2688, %v2687
          %v2710 = vpack.c.b16 %v2690, %v2689
          %v2711 = vpack.c.b16 %v2692, %v2691
          %v2712 = vpack.c.b16 %v2694, %v2693
          %v2713 = vpack.c.b16 %v2696, %v2695
          %v2714 = vpack.c.b16 %v2698, %v2697
          %2731 = vmatprep.subr.bf16.mxu0 0
          %2732 = vmatpush1.bf16.msra.mxu0 %v2699
          %2733 = vmatprep.subr.bf16.mxu0 0
          %2734 = vmatpush1.bf16.msra.mxu0 %v2700
          %2735 = vmatprep.subr.bf16.mxu0 0
          %2736 = vmatpush1.bf16.msra.mxu0 %v2701
          %2737 = vmatprep.subr.bf16.mxu0 0
          %2738 = vmatpush1.bf16.msra.mxu0 %v2702
          %2739 = vmatprep.subr.bf16.mxu0 0
          %2740 = vmatpush1.bf16.msra.mxu0 %v2703
          %2741 = vmatprep.subr.bf16.mxu0 0
          %2742 = vmatpush1.bf16.msra.mxu0 %v2704
          %2743 = vmatprep.subr.bf16.mxu0 0
          %2744 = vmatpush1.bf16.msra.mxu0 %v2705
          %2745 = vmatprep.subr.bf16.mxu0 0
          %2746 = vmatpush1.bf16.msra.mxu0 %v2706
          %2747 = vmatprep.subr.bf16.mxu0 0
          %2748 = vmatpush1.bf16.msra.mxu0 %v2707
          %2749 = vmatprep.subr.bf16.mxu0 0
          %2750 = vmatpush1.bf16.msra.mxu0 %v2708
          %2751 = vmatprep.subr.bf16.mxu0 0
          %2752 = vmatpush1.bf16.msra.mxu0 %v2709
          %2753 = vmatprep.subr.bf16.mxu0 0
          %2754 = vmatpush1.bf16.msra.mxu0 %v2710
          %2755 = vmatprep.subr.bf16.mxu0 0
          %2756 = vmatpush1.bf16.msra.mxu0 %v2711
          %2757 = vmatprep.subr.bf16.mxu0 0
          %2758 = vmatpush1.bf16.msra.mxu0 %v2712
          %2759 = vmatprep.subr.bf16.mxu0 0
          %2760 = vmatpush1.bf16.msra.mxu0 %v2713
          %2761 = vmatprep.subr.bf16.mxu0 0
          %2762 = vmatpush1.bf16.msra.mxu0 %v2714
          %2763 = vmatprep.mubr.bf16.mxu0 %v2261
          %2764 = vmatmul.mubr.bf16.gmra.mrb[0].mxu0 %v2209
          %v2765 = vpop.f32.mrb[0].mxu0
          %v2766 = vadd.f32 %v2533, %v2765
          %v2767 = vpop.f32.mrb[0].mxu0
          %v2768 = vpop.f32.mrb[0].mxu0
          %v2769 = vadd.f32 %v2536, %v2768
          %v2770 = vpop.f32.mrb[0].mxu0
          %2771 = vmatprep.mubr.bf16.mxu0 %v2265
          %2772 = vmatmul.mubr.bf16.gmra.mrb[0].mxu0 %v2213
          %v2773 = vpop.f32.mrb[0].mxu0
          %v2774 = vadd.f32 %v2541, %v2773
          %v2775 = vpop.f32.mrb[0].mxu0
          %v2776 = vpop.f32.mrb[0].mxu0
          %v2777 = vadd.f32 %v2544, %v2776
          %v2778 = vpop.f32.mrb[0].mxu0
          %2779 = vmatprep.mubr.bf16.mxu0 %v2269
          %2780 = vmatmul.mubr.bf16.gmra.mrb[0].mxu0 %v2217
          %v2781 = vpop.f32.mrb[0].mxu0
          %v2782 = vadd.f32 %v2549, %v2781
          %v2783 = vpop.f32.mrb[0].mxu0
          %v2784 = vpop.f32.mrb[0].mxu0
          %v2785 = vadd.f32 %v2552, %v2784
          %v2786 = vpop.f32.mrb[0].mxu0
          %2787 = vmatprep.mubr.bf16.mxu0 %v2273
          %2788 = vmatmul.mubr.bf16.gmra.mrb[0].mxu0 %v2221
          %v2789 = vpop.f32.mrb[0].mxu0
          %v2790 = vadd.f32 %v2557, %v2789
          %v2791 = vpop.f32.mrb[0].mxu0
          %v2792 = vpop.f32.mrb[0].mxu0
          %v2793 = vadd.f32 %v2560, %v2792
          %v2794 = vpop.f32.mrb[0].mxu0
          %2795 = vmatprep.mubr.bf16.mxu0 %v2277
          %2796 = vmatmul.mubr.bf16.gmra.mrb[0].mxu0 %v2225
          %v2797 = vpop.f32.mrb[0].mxu0
          %v2798 = vadd.f32 %v2565, %v2797
          %v2799 = vpop.f32.mrb[0].mxu0
          %v2800 = vpop.f32.mrb[0].mxu0
          %v2801 = vadd.f32 %v2568, %v2800
          %v2802 = vpop.f32.mrb[0].mxu0
          %2803 = vmatprep.mubr.bf16.mxu0 %v2281
          %2804 = vmatmul.mubr.bf16.gmra.mrb[0].mxu0 %v2229
          %v2805 = vpop.f32.mrb[0].mxu0
          %v2806 = vadd.f32 %v2573, %v2805
          %v2807 = vpop.f32.mrb[0].mxu0
          %v2808 = vpop.f32.mrb[0].mxu0
          %v2809 = vadd.f32 %v2576, %v2808
          %v2810 = vpop.f32.mrb[0].mxu0
          %2811 = vmatprep.mubr.bf16.mxu0 %v2285
          %2812 = vmatmul.mubr.bf16.gmra.mrb[0].mxu0 %v2233
          %v2813 = vpop.f32.mrb[0].mxu0
          %v2814 = vadd.f32 %v2581, %v2813
          %v2815 = vpop.f32.mrb[0].mxu0
          %v2816 = vpop.f32.mrb[0].mxu0
          %v2817 = vadd.f32 %v2584, %v2816
          %v2818 = vpop.f32.mrb[0].mxu0
          %2819 = vmatprep.mubr.bf16.mxu0 %v2289
          %2820 = vmatmul.mubr.bf16.gmra.mrb[0].mxu0 %v2237
          %v2821 = vpop.f32.mrb[0].mxu0
          %v2822 = vadd.f32 %v2589, %v2821
          %v2823 = vpop.f32.mrb[0].mxu0
          %v2824 = vpop.f32.mrb[0].mxu0
          %v2825 = vadd.f32 %v2592, %v2824
          %v2826 = vpop.f32.mrb[0].mxu0
          %2827 = vmatprep.mubr.bf16.mxu0 %v2293
          %2828 = vmatmul.mubr.bf16.gmra.mrb[0].mxu0 %v2241
          %v2829 = vpop.f32.mrb[0].mxu0
          %v2830 = vadd.f32 %v2597, %v2829
          %v2831 = vpop.f32.mrb[0].mxu0
          %v2832 = vpop.f32.mrb[0].mxu0
          %v2833 = vadd.f32 %v2600, %v2832
          %v2834 = vpop.f32.mrb[0].mxu0
          %2835 = vmatprep.mubr.bf16.mxu0 %v2297
          %2836 = vmatmul.mubr.bf16.gmra.mrb[0].mxu0 %v2245
          %v2837 = vpop.f32.mrb[0].mxu0
          %v2838 = vadd.f32 %v2605, %v2837
          %v2839 = vpop.f32.mrb[0].mxu0
          %v2840 = vpop.f32.mrb[0].mxu0
          %v2841 = vadd.f32 %v2608, %v2840
          %v2842 = vpop.f32.mrb[0].mxu0
          %2843 = vmatprep.mubr.bf16.mxu0 %v2301
          %2844 = vmatmul.mubr.bf16.gmra.mrb[0].mxu0 %v2249
          %v2845 = vpop.f32.mrb[0].mxu0
          %v2846 = vadd.f32 %v2613, %v2845
          %v2847 = vpop.f32.mrb[0].mxu0
          %v2848 = vpop.f32.mrb[0].mxu0
          %v2849 = vadd.f32 %v2616, %v2848
          %v2850 = vpop.f32.mrb[0].mxu0
          %2851 = vmatprep.mubr.bf16.mxu0 %v2305
          %2852 = vmatmul.mubr.bf16.gmra.mrb[0].mxu0 %v2253
          %v2853 = vpop.f32.mrb[0].mxu0
          %v2854 = vadd.f32 %v2621, %v2853
          %v2855 = vpop.f32.mrb[0].mxu0
          %v2856 = vpop.f32.mrb[0].mxu0
          %v2857 = vadd.f32 %v2624, %v2856
          %v2858 = vpop.f32.mrb[0].mxu0
          %2859 = vmatprep.mubr.bf16.mxu0 %v2309
          %2860 = vmatmul.mubr.bf16.gmra.mrb[0].mxu0 %v2257
          %v2861 = vpop.f32.mrb[0].mxu0
          %v2862 = vadd.f32 %v2629, %v2861
          %v2863 = vpop.f32.mrb[0].mxu0
          %v2864 = vpop.f32.mrb[0].mxu0
          %v2865 = vadd.f32 %v2632, %v2864
          %v2866 = vpop.f32.mrb[0].mxu0
          %2867 = vdwg.mxu0
          %v2868 = vld [vmem:[#allocation3 + $0x20] sm:$0xff]
          %v2869 = vld [vmem:[#allocation3 + $0x28] sm:$0xff]
          %v2870 = vld [vmem:[#allocation3 + $0x30] sm:$0xff]
          %v2871 = vld [vmem:[#allocation3 + $0x38] sm:$0xff]
          %v2872 = vld [vmem:[#allocation3 + $0x40] sm:$0xff]
          %v2873 = vld [vmem:[#allocation3 + $0x48] sm:$0xff]
          %v2874 = vld [vmem:[#allocation3 + $0x50] sm:$0xff]
          %v2875 = vld [vmem:[#allocation3 + $0x58] sm:$0xff]
          %v2876 = vld [vmem:[#allocation3 + $0x60] sm:$0xff]
          %v2877 = vld [vmem:[#allocation3 + $0x68] sm:$0xff]
          %v2878 = vld [vmem:[#allocation3 + $0x70] sm:$0xff]
          %v2879 = vld [vmem:[#allocation3 + $0x78] sm:$0xff]
          %v2880 = vld [vmem:[#allocation3 + $0x80] sm:$0xff]
          %v2881 = vld [vmem:[#allocation3 + $0x88] sm:$0xff]
          %v2882 = vld [vmem:[#allocation3 + $0x90] sm:$0xff]
          %v2883 = vld [vmem:[#allocation3 + $0x98] sm:$0xff]
          %v2884 = vld [vmem:[#allocation3 + $0xa0] sm:$0xff]
          %v2885 = vld [vmem:[#allocation3 + $0xa8] sm:$0xff]
          %v2886 = vld [vmem:[#allocation3 + $0xb0] sm:$0xff]
          %v2887 = vld [vmem:[#allocation3 + $0xb8] sm:$0xff]
          %v2888 = vld [vmem:[#allocation3 + $0xc0] sm:$0xff]
          %v2889 = vld [vmem:[#allocation3 + $0xc8] sm:$0xff]
          %v2890 = vld [vmem:[#allocation3 + $0xd0] sm:$0xff]
          %v2891 = vld [vmem:[#allocation3 + $0xd8] sm:$0xff]
          %v2892 = vld [vmem:[#allocation3 + $0xe0] sm:$0xff]
          %v2893 = vld [vmem:[#allocation3 + $0xe8] sm:$0xff]
          %v2894 = vpack.c.bf16 %v2869, %v2868
          %v2895 = vpack.c.bf16 %v2871, %v2870
          %v2896 = vpack.c.bf16 %v2873, %v2872
          %v2897 = vpack.c.bf16 %v2875, %v2874
          %v2898 = vpack.c.bf16 %v2877, %v2876
          %v2899 = vpack.c.bf16 %v2879, %v2878
          %v2900 = vpack.c.bf16 %v2881, %v2880
          %v2901 = vpack.c.bf16 %v2883, %v2882
          %v2902 = vpack.c.bf16 %v2885, %v2884
          %v2903 = vpack.c.bf16 %v2887, %v2886
          %v2904 = vpack.c.bf16 %v2889, %v2888
          %v2905 = vpack.c.bf16 %v2891, %v2890
          %v2906 = vpack.c.bf16 %v2893, %v2892
          %v2907 = vld [vmem:[#allocation3 + $0x21] sm:$0xff]
          %v2908 = vld [vmem:[#allocation3 + $0x29] sm:$0xff]
          %v2909 = vld [vmem:[#allocation3 + $0x31] sm:$0xff]
          %v2910 = vld [vmem:[#allocation3 + $0x39] sm:$0xff]
          %v2911 = vld [vmem:[#allocation3 + $0x41] sm:$0xff]
          %v2912 = vld [vmem:[#allocation3 + $0x49] sm:$0xff]
          %v2913 = vld [vmem:[#allocation3 + $0x51] sm:$0xff]
          %v2914 = vld [vmem:[#allocation3 + $0x59] sm:$0xff]
          %v2915 = vld [vmem:[#allocation3 + $0x61] sm:$0xff]
          %v2916 = vld [vmem:[#allocation3 + $0x69] sm:$0xff]
          %v2917 = vld [vmem:[#allocation3 + $0x71] sm:$0xff]
          %v2918 = vld [vmem:[#allocation3 + $0x79] sm:$0xff]
          %v2919 = vld [vmem:[#allocation3 + $0x81] sm:$0xff]
          %v2920 = vld [vmem:[#allocation3 + $0x89] sm:$0xff]
          %v2921 = vld [vmem:[#allocation3 + $0x91] sm:$0xff]
          %v2922 = vld [vmem:[#allocation3 + $0x99] sm:$0xff]
          %v2923 = vld [vmem:[#allocation3 + $0xa1] sm:$0xff]
          %v2924 = vld [vmem:[#allocation3 + $0xa9] sm:$0xff]
          %v2925 = vld [vmem:[#allocation3 + $0xb1] sm:$0xff]
          %v2926 = vld [vmem:[#allocation3 + $0xb9] sm:$0xff]
          %v2927 = vld [vmem:[#allocation3 + $0xc1] sm:$0xff]
          %v2928 = vld [vmem:[#allocation3 + $0xc9] sm:$0xff]
          %v2929 = vld [vmem:[#allocation3 + $0xd1] sm:$0xff]
          %v2930 = vld [vmem:[#allocation3 + $0xd9] sm:$0xff]
          %v2931 = vld [vmem:[#allocation3 + $0xe1] sm:$0xff]
          %v2932 = vld [vmem:[#allocation3 + $0xe9] sm:$0xff]
          %v2933 = vpack.c.bf16 %v2908, %v2907
          %v2934 = vpack.c.bf16 %v2910, %v2909
          %v2935 = vpack.c.bf16 %v2912, %v2911
          %v2936 = vpack.c.bf16 %v2914, %v2913
          %v2937 = vpack.c.bf16 %v2916, %v2915
          %v2938 = vpack.c.bf16 %v2918, %v2917
          %v2939 = vpack.c.bf16 %v2920, %v2919
          %v2940 = vpack.c.bf16 %v2922, %v2921
          %v2941 = vpack.c.bf16 %v2924, %v2923
          %v2942 = vpack.c.bf16 %v2926, %v2925
          %v2943 = vpack.c.bf16 %v2928, %v2927
          %v2944 = vpack.c.bf16 %v2930, %v2929
          %v2945 = vpack.c.bf16 %v2932, %v2931
          %v2946 = vld [vmem:[#allocation3 + $0x22] sm:$0xff]
          %v2947 = vld [vmem:[#allocation3 + $0x2a] sm:$0xff]
          %v2948 = vld [vmem:[#allocation3 + $0x32] sm:$0xff]
          %v2949 = vld [vmem:[#allocation3 + $0x3a] sm:$0xff]
          %v2950 = vld [vmem:[#allocation3 + $0x42] sm:$0xff]
          %v2951 = vld [vmem:[#allocation3 + $0x4a] sm:$0xff]
          %v2952 = vld [vmem:[#allocation3 + $0x52] sm:$0xff]
          %v2953 = vld [vmem:[#allocation3 + $0x5a] sm:$0xff]
          %v2954 = vld [vmem:[#allocation3 + $0x62] sm:$0xff]
          %v2955 = vld [vmem:[#allocation3 + $0x6a] sm:$0xff]
          %v2956 = vld [vmem:[#allocation3 + $0x72] sm:$0xff]
          %v2957 = vld [vmem:[#allocation3 + $0x7a] sm:$0xff]
          %v2958 = vld [vmem:[#allocation3 + $0x82] sm:$0xff]
          %v2959 = vld [vmem:[#allocation3 + $0x8a] sm:$0xff]
          %v2960 = vld [vmem:[#allocation3 + $0x92] sm:$0xff]
          %v2961 = vld [vmem:[#allocation3 + $0x9a] sm:$0xff]
          %v2962 = vld [vmem:[#allocation3 + $0xa2] sm:$0xff]
          %v2963 = vld [vmem:[#allocation3 + $0xaa] sm:$0xff]
          %v2964 = vld [vmem:[#allocation3 + $0xb2] sm:$0xff]
          %v2965 = vld [vmem:[#allocation3 + $0xba] sm:$0xff]
          %v2966 = vld [vmem:[#allocation3 + $0xc2] sm:$0xff]
          %v2967 = vld [vmem:[#allocation3 + $0xca] sm:$0xff]
          %v2968 = vld [vmem:[#allocation3 + $0xd2] sm:$0xff]
          %v2969 = vld [vmem:[#allocation3 + $0xda] sm:$0xff]
          %v2970 = vld [vmem:[#allocation3 + $0xe2] sm:$0xff]
          %v2971 = vld [vmem:[#allocation3 + $0xea] sm:$0xff]
          %v2972 = vpack.c.bf16 %v2947, %v2946
          %v2973 = vpack.c.bf16 %v2949, %v2948
          %v2974 = vpack.c.bf16 %v2951, %v2950
          %v2975 = vpack.c.bf16 %v2953, %v2952
          %v2976 = vpack.c.bf16 %v2955, %v2954
          %v2977 = vpack.c.bf16 %v2957, %v2956
          %v2978 = vpack.c.bf16 %v2959, %v2958
          %v2979 = vpack.c.bf16 %v2961, %v2960
          %v2980 = vpack.c.bf16 %v2963, %v2962
          %v2981 = vpack.c.bf16 %v2965, %v2964
          %v2982 = vpack.c.bf16 %v2967, %v2966
          %v2983 = vpack.c.bf16 %v2969, %v2968
          %v2984 = vpack.c.bf16 %v2971, %v2970
          %v2985 = vld [vmem:[#allocation3 + $0x23] sm:$0xff]
          %v2986 = vld [vmem:[#allocation3 + $0x2b] sm:$0xff]
          %v2987 = vld [vmem:[#allocation3 + $0x33] sm:$0xff]
          %v2988 = vld [vmem:[#allocation3 + $0x3b] sm:$0xff]
          %v2989 = vld [vmem:[#allocation3 + $0x43] sm:$0xff]
          %v2990 = vld [vmem:[#allocation3 + $0x4b] sm:$0xff]
          %v2991 = vld [vmem:[#allocation3 + $0x53] sm:$0xff]
          %v2992 = vld [vmem:[#allocation3 + $0x5b] sm:$0xff]
          %v2993 = vld [vmem:[#allocation3 + $0x63] sm:$0xff]
          %v2994 = vld [vmem:[#allocation3 + $0x6b] sm:$0xff]
          %v2995 = vld [vmem:[#allocation3 + $0x73] sm:$0xff]
          %v2996 = vld [vmem:[#allocation3 + $0x7b] sm:$0xff]
          %v2997 = vld [vmem:[#allocation3 + $0x83] sm:$0xff]
          %v2998 = vld [vmem:[#allocation3 + $0x8b] sm:$0xff]
          %v2999 = vld [vmem:[#allocation3 + $0x93] sm:$0xff]
          %v3000 = vld [vmem:[#allocation3 + $0x9b] sm:$0xff]
          %v3001 = vld [vmem:[#allocation3 + $0xa3] sm:$0xff]
          %v3002 = vld [vmem:[#allocation3 + $0xab] sm:$0xff]
          %v3003 = vld [vmem:[#allocation3 + $0xb3] sm:$0xff]
          %v3004 = vld [vmem:[#allocation3 + $0xbb] sm:$0xff]
          %v3005 = vld [vmem:[#allocation3 + $0xc3] sm:$0xff]
          %v3006 = vld [vmem:[#allocation3 + $0xcb] sm:$0xff]
          %v3007 = vld [vmem:[#allocation3 + $0xd3] sm:$0xff]
          %v3008 = vld [vmem:[#allocation3 + $0xdb] sm:$0xff]
          %v3009 = vld [vmem:[#allocation3 + $0xe3] sm:$0xff]
          %v3010 = vld [vmem:[#allocation3 + $0xeb] sm:$0xff]
          %v3011 = vpack.c.bf16 %v2986, %v2985
          %v3012 = vpack.c.bf16 %v2988, %v2987
          %v3013 = vpack.c.bf16 %v2990, %v2989
          %v3014 = vpack.c.bf16 %v2992, %v2991
          %v3015 = vpack.c.bf16 %v2994, %v2993
          %v3016 = vpack.c.bf16 %v2996, %v2995
          %v3017 = vpack.c.bf16 %v2998, %v2997
          %v3018 = vpack.c.bf16 %v3000, %v2999
          %v3019 = vpack.c.bf16 %v3002, %v3001
          %v3020 = vpack.c.bf16 %v3004, %v3003
          %v3021 = vpack.c.bf16 %v3006, %v3005
          %v3022 = vpack.c.bf16 %v3008, %v3007
          %v3023 = vpack.c.bf16 %v3010, %v3009
          %3037 = vrot.lane.b32.xlu0 %v2933, 64
          %v3038 = vpop.permute.xlu0 %3037
          %3039 = vrot.lane.b32.xlu0 %v2934, 64
          %v3040 = vpop.permute.xlu0 %3039
          %3041 = vrot.lane.b32.xlu0 %v2935, 64
          %v3042 = vpop.permute.xlu0 %3041
          %3043 = vrot.lane.b32.xlu0 %v2936, 64
          %v3044 = vpop.permute.xlu0 %3043
          %3045 = vrot.lane.b32.xlu0 %v2937, 64
          %v3046 = vpop.permute.xlu0 %3045
          %3047 = vrot.lane.b32.xlu0 %v2938, 64
          %v3048 = vpop.permute.xlu0 %3047
          %3049 = vrot.lane.b32.xlu0 %v2939, 64
          %v3050 = vpop.permute.xlu0 %3049
          %3051 = vrot.lane.b32.xlu0 %v2940, 64
          %v3052 = vpop.permute.xlu0 %3051
          %3053 = vrot.lane.b32.xlu0 %v2941, 64
          %v3054 = vpop.permute.xlu0 %3053
          %3055 = vrot.lane.b32.xlu0 %v2942, 64
          %v3056 = vpop.permute.xlu0 %3055
          %3057 = vrot.lane.b32.xlu0 %v2943, 64
          %v3058 = vpop.permute.xlu0 %3057
          %3059 = vrot.lane.b32.xlu0 %v2944, 64
          %v3060 = vpop.permute.xlu0 %3059
          %3061 = vrot.lane.b32.xlu0 %v2945, 64
          %v3062 = vpop.permute.xlu0 %3061
          %3076 = vrot.lane.b32.xlu0 %v3011, 64
          %v3077 = vpop.permute.xlu0 %3076
          %3078 = vrot.lane.b32.xlu0 %v3012, 64
          %v3079 = vpop.permute.xlu0 %3078
          %3080 = vrot.lane.b32.xlu0 %v3013, 64
          %v3081 = vpop.permute.xlu0 %3080
          %3082 = vrot.lane.b32.xlu0 %v3014, 64
          %v3083 = vpop.permute.xlu0 %3082
          %3084 = vrot.lane.b32.xlu0 %v3015, 64
          %v3085 = vpop.permute.xlu0 %3084
          %3086 = vrot.lane.b32.xlu0 %v3016, 64
          %v3087 = vpop.permute.xlu0 %3086
          %3088 = vrot.lane.b32.xlu0 %v3017, 64
          %v3089 = vpop.permute.xlu0 %3088
          %3090 = vrot.lane.b32.xlu0 %v3018, 64
          %v3091 = vpop.permute.xlu0 %3090
          %3092 = vrot.lane.b32.xlu0 %v3019, 64
          %v3093 = vpop.permute.xlu0 %3092
          %3094 = vrot.lane.b32.xlu0 %v3020, 64
          %v3095 = vpop.permute.xlu0 %3094
          %3096 = vrot.lane.b32.xlu0 %v3021, 64
          %v3097 = vpop.permute.xlu0 %3096
          %3098 = vrot.lane.b32.xlu0 %v3022, 64
          %v3099 = vpop.permute.xlu0 %3098
          %3100 = vrot.lane.b32.xlu0 %v3023, 64
          %v3101 = vpop.permute.xlu0 %3100
          %v3104 = vsel %vm780, %v2894, %v3038
          %v3108 = vsel %vm780, %v2895, %v3040
          %v3112 = vsel %vm780, %v2896, %v3042
          %v3116 = vsel %vm780, %v2897, %v3044
          %v3120 = vsel %vm780, %v2898, %v3046
          %v3124 = vsel %vm780, %v2899, %v3048
          %v3128 = vsel %vm780, %v2900, %v3050
          %v3132 = vsel %vm780, %v2901, %v3052
          %v3136 = vsel %vm780, %v2902, %v3054
          %v3140 = vsel %vm780, %v2903, %v3056
          %v3144 = vsel %vm780, %v2904, %v3058
          %v3148 = vsel %vm780, %v2905, %v3060
          %v3152 = vsel %vm780, %v2906, %v3062
          %v3156 = vsel %vm780, %v2972, %v3077
          %v3160 = vsel %vm780, %v2973, %v3079
          %v3164 = vsel %vm780, %v2974, %v3081
          %v3168 = vsel %vm780, %v2975, %v3083
          %v3172 = vsel %vm780, %v2976, %v3085
          %v3176 = vsel %vm780, %v2977, %v3087
          %v3180 = vsel %vm780, %v2978, %v3089
          %v3184 = vsel %vm780, %v2979, %v3091
          %v3188 = vsel %vm780, %v2980, %v3093
          %v3192 = vsel %vm780, %v2981, %v3095
          %v3196 = vsel %vm780, %v2982, %v3097
          %v3200 = vsel %vm780, %v2983, %v3099
          %v3204 = vsel %vm780, %v2984, %v3101
          %s3206 = scalar_lea.vmem %s3, 256
          %v3207 = vld [vmem:[%s3206] sm:$0xf]
          %v3208 = vld [vmem:[%s3206 + $0x4] sm:$0xf]
          %v3209 = vld [vmem:[%s3206 + $0x8] sm:$0xf]
          %v3210 = vld [vmem:[%s3206 + $0xc] sm:$0xf]
          %v3211 = vld [vmem:[%s3206 + $0x10] sm:$0xf]
          %v3212 = vld [vmem:[%s3206 + $0x14] sm:$0xf]
          %v3213 = vld [vmem:[%s3206 + $0x18] sm:$0xf]
          %v3214 = vld [vmem:[%s3206 + $0x1c] sm:$0xf]
          %v3215 = vld [vmem:[%s3206 + $0x20] sm:$0xf]
          %v3216 = vld [vmem:[%s3206 + $0x24] sm:$0xf]
          %v3217 = vld [vmem:[%s3206 + $0x28] sm:$0xf]
          %v3218 = vld [vmem:[%s3206 + $0x2c] sm:$0xf]
          %v3219 = vld [vmem:[%s3206 + $0x30] sm:$0xf]
          %v3220 = vld [vmem:[%s3206 + $0x34] sm:$0xf]
          %v3221 = vld [vmem:[%s3206 + $0x38] sm:$0xf]
          %v3222 = vld [vmem:[%s3206 + $0x3c] sm:$0xf]
          %v3223 = vld [vmem:[%s3206 + $0x40] sm:$0xf]
          %v3224 = vld [vmem:[%s3206 + $0x44] sm:$0xf]
          %v3225 = vld [vmem:[%s3206 + $0x48] sm:$0xf]
          %v3226 = vld [vmem:[%s3206 + $0x4c] sm:$0xf]
          %v3227 = vld [vmem:[%s3206 + $0x50] sm:$0xf]
          %v3228 = vld [vmem:[%s3206 + $0x54] sm:$0xf]
          %v3229 = vld [vmem:[%s3206 + $0x58] sm:$0xf]
          %v3230 = vld [vmem:[%s3206 + $0x5c] sm:$0xf]
          %v3231 = vld [vmem:[%s3206 + $0x60] sm:$0xf]
          %v3232 = vld [vmem:[%s3206 + $0x64] sm:$0xf]
          %v3233 = vld [vmem:[%s3206 + $0x68] sm:$0xf]
          %v3234 = vld [vmem:[%s3206 + $0x6c] sm:$0xf]
          %v3235 = vld [vmem:[%s3206 + $0x70] sm:$0xf]
          %v3236 = vld [vmem:[%s3206 + $0x74] sm:$0xf]
          %v3237 = vld [vmem:[%s3206 + $0x78] sm:$0xf]
          %v3238 = vld [vmem:[%s3206 + $0x7c] sm:$0xf]
          %v3271 = vunpack.c.l.b16 %v3207
          %v3272 = vunpack.c.l.b16 %v3208
          %v3273 = vunpack.c.l.b16 %v3209
          %v3274 = vunpack.c.l.b16 %v3210
          %v3275 = vunpack.c.l.b16 %v3211
          %v3276 = vunpack.c.l.b16 %v3212
          %v3277 = vunpack.c.l.b16 %v3213
          %v3278 = vunpack.c.l.b16 %v3214
          %v3279 = vunpack.c.l.b16 %v3215
          %v3280 = vunpack.c.l.b16 %v3216
          %v3281 = vunpack.c.l.b16 %v3217
          %v3282 = vunpack.c.l.b16 %v3218
          %v3283 = vunpack.c.l.b16 %v3219
          %v3284 = vunpack.c.l.b16 %v3220
          %v3285 = vunpack.c.l.b16 %v3221
          %v3286 = vunpack.c.l.b16 %v3222
          %v3287 = vunpack.c.l.b16 %v3223
          %v3288 = vunpack.c.l.b16 %v3224
          %v3289 = vunpack.c.l.b16 %v3225
          %v3290 = vunpack.c.l.b16 %v3226
          %v3291 = vunpack.c.l.b16 %v3227
          %v3292 = vunpack.c.l.b16 %v3228
          %v3293 = vunpack.c.l.b16 %v3229
          %v3294 = vunpack.c.l.b16 %v3230
          %v3295 = vunpack.c.l.b16 %v3231
          %v3296 = vunpack.c.l.b16 %v3232
          %v3297 = vunpack.c.l.b16 %v3233
          %v3298 = vunpack.c.l.b16 %v3234
          %v3299 = vunpack.c.l.b16 %v3235
          %v3300 = vunpack.c.l.b16 %v3236
          %v3301 = vunpack.c.l.b16 %v3237
          %v3302 = vunpack.c.l.b16 %v3238
          %v3303 = vpack.c.b16 %v3272, %v3271
          %v3304 = vpack.c.b16 %v3274, %v3273
          %v3305 = vpack.c.b16 %v3276, %v3275
          %v3306 = vpack.c.b16 %v3278, %v3277
          %v3307 = vpack.c.b16 %v3280, %v3279
          %v3308 = vpack.c.b16 %v3282, %v3281
          %v3309 = vpack.c.b16 %v3284, %v3283
          %v3310 = vpack.c.b16 %v3286, %v3285
          %v3311 = vpack.c.b16 %v3288, %v3287
          %v3312 = vpack.c.b16 %v3290, %v3289
          %v3313 = vpack.c.b16 %v3292, %v3291
          %v3314 = vpack.c.b16 %v3294, %v3293
          %v3315 = vpack.c.b16 %v3296, %v3295
          %v3316 = vpack.c.b16 %v3298, %v3297
          %v3317 = vpack.c.b16 %v3300, %v3299
          %v3318 = vpack.c.b16 %v3302, %v3301
          %3335 = vmatprep.subr.bf16.mxu0 0
          %3336 = vmatpush1.bf16.msra.mxu0 %v3303
          %3337 = vmatprep.subr.bf16.mxu0 0
          %3338 = vmatpush1.bf16.msra.mxu0 %v3304
          %3339 = vmatprep.subr.bf16.mxu0 0
          %3340 = vmatpush1.bf16.msra.mxu0 %v3305
          %3341 = vmatprep.subr.bf16.mxu0 0
          %3342 = vmatpush1.bf16.msra.mxu0 %v3306
          %3343 = vmatprep.subr.bf16.mxu0 0
          %3344 = vmatpush1.bf16.msra.mxu0 %v3307
          %3345 = vmatprep.subr.bf16.mxu0 0
          %3346 = vmatpush1.bf16.msra.mxu0 %v3308
          %3347 = vmatprep.subr.bf16.mxu0 0
          %3348 = vmatpush1.bf16.msra.mxu0 %v3309
          %3349 = vmatprep.subr.bf16.mxu0 0
          %3350 = vmatpush1.bf16.msra.mxu0 %v3310
          %3351 = vmatprep.subr.bf16.mxu0 0
          %3352 = vmatpush1.bf16.msra.mxu0 %v3311
          %3353 = vmatprep.subr.bf16.mxu0 0
          %3354 = vmatpush1.bf16.msra.mxu0 %v3312
          %3355 = vmatprep.subr.bf16.mxu0 0
          %3356 = vmatpush1.bf16.msra.mxu0 %v3313
          %3357 = vmatprep.subr.bf16.mxu0 0
          %3358 = vmatpush1.bf16.msra.mxu0 %v3314
          %3359 = vmatprep.subr.bf16.mxu0 0
          %3360 = vmatpush1.bf16.msra.mxu0 %v3315
          %3361 = vmatprep.subr.bf16.mxu0 0
          %3362 = vmatpush1.bf16.msra.mxu0 %v3316
          %3363 = vmatprep.subr.bf16.mxu0 0
          %3364 = vmatpush1.bf16.msra.mxu0 %v3317
          %3365 = vmatprep.subr.bf16.mxu0 0
          %3366 = vmatpush1.bf16.msra.mxu0 %v3318
          %3367 = vmatprep.mubr.bf16.mxu0 %v3156
          %3368 = vmatmul.mubr.bf16.gmra.mrb[0].mxu0 %v3104
          %v3369 = vpop.f32.mrb[0].mxu0
          %v3370 = vadd.f32 0.0, %v3369
          %v3371 = vpop.f32.mrb[0].mxu0
          %v3372 = vpop.f32.mrb[0].mxu0
          %v3373 = vadd.f32 0.0, %v3372
          %v3374 = vpop.f32.mrb[0].mxu0
          %3375 = vmatprep.mubr.bf16.mxu0 %v3160
          %3376 = vmatmul.mubr.bf16.gmra.mrb[0].mxu0 %v3108
          %v3377 = vpop.f32.mrb[0].mxu0
          %v3378 = vadd.f32 0.0, %v3377
          %v3379 = vpop.f32.mrb[0].mxu0
          %v3380 = vpop.f32.mrb[0].mxu0
          %v3381 = vadd.f32 0.0, %v3380
          %v3382 = vpop.f32.mrb[0].mxu0
          %3383 = vmatprep.mubr.bf16.mxu0 %v3164
          %3384 = vmatmul.mubr.bf16.gmra.mrb[0].mxu0 %v3112
          %v3385 = vpop.f32.mrb[0].mxu0
          %v3386 = vadd.f32 0.0, %v3385
          %v3387 = vpop.f32.mrb[0].mxu0
          %v3388 = vpop.f32.mrb[0].mxu0
          %v3389 = vadd.f32 0.0, %v3388
          %v3390 = vpop.f32.mrb[0].mxu0
          %3391 = vmatprep.mubr.bf16.mxu0 %v3168
          %3392 = vmatmul.mubr.bf16.gmra.mrb[0].mxu0 %v3116
          %v3393 = vpop.f32.mrb[0].mxu0
          %v3394 = vadd.f32 0.0, %v3393
          %v3395 = vpop.f32.mrb[0].mxu0
          %v3396 = vpop.f32.mrb[0].mxu0
          %v3397 = vadd.f32 0.0, %v3396
          %v3398 = vpop.f32.mrb[0].mxu0
          %3399 = vmatprep.mubr.bf16.mxu0 %v3172
          %3400 = vmatmul.mubr.bf16.gmra.mrb[0].mxu0 %v3120
          %v3401 = vpop.f32.mrb[0].mxu0
          %v3402 = vadd.f32 0.0, %v3401
          %v3403 = vpop.f32.mrb[0].mxu0
          %v3404 = vpop.f32.mrb[0].mxu0
          %v3405 = vadd.f32 0.0, %v3404
          %v3406 = vpop.f32.mrb[0].mxu0
          %3407 = vmatprep.mubr.bf16.mxu0 %v3176
          %3408 = vmatmul.mubr.bf16.gmra.mrb[0].mxu0 %v3124
          %v3409 = vpop.f32.mrb[0].mxu0
          %v3410 = vadd.f32 0.0, %v3409
          %v3411 = vpop.f32.mrb[0].mxu0
          %v3412 = vpop.f32.mrb[0].mxu0
          %v3413 = vadd.f32 0.0, %v3412
          %v3414 = vpop.f32.mrb[0].mxu0
          %3415 = vmatprep.mubr.bf16.mxu0 %v3180
          %3416 = vmatmul.mubr.bf16.gmra.mrb[0].mxu0 %v3128
          %v3417 = vpop.f32.mrb[0].mxu0
          %v3418 = vadd.f32 0.0, %v3417
          %v3419 = vpop.f32.mrb[0].mxu0
          %v3420 = vpop.f32.mrb[0].mxu0
          %v3421 = vadd.f32 0.0, %v3420
          %v3422 = vpop.f32.mrb[0].mxu0
          %3423 = vmatprep.mubr.bf16.mxu0 %v3184
          %3424 = vmatmul.mubr.bf16.gmra.mrb[0].mxu0 %v3132
          %v3425 = vpop.f32.mrb[0].mxu0
          %v3426 = vadd.f32 0.0, %v3425
          %v3427 = vpop.f32.mrb[0].mxu0
          %v3428 = vpop.f32.mrb[0].mxu0
          %v3429 = vadd.f32 0.0, %v3428
          %v3430 = vpop.f32.mrb[0].mxu0
          %3431 = vmatprep.mubr.bf16.mxu0 %v3188
          %3432 = vmatmul.mubr.bf16.gmra.mrb[0].mxu0 %v3136
          %v3433 = vpop.f32.mrb[0].mxu0
          %v3434 = vadd.f32 0.0, %v3433
          %v3435 = vpop.f32.mrb[0].mxu0
          %v3436 = vpop.f32.mrb[0].mxu0
          %v3437 = vadd.f32 0.0, %v3436
          %v3438 = vpop.f32.mrb[0].mxu0
          %3439 = vmatprep.mubr.bf16.mxu0 %v3192
          %3440 = vmatmul.mubr.bf16.gmra.mrb[0].mxu0 %v3140
          %v3441 = vpop.f32.mrb[0].mxu0
          %v3442 = vadd.f32 0.0, %v3441
          %v3443 = vpop.f32.mrb[0].mxu0
          %v3444 = vpop.f32.mrb[0].mxu0
          %v3445 = vadd.f32 0.0, %v3444
          %v3446 = vpop.f32.mrb[0].mxu0
          %3447 = vmatprep.mubr.bf16.mxu0 %v3196
          %3448 = vmatmul.mubr.bf16.gmra.mrb[0].mxu0 %v3144
          %v3449 = vpop.f32.mrb[0].mxu0
          %v3450 = vadd.f32 0.0, %v3449
          %v3451 = vpop.f32.mrb[0].mxu0
          %v3452 = vpop.f32.mrb[0].mxu0
          %v3453 = vadd.f32 0.0, %v3452
          %v3454 = vpop.f32.mrb[0].mxu0
          %3455 = vmatprep.mubr.bf16.mxu0 %v3200
          %3456 = vmatmul.mubr.bf16.gmra.mrb[0].mxu0 %v3148
          %v3457 = vpop.f32.mrb[0].mxu0
          %v3458 = vadd.f32 0.0, %v3457
          %v3459 = vpop.f32.mrb[0].mxu0
          %v3460 = vpop.f32.mrb[0].mxu0
          %v3461 = vadd.f32 0.0, %v3460
          %v3462 = vpop.f32.mrb[0].mxu0
          %3463 = vmatprep.mubr.bf16.mxu0 %v3204
          %3464 = vmatmul.mubr.bf16.gmra.mrb[0].mxu0 %v3152
          %v3465 = vpop.f32.mrb[0].mxu0
          %v3466 = vadd.f32 0.0, %v3465
          %v3467 = vpop.f32.mrb[0].mxu0
          %v3468 = vpop.f32.mrb[0].mxu0
          %v3469 = vadd.f32 0.0, %v3468
          %v3470 = vpop.f32.mrb[0].mxu0
          %3471 = vdwg.mxu0
          %v3472 = vadd.f32 %v2766, %v3370
          %v3473 = vadd.f32 %v2769, %v3373
          %v3474 = vadd.f32 %v2774, %v3378
          %v3475 = vadd.f32 %v2777, %v3381
          %v3476 = vadd.f32 %v2782, %v3386
          %v3477 = vadd.f32 %v2785, %v3389
          %v3478 = vadd.f32 %v2790, %v3394
          %v3479 = vadd.f32 %v2793, %v3397
          %v3480 = vadd.f32 %v2798, %v3402
          %v3481 = vadd.f32 %v2801, %v3405
          %v3482 = vadd.f32 %v2806, %v3410
          %v3483 = vadd.f32 %v2809, %v3413
          %v3484 = vadd.f32 %v2814, %v3418
          %v3485 = vadd.f32 %v2817, %v3421
          %v3486 = vadd.f32 %v2822, %v3426
          %v3487 = vadd.f32 %v2825, %v3429
          %v3488 = vadd.f32 %v2830, %v3434
          %v3489 = vadd.f32 %v2833, %v3437
          %v3490 = vadd.f32 %v2838, %v3442
          %v3491 = vadd.f32 %v2841, %v3445
          %v3492 = vadd.f32 %v2846, %v3450
          %v3493 = vadd.f32 %v2849, %v3453
          %v3494 = vadd.f32 %v2854, %v3458
          %v3495 = vadd.f32 %v2857, %v3461
          %v3496 = vadd.f32 %v2862, %v3466
          %v3497 = vadd.f32 %v2865, %v3469
          %v3498 = vld [vmem:[#allocation3 + $0x30] sm:$0xff]
          %v3499 = vld [vmem:[#allocation3 + $0x38] sm:$0xff]
          %v3500 = vld [vmem:[#allocation3 + $0x40] sm:$0xff]
          %v3501 = vld [vmem:[#allocation3 + $0x48] sm:$0xff]
          %v3502 = vld [vmem:[#allocation3 + $0x50] sm:$0xff]
          %v3503 = vld [vmem:[#allocation3 + $0x58] sm:$0xff]
          %v3504 = vld [vmem:[#allocation3 + $0x60] sm:$0xff]
          %v3505 = vld [vmem:[#allocation3 + $0x68] sm:$0xff]
          %v3506 = vld [vmem:[#allocation3 + $0x70] sm:$0xff]
          %v3507 = vld [vmem:[#allocation3 + $0x78] sm:$0xff]
          %v3508 = vld [vmem:[#allocation3 + $0x80] sm:$0xff]
          %v3509 = vld [vmem:[#allocation3 + $0x88] sm:$0xff]
          %v3510 = vld [vmem:[#allocation3 + $0x90] sm:$0xff]
          %v3511 = vld [vmem:[#allocation3 + $0x98] sm:$0xff]
          %v3512 = vld [vmem:[#allocation3 + $0xa0] sm:$0xff]
          %v3513 = vld [vmem:[#allocation3 + $0xa8] sm:$0xff]
          %v3514 = vld [vmem:[#allocation3 + $0xb0] sm:$0xff]
          %v3515 = vld [vmem:[#allocation3 + $0xb8] sm:$0xff]
          %v3516 = vld [vmem:[#allocation3 + $0xc0] sm:$0xff]
          %v3517 = vld [vmem:[#allocation3 + $0xc8] sm:$0xff]
          %v3518 = vld [vmem:[#allocation3 + $0xd0] sm:$0xff]
          %v3519 = vld [vmem:[#allocation3 + $0xd8] sm:$0xff]
          %v3520 = vld [vmem:[#allocation3 + $0xe0] sm:$0xff]
          %v3521 = vld [vmem:[#allocation3 + $0xe8] sm:$0xff]
          %v3522 = vld [vmem:[#allocation3 + $0xf0] sm:$0xff]
          %v3523 = vld [vmem:[#allocation3 + $0xf8] sm:$0xff]
          %v3524 = vpack.c.bf16 %v3499, %v3498
          %v3525 = vpack.c.bf16 %v3501, %v3500
          %v3526 = vpack.c.bf16 %v3503, %v3502
          %v3527 = vpack.c.bf16 %v3505, %v3504
          %v3528 = vpack.c.bf16 %v3507, %v3506
          %v3529 = vpack.c.bf16 %v3509, %v3508
          %v3530 = vpack.c.bf16 %v3511, %v3510
          %v3531 = vpack.c.bf16 %v3513, %v3512
          %v3532 = vpack.c.bf16 %v3515, %v3514
          %v3533 = vpack.c.bf16 %v3517, %v3516
          %v3534 = vpack.c.bf16 %v3519, %v3518
          %v3535 = vpack.c.bf16 %v3521, %v3520
          %v3536 = vpack.c.bf16 %v3523, %v3522
          %v3537 = vld [vmem:[#allocation3 + $0x31] sm:$0xff]
          %v3538 = vld [vmem:[#allocation3 + $0x39] sm:$0xff]
          %v3539 = vld [vmem:[#allocation3 + $0x41] sm:$0xff]
          %v3540 = vld [vmem:[#allocation3 + $0x49] sm:$0xff]
          %v3541 = vld [vmem:[#allocation3 + $0x51] sm:$0xff]
          %v3542 = vld [vmem:[#allocation3 + $0x59] sm:$0xff]
          %v3543 = vld [vmem:[#allocation3 + $0x61] sm:$0xff]
          %v3544 = vld [vmem:[#allocation3 + $0x69] sm:$0xff]
          %v3545 = vld [vmem:[#allocation3 + $0x71] sm:$0xff]
          %v3546 = vld [vmem:[#allocation3 + $0x79] sm:$0xff]
          %v3547 = vld [vmem:[#allocation3 + $0x81] sm:$0xff]
          %v3548 = vld [vmem:[#allocation3 + $0x89] sm:$0xff]
          %v3549 = vld [vmem:[#allocation3 + $0x91] sm:$0xff]
          %v3550 = vld [vmem:[#allocation3 + $0x99] sm:$0xff]
          %v3551 = vld [vmem:[#allocation3 + $0xa1] sm:$0xff]
          %v3552 = vld [vmem:[#allocation3 + $0xa9] sm:$0xff]
          %v3553 = vld [vmem:[#allocation3 + $0xb1] sm:$0xff]
          %v3554 = vld [vmem:[#allocation3 + $0xb9] sm:$0xff]
          %v3555 = vld [vmem:[#allocation3 + $0xc1] sm:$0xff]
          %v3556 = vld [vmem:[#allocation3 + $0xc9] sm:$0xff]
          %v3557 = vld [vmem:[#allocation3 + $0xd1] sm:$0xff]
          %v3558 = vld [vmem:[#allocation3 + $0xd9] sm:$0xff]
          %v3559 = vld [vmem:[#allocation3 + $0xe1] sm:$0xff]
          %v3560 = vld [vmem:[#allocation3 + $0xe9] sm:$0xff]
          %v3561 = vld [vmem:[#allocation3 + $0xf1] sm:$0xff]
          %v3562 = vld [vmem:[#allocation3 + $0xf9] sm:$0xff]
          %v3563 = vpack.c.bf16 %v3538, %v3537
          %v3564 = vpack.c.bf16 %v3540, %v3539
          %v3565 = vpack.c.bf16 %v3542, %v3541
          %v3566 = vpack.c.bf16 %v3544, %v3543
          %v3567 = vpack.c.bf16 %v3546, %v3545
          %v3568 = vpack.c.bf16 %v3548, %v3547
          %v3569 = vpack.c.bf16 %v3550, %v3549
          %v3570 = vpack.c.bf16 %v3552, %v3551
          %v3571 = vpack.c.bf16 %v3554, %v3553
          %v3572 = vpack.c.bf16 %v3556, %v3555
          %v3573 = vpack.c.bf16 %v3558, %v3557
          %v3574 = vpack.c.bf16 %v3560, %v3559
          %v3575 = vpack.c.bf16 %v3562, %v3561
          %v3576 = vld [vmem:[#allocation3 + $0x32] sm:$0xff]
          %v3577 = vld [vmem:[#allocation3 + $0x3a] sm:$0xff]
          %v3578 = vld [vmem:[#allocation3 + $0x42] sm:$0xff]
          %v3579 = vld [vmem:[#allocation3 + $0x4a] sm:$0xff]
          %v3580 = vld [vmem:[#allocation3 + $0x52] sm:$0xff]
          %v3581 = vld [vmem:[#allocation3 + $0x5a] sm:$0xff]
          %v3582 = vld [vmem:[#allocation3 + $0x62] sm:$0xff]
          %v3583 = vld [vmem:[#allocation3 + $0x6a] sm:$0xff]
          %v3584 = vld [vmem:[#allocation3 + $0x72] sm:$0xff]
          %v3585 = vld [vmem:[#allocation3 + $0x7a] sm:$0xff]
          %v3586 = vld [vmem:[#allocation3 + $0x82] sm:$0xff]
          %v3587 = vld [vmem:[#allocation3 + $0x8a] sm:$0xff]
          %v3588 = vld [vmem:[#allocation3 + $0x92] sm:$0xff]
          %v3589 = vld [vmem:[#allocation3 + $0x9a] sm:$0xff]
          %v3590 = vld [vmem:[#allocation3 + $0xa2] sm:$0xff]
          %v3591 = vld [vmem:[#allocation3 + $0xaa] sm:$0xff]
          %v3592 = vld [vmem:[#allocation3 + $0xb2] sm:$0xff]
          %v3593 = vld [vmem:[#allocation3 + $0xba] sm:$0xff]
          %v3594 = vld [vmem:[#allocation3 + $0xc2] sm:$0xff]
          %v3595 = vld [vmem:[#allocation3 + $0xca] sm:$0xff]
          %v3596 = vld [vmem:[#allocation3 + $0xd2] sm:$0xff]
          %v3597 = vld [vmem:[#allocation3 + $0xda] sm:$0xff]
          %v3598 = vld [vmem:[#allocation3 + $0xe2] sm:$0xff]
          %v3599 = vld [vmem:[#allocation3 + $0xea] sm:$0xff]
          %v3600 = vld [vmem:[#allocation3 + $0xf2] sm:$0xff]
          %v3601 = vld [vmem:[#allocation3 + $0xfa] sm:$0xff]
          %v3602 = vpack.c.bf16 %v3577, %v3576
          %v3603 = vpack.c.bf16 %v3579, %v3578
          %v3604 = vpack.c.bf16 %v3581, %v3580
          %v3605 = vpack.c.bf16 %v3583, %v3582
          %v3606 = vpack.c.bf16 %v3585, %v3584
          %v3607 = vpack.c.bf16 %v3587, %v3586
          %v3608 = vpack.c.bf16 %v3589, %v3588
          %v3609 = vpack.c.bf16 %v3591, %v3590
          %v3610 = vpack.c.bf16 %v3593, %v3592
          %v3611 = vpack.c.bf16 %v3595, %v3594
          %v3612 = vpack.c.bf16 %v3597, %v3596
          %v3613 = vpack.c.bf16 %v3599, %v3598
          %v3614 = vpack.c.bf16 %v3601, %v3600
          %v3615 = vld [vmem:[#allocation3 + $0x33] sm:$0xff]
          %v3616 = vld [vmem:[#allocation3 + $0x3b] sm:$0xff]
          %v3617 = vld [vmem:[#allocation3 + $0x43] sm:$0xff]
          %v3618 = vld [vmem:[#allocation3 + $0x4b] sm:$0xff]
          %v3619 = vld [vmem:[#allocation3 + $0x53] sm:$0xff]
          %v3620 = vld [vmem:[#allocation3 + $0x5b] sm:$0xff]
          %v3621 = vld [vmem:[#allocation3 + $0x63] sm:$0xff]
          %v3622 = vld [vmem:[#allocation3 + $0x6b] sm:$0xff]
          %v3623 = vld [vmem:[#allocation3 + $0x73] sm:$0xff]
          %v3624 = vld [vmem:[#allocation3 + $0x7b] sm:$0xff]
          %v3625 = vld [vmem:[#allocation3 + $0x83] sm:$0xff]
          %v3626 = vld [vmem:[#allocation3 + $0x8b] sm:$0xff]
          %v3627 = vld [vmem:[#allocation3 + $0x93] sm:$0xff]
          %v3628 = vld [vmem:[#allocation3 + $0x9b] sm:$0xff]
          %v3629 = vld [vmem:[#allocation3 + $0xa3] sm:$0xff]
          %v3630 = vld [vmem:[#allocation3 + $0xab] sm:$0xff]
          %v3631 = vld [vmem:[#allocation3 + $0xb3] sm:$0xff]
          %v3632 = vld [vmem:[#allocation3 + $0xbb] sm:$0xff]
          %v3633 = vld [vmem:[#allocation3 + $0xc3] sm:$0xff]
          %v3634 = vld [vmem:[#allocation3 + $0xcb] sm:$0xff]
          %v3635 = vld [vmem:[#allocation3 + $0xd3] sm:$0xff]
          %v3636 = vld [vmem:[#allocation3 + $0xdb] sm:$0xff]
          %v3637 = vld [vmem:[#allocation3 + $0xe3] sm:$0xff]
          %v3638 = vld [vmem:[#allocation3 + $0xeb] sm:$0xff]
          %v3639 = vld [vmem:[#allocation3 + $0xf3] sm:$0xff]
          %v3640 = vld [vmem:[#allocation3 + $0xfb] sm:$0xff]
          %v3641 = vpack.c.bf16 %v3616, %v3615
          %v3642 = vpack.c.bf16 %v3618, %v3617
          %v3643 = vpack.c.bf16 %v3620, %v3619
          %v3644 = vpack.c.bf16 %v3622, %v3621
          %v3645 = vpack.c.bf16 %v3624, %v3623
          %v3646 = vpack.c.bf16 %v3626, %v3625
          %v3647 = vpack.c.bf16 %v3628, %v3627
          %v3648 = vpack.c.bf16 %v3630, %v3629
          %v3649 = vpack.c.bf16 %v3632, %v3631
          %v3650 = vpack.c.bf16 %v3634, %v3633
          %v3651 = vpack.c.bf16 %v3636, %v3635
          %v3652 = vpack.c.bf16 %v3638, %v3637
          %v3653 = vpack.c.bf16 %v3640, %v3639
          %3667 = vrot.lane.b32.xlu0 %v3563, 64
          %v3668 = vpop.permute.xlu0 %3667
          %3669 = vrot.lane.b32.xlu0 %v3564, 64
          %v3670 = vpop.permute.xlu0 %3669
          %3671 = vrot.lane.b32.xlu0 %v3565, 64
          %v3672 = vpop.permute.xlu0 %3671
          %3673 = vrot.lane.b32.xlu0 %v3566, 64
          %v3674 = vpop.permute.xlu0 %3673
          %3675 = vrot.lane.b32.xlu0 %v3567, 64
          %v3676 = vpop.permute.xlu0 %3675
          %3677 = vrot.lane.b32.xlu0 %v3568, 64
          %v3678 = vpop.permute.xlu0 %3677
          %3679 = vrot.lane.b32.xlu0 %v3569, 64
          %v3680 = vpop.permute.xlu0 %3679
          %3681 = vrot.lane.b32.xlu0 %v3570, 64
          %v3682 = vpop.permute.xlu0 %3681
          %3683 = vrot.lane.b32.xlu0 %v3571, 64
          %v3684 = vpop.permute.xlu0 %3683
          %3685 = vrot.lane.b32.xlu0 %v3572, 64
          %v3686 = vpop.permute.xlu0 %3685
          %3687 = vrot.lane.b32.xlu0 %v3573, 64
          %v3688 = vpop.permute.xlu0 %3687
          %3689 = vrot.lane.b32.xlu0 %v3574, 64
          %v3690 = vpop.permute.xlu0 %3689
          %3691 = vrot.lane.b32.xlu0 %v3575, 64
          %v3692 = vpop.permute.xlu0 %3691
          %3706 = vrot.lane.b32.xlu0 %v3641, 64
          %v3707 = vpop.permute.xlu0 %3706
          %3708 = vrot.lane.b32.xlu0 %v3642, 64
          %v3709 = vpop.permute.xlu0 %3708
          %3710 = vrot.lane.b32.xlu0 %v3643, 64
          %v3711 = vpop.permute.xlu0 %3710
          %3712 = vrot.lane.b32.xlu0 %v3644, 64
          %v3713 = vpop.permute.xlu0 %3712
          %3714 = vrot.lane.b32.xlu0 %v3645, 64
          %v3715 = vpop.permute.xlu0 %3714
          %3716 = vrot.lane.b32.xlu0 %v3646, 64
          %v3717 = vpop.permute.xlu0 %3716
          %3718 = vrot.lane.b32.xlu0 %v3647, 64
          %v3719 = vpop.permute.xlu0 %3718
          %3720 = vrot.lane.b32.xlu0 %v3648, 64
          %v3721 = vpop.permute.xlu0 %3720
          %3722 = vrot.lane.b32.xlu0 %v3649, 64
          %v3723 = vpop.permute.xlu0 %3722
          %3724 = vrot.lane.b32.xlu0 %v3650, 64
          %v3725 = vpop.permute.xlu0 %3724
          %3726 = vrot.lane.b32.xlu0 %v3651, 64
          %v3727 = vpop.permute.xlu0 %3726
          %3728 = vrot.lane.b32.xlu0 %v3652, 64
          %v3729 = vpop.permute.xlu0 %3728
          %3730 = vrot.lane.b32.xlu0 %v3653, 64
          %v3731 = vpop.permute.xlu0 %3730
          %v3734 = vsel %vm780, %v3524, %v3668
          %v3738 = vsel %vm780, %v3525, %v3670
          %v3742 = vsel %vm780, %v3526, %v3672
          %v3746 = vsel %vm780, %v3527, %v3674
          %v3750 = vsel %vm780, %v3528, %v3676
          %v3754 = vsel %vm780, %v3529, %v3678
          %v3758 = vsel %vm780, %v3530, %v3680
          %v3762 = vsel %vm780, %v3531, %v3682
          %v3766 = vsel %vm780, %v3532, %v3684
          %v3770 = vsel %vm780, %v3533, %v3686
          %v3774 = vsel %vm780, %v3534, %v3688
          %v3778 = vsel %vm780, %v3535, %v3690
          %v3782 = vsel %vm780, %v3536, %v3692
          %v3786 = vsel %vm780, %v3602, %v3707
          %v3790 = vsel %vm780, %v3603, %v3709
          %v3794 = vsel %vm780, %v3604, %v3711
          %v3798 = vsel %vm780, %v3605, %v3713
          %v3802 = vsel %vm780, %v3606, %v3715
          %v3806 = vsel %vm780, %v3607, %v3717
          %v3810 = vsel %vm780, %v3608, %v3719
          %v3814 = vsel %vm780, %v3609, %v3721
          %v3818 = vsel %vm780, %v3610, %v3723
          %v3822 = vsel %vm780, %v3611, %v3725
          %v3826 = vsel %vm780, %v3612, %v3727
          %v3830 = vsel %vm780, %v3613, %v3729
          %v3834 = vsel %vm780, %v3614, %v3731
          %s3836 = scalar_lea.vmem %s3, 384
          %v3837 = vld [vmem:[%s3836] sm:$0xf]
          %v3838 = vld [vmem:[%s3836 + $0x4] sm:$0xf]
          %v3839 = vld [vmem:[%s3836 + $0x8] sm:$0xf]
          %v3840 = vld [vmem:[%s3836 + $0xc] sm:$0xf]
          %v3841 = vld [vmem:[%s3836 + $0x10] sm:$0xf]
          %v3842 = vld [vmem:[%s3836 + $0x14] sm:$0xf]
          %v3843 = vld [vmem:[%s3836 + $0x18] sm:$0xf]
          %v3844 = vld [vmem:[%s3836 + $0x1c] sm:$0xf]
          %v3845 = vld [vmem:[%s3836 + $0x20] sm:$0xf]
          %v3846 = vld [vmem:[%s3836 + $0x24] sm:$0xf]
          %v3847 = vld [vmem:[%s3836 + $0x28] sm:$0xf]
          %v3848 = vld [vmem:[%s3836 + $0x2c] sm:$0xf]
          %v3849 = vld [vmem:[%s3836 + $0x30] sm:$0xf]
          %v3850 = vld [vmem:[%s3836 + $0x34] sm:$0xf]
          %v3851 = vld [vmem:[%s3836 + $0x38] sm:$0xf]
          %v3852 = vld [vmem:[%s3836 + $0x3c] sm:$0xf]
          %v3853 = vld [vmem:[%s3836 + $0x40] sm:$0xf]
          %v3854 = vld [vmem:[%s3836 + $0x44] sm:$0xf]
          %v3855 = vld [vmem:[%s3836 + $0x48] sm:$0xf]
          %v3856 = vld [vmem:[%s3836 + $0x4c] sm:$0xf]
          %v3857 = vld [vmem:[%s3836 + $0x50] sm:$0xf]
          %v3858 = vld [vmem:[%s3836 + $0x54] sm:$0xf]
          %v3859 = vld [vmem:[%s3836 + $0x58] sm:$0xf]
          %v3860 = vld [vmem:[%s3836 + $0x5c] sm:$0xf]
          %v3861 = vld [vmem:[%s3836 + $0x60] sm:$0xf]
          %v3862 = vld [vmem:[%s3836 + $0x64] sm:$0xf]
          %v3863 = vld [vmem:[%s3836 + $0x68] sm:$0xf]
          %v3864 = vld [vmem:[%s3836 + $0x6c] sm:$0xf]
          %v3865 = vld [vmem:[%s3836 + $0x70] sm:$0xf]
          %v3866 = vld [vmem:[%s3836 + $0x74] sm:$0xf]
          %v3867 = vld [vmem:[%s3836 + $0x78] sm:$0xf]
          %v3868 = vld [vmem:[%s3836 + $0x7c] sm:$0xf]
          %v3901 = vunpack.c.l.b16 %v3837
          %v3902 = vunpack.c.l.b16 %v3838
          %v3903 = vunpack.c.l.b16 %v3839
          %v3904 = vunpack.c.l.b16 %v3840
          %v3905 = vunpack.c.l.b16 %v3841
          %v3906 = vunpack.c.l.b16 %v3842
          %v3907 = vunpack.c.l.b16 %v3843
          %v3908 = vunpack.c.l.b16 %v3844
          %v3909 = vunpack.c.l.b16 %v3845
          %v3910 = vunpack.c.l.b16 %v3846
          %v3911 = vunpack.c.l.b16 %v3847
          %v3912 = vunpack.c.l.b16 %v3848
          %v3913 = vunpack.c.l.b16 %v3849
          %v3914 = vunpack.c.l.b16 %v3850
          %v3915 = vunpack.c.l.b16 %v3851
          %v3916 = vunpack.c.l.b16 %v3852
          %v3917 = vunpack.c.l.b16 %v3853
          %v3918 = vunpack.c.l.b16 %v3854
          %v3919 = vunpack.c.l.b16 %v3855
          %v3920 = vunpack.c.l.b16 %v3856
          %v3921 = vunpack.c.l.b16 %v3857
          %v3922 = vunpack.c.l.b16 %v3858
          %v3923 = vunpack.c.l.b16 %v3859
          %v3924 = vunpack.c.l.b16 %v3860
          %v3925 = vunpack.c.l.b16 %v3861
          %v3926 = vunpack.c.l.b16 %v3862
          %v3927 = vunpack.c.l.b16 %v3863
          %v3928 = vunpack.c.l.b16 %v3864
          %v3929 = vunpack.c.l.b16 %v3865
          %v3930 = vunpack.c.l.b16 %v3866
          %v3931 = vunpack.c.l.b16 %v3867
          %v3932 = vunpack.c.l.b16 %v3868
          %v3933 = vpack.c.b16 %v3902, %v3901
          %v3934 = vpack.c.b16 %v3904, %v3903
          %v3935 = vpack.c.b16 %v3906, %v3905
          %v3936 = vpack.c.b16 %v3908, %v3907
          %v3937 = vpack.c.b16 %v3910, %v3909
          %v3938 = vpack.c.b16 %v3912, %v3911
          %v3939 = vpack.c.b16 %v3914, %v3913
          %v3940 = vpack.c.b16 %v3916, %v3915
          %v3941 = vpack.c.b16 %v3918, %v3917
          %v3942 = vpack.c.b16 %v3920, %v3919
          %v3943 = vpack.c.b16 %v3922, %v3921
          %v3944 = vpack.c.b16 %v3924, %v3923
          %v3945 = vpack.c.b16 %v3926, %v3925
          %v3946 = vpack.c.b16 %v3928, %v3927
          %v3947 = vpack.c.b16 %v3930, %v3929
          %v3948 = vpack.c.b16 %v3932, %v3931
          %3965 = vmatprep.subr.bf16.mxu0 0
          %3966 = vmatpush1.bf16.msra.mxu0 %v3933
          %3967 = vmatprep.subr.bf16.mxu0 0
          %3968 = vmatpush1.bf16.msra.mxu0 %v3934
          %3969 = vmatprep.subr.bf16.mxu0 0
          %3970 = vmatpush1.bf16.msra.mxu0 %v3935
          %3971 = vmatprep.subr.bf16.mxu0 0
          %3972 = vmatpush1.bf16.msra.mxu0 %v3936
          %3973 = vmatprep.subr.bf16.mxu0 0
          %3974 = vmatpush1.bf16.msra.mxu0 %v3937
          %3975 = vmatprep.subr.bf16.mxu0 0
          %3976 = vmatpush1.bf16.msra.mxu0 %v3938
          %3977 = vmatprep.subr.bf16.mxu0 0
          %3978 = vmatpush1.bf16.msra.mxu0 %v3939
          %3979 = vmatprep.subr.bf16.mxu0 0
          %3980 = vmatpush1.bf16.msra.mxu0 %v3940
          %3981 = vmatprep.subr.bf16.mxu0 0
          %3982 = vmatpush1.bf16.msra.mxu0 %v3941
          %3983 = vmatprep.subr.bf16.mxu0 0
          %3984 = vmatpush1.bf16.msra.mxu0 %v3942
          %3985 = vmatprep.subr.bf16.mxu0 0
          %3986 = vmatpush1.bf16.msra.mxu0 %v3943
          %3987 = vmatprep.subr.bf16.mxu0 0
          %3988 = vmatpush1.bf16.msra.mxu0 %v3944
          %3989 = vmatprep.subr.bf16.mxu0 0
          %3990 = vmatpush1.bf16.msra.mxu0 %v3945
          %3991 = vmatprep.subr.bf16.mxu0 0
          %3992 = vmatpush1.bf16.msra.mxu0 %v3946
          %3993 = vmatprep.subr.bf16.mxu0 0
          %3994 = vmatpush1.bf16.msra.mxu0 %v3947
          %3995 = vmatprep.subr.bf16.mxu0 0
          %3996 = vmatpush1.bf16.msra.mxu0 %v3948
          %3997 = vmatprep.mubr.bf16.mxu0 %v3786
          %3998 = vmatmul.mubr.bf16.gmra.mrb[0].mxu0 %v3734
          %v3999 = vpop.f32.mrb[0].mxu0
          %v4000 = vadd.f32 0.0, %v3999
          %v4001 = vpop.f32.mrb[0].mxu0
          %v4002 = vpop.f32.mrb[0].mxu0
          %v4003 = vadd.f32 0.0, %v4002
          %v4004 = vpop.f32.mrb[0].mxu0
          %4005 = vmatprep.mubr.bf16.mxu0 %v3790
          %4006 = vmatmul.mubr.bf16.gmra.mrb[0].mxu0 %v3738
          %v4007 = vpop.f32.mrb[0].mxu0
          %v4008 = vadd.f32 0.0, %v4007
          %v4009 = vpop.f32.mrb[0].mxu0
          %v4010 = vpop.f32.mrb[0].mxu0
          %v4011 = vadd.f32 0.0, %v4010
          %v4012 = vpop.f32.mrb[0].mxu0
          %4013 = vmatprep.mubr.bf16.mxu0 %v3794
          %4014 = vmatmul.mubr.bf16.gmra.mrb[0].mxu0 %v3742
          %v4015 = vpop.f32.mrb[0].mxu0
          %v4016 = vadd.f32 0.0, %v4015
          %v4017 = vpop.f32.mrb[0].mxu0
          %v4018 = vpop.f32.mrb[0].mxu0
          %v4019 = vadd.f32 0.0, %v4018
          %v4020 = vpop.f32.mrb[0].mxu0
          %4021 = vmatprep.mubr.bf16.mxu0 %v3798
          %4022 = vmatmul.mubr.bf16.gmra.mrb[0].mxu0 %v3746
          %v4023 = vpop.f32.mrb[0].mxu0
          %v4024 = vadd.f32 0.0, %v4023
          %v4025 = vpop.f32.mrb[0].mxu0
          %v4026 = vpop.f32.mrb[0].mxu0
          %v4027 = vadd.f32 0.0, %v4026
          %v4028 = vpop.f32.mrb[0].mxu0
          %4029 = vmatprep.mubr.bf16.mxu0 %v3802
          %4030 = vmatmul.mubr.bf16.gmra.mrb[0].mxu0 %v3750
          %v4031 = vpop.f32.mrb[0].mxu0
          %v4032 = vadd.f32 0.0, %v4031
          %v4033 = vpop.f32.mrb[0].mxu0
          %v4034 = vpop.f32.mrb[0].mxu0
          %v4035 = vadd.f32 0.0, %v4034
          %v4036 = vpop.f32.mrb[0].mxu0
          %4037 = vmatprep.mubr.bf16.mxu0 %v3806
          %4038 = vmatmul.mubr.bf16.gmra.mrb[0].mxu0 %v3754
          %v4039 = vpop.f32.mrb[0].mxu0
          %v4040 = vadd.f32 0.0, %v4039
          %v4041 = vpop.f32.mrb[0].mxu0
          %v4042 = vpop.f32.mrb[0].mxu0
          %v4043 = vadd.f32 0.0, %v4042
          %v4044 = vpop.f32.mrb[0].mxu0
          %4045 = vmatprep.mubr.bf16.mxu0 %v3810
          %4046 = vmatmul.mubr.bf16.gmra.mrb[0].mxu0 %v3758
          %v4047 = vpop.f32.mrb[0].mxu0
          %v4048 = vadd.f32 0.0, %v4047
          %v4049 = vpop.f32.mrb[0].mxu0
          %v4050 = vpop.f32.mrb[0].mxu0
          %v4051 = vadd.f32 0.0, %v4050
          %v4052 = vpop.f32.mrb[0].mxu0
          %4053 = vmatprep.mubr.bf16.mxu0 %v3814
          %4054 = vmatmul.mubr.bf16.gmra.mrb[0].mxu0 %v3762
          %v4055 = vpop.f32.mrb[0].mxu0
          %v4056 = vadd.f32 0.0, %v4055
          %v4057 = vpop.f32.mrb[0].mxu0
          %v4058 = vpop.f32.mrb[0].mxu0
          %v4059 = vadd.f32 0.0, %v4058
          %v4060 = vpop.f32.mrb[0].mxu0
          %4061 = vmatprep.mubr.bf16.mxu0 %v3818
          %4062 = vmatmul.mubr.bf16.gmra.mrb[0].mxu0 %v3766
          %v4063 = vpop.f32.mrb[0].mxu0
          %v4064 = vadd.f32 0.0, %v4063
          %v4065 = vpop.f32.mrb[0].mxu0
          %v4066 = vpop.f32.mrb[0].mxu0
          %v4067 = vadd.f32 0.0, %v4066
          %v4068 = vpop.f32.mrb[0].mxu0
          %4069 = vmatprep.mubr.bf16.mxu0 %v3822
          %4070 = vmatmul.mubr.bf16.gmra.mrb[0].mxu0 %v3770
          %v4071 = vpop.f32.mrb[0].mxu0
          %v4072 = vadd.f32 0.0, %v4071
          %v4073 = vpop.f32.mrb[0].mxu0
          %v4074 = vpop.f32.mrb[0].mxu0
          %v4075 = vadd.f32 0.0, %v4074
          %v4076 = vpop.f32.mrb[0].mxu0
          %4077 = vmatprep.mubr.bf16.mxu0 %v3826
          %4078 = vmatmul.mubr.bf16.gmra.mrb[0].mxu0 %v3774
          %v4079 = vpop.f32.mrb[0].mxu0
          %v4080 = vadd.f32 0.0, %v4079
          %v4081 = vpop.f32.mrb[0].mxu0
          %v4082 = vpop.f32.mrb[0].mxu0
          %v4083 = vadd.f32 0.0, %v4082
          %v4084 = vpop.f32.mrb[0].mxu0
          %4085 = vmatprep.mubr.bf16.mxu0 %v3830
          %4086 = vmatmul.mubr.bf16.gmra.mrb[0].mxu0 %v3778
          %v4087 = vpop.f32.mrb[0].mxu0
          %v4088 = vadd.f32 0.0, %v4087
          %v4089 = vpop.f32.mrb[0].mxu0
          %v4090 = vpop.f32.mrb[0].mxu0
          %v4091 = vadd.f32 0.0, %v4090
          %v4092 = vpop.f32.mrb[0].mxu0
          %4093 = vmatprep.mubr.bf16.mxu0 %v3834
          %4094 = vmatmul.mubr.bf16.gmra.mrb[0].mxu0 %v3782
          %v4095 = vpop.f32.mrb[0].mxu0
          %v4096 = vadd.f32 0.0, %v4095
          %v4097 = vpop.f32.mrb[0].mxu0
          %v4098 = vpop.f32.mrb[0].mxu0
          %v4099 = vadd.f32 0.0, %v4098
          %v4100 = vpop.f32.mrb[0].mxu0
          %4101 = vdwg.mxu0
          %v4102 = vadd.f32 %v3472, %v4000
          %v4103 = vadd.f32 %v3473, %v4003
          %v4104 = vadd.f32 %v3474, %v4008
          %v4105 = vadd.f32 %v3475, %v4011
          %v4106 = vadd.f32 %v3476, %v4016
          %v4107 = vadd.f32 %v3477, %v4019
          %v4108 = vadd.f32 %v3478, %v4024
          %v4109 = vadd.f32 %v3479, %v4027
          %v4110 = vadd.f32 %v3480, %v4032
          %v4111 = vadd.f32 %v3481, %v4035
          %v4112 = vadd.f32 %v3482, %v4040
          %v4113 = vadd.f32 %v3483, %v4043
          %v4114 = vadd.f32 %v3484, %v4048
          %v4115 = vadd.f32 %v3485, %v4051
          %v4116 = vadd.f32 %v3486, %v4056
          %v4117 = vadd.f32 %v3487, %v4059
          %v4118 = vadd.f32 %v3488, %v4064
          %v4119 = vadd.f32 %v3489, %v4067
          %v4120 = vadd.f32 %v3490, %v4072
          %v4121 = vadd.f32 %v3491, %v4075
          %v4122 = vadd.f32 %v3492, %v4080
          %v4123 = vadd.f32 %v3493, %v4083
          %v4124 = vadd.f32 %v3494, %v4088
          %v4125 = vadd.f32 %v3495, %v4091
          %v4126 = vadd.f32 %v3496, %v4096
          %v4127 = vadd.f32 %v3497, %v4099
          %4128 = vst.msk [vmem:[#allocation4] sm:$0xff] %vm780, %v4102
          %4129 = vst.msk [vmem:[#allocation4 + $0x8] sm:$0xff] %vm780, %v4103
          %4130 = vst.msk [vmem:[#allocation4 + $0x10] sm:$0xff] %vm780, %v4104
          %4131 = vst.msk [vmem:[#allocation4 + $0x18] sm:$0xff] %vm780, %v4105
          %4132 = vst.msk [vmem:[#allocation4 + $0x20] sm:$0xff] %vm780, %v4106
          %4133 = vst.msk [vmem:[#allocation4 + $0x28] sm:$0xff] %vm780, %v4107
          %4134 = vst.msk [vmem:[#allocation4 + $0x30] sm:$0xff] %vm780, %v4108
          %4135 = vst.msk [vmem:[#allocation4 + $0x38] sm:$0xff] %vm780, %v4109
          %4136 = vst.msk [vmem:[#allocation4 + $0x40] sm:$0xff] %vm780, %v4110
          %4137 = vst.msk [vmem:[#allocation4 + $0x48] sm:$0xff] %vm780, %v4111
          %4138 = vst.msk [vmem:[#allocation4 + $0x50] sm:$0xff] %vm780, %v4112
          %4139 = vst.msk [vmem:[#allocation4 + $0x58] sm:$0xff] %vm780, %v4113
          %4140 = vst.msk [vmem:[#allocation4 + $0x60] sm:$0xff] %vm780, %v4114
          %4141 = vst.msk [vmem:[#allocation4 + $0x68] sm:$0xff] %vm780, %v4115
          %4142 = vst.msk [vmem:[#allocation4 + $0x70] sm:$0xff] %vm780, %v4116
          %4143 = vst.msk [vmem:[#allocation4 + $0x78] sm:$0xff] %vm780, %v4117
          %4144 = vst.msk [vmem:[#allocation4 + $0x80] sm:$0xff] %vm780, %v4118
          %4145 = vst.msk [vmem:[#allocation4 + $0x88] sm:$0xff] %vm780, %v4119
          %4146 = vst.msk [vmem:[#allocation4 + $0x90] sm:$0xff] %vm780, %v4120
          %4147 = vst.msk [vmem:[#allocation4 + $0x98] sm:$0xff] %vm780, %v4121
          %4148 = vst.msk [vmem:[#allocation4 + $0xa0] sm:$0xff] %vm780, %v4122
          %4149 = vst.msk [vmem:[#allocation4 + $0xa8] sm:$0xff] %vm780, %v4123
          %4150 = vst.msk [vmem:[#allocation4 + $0xb0] sm:$0xff] %vm780, %v4124
          %4151 = vst.msk [vmem:[#allocation4 + $0xb8] sm:$0xff] %vm780, %v4125
          %4152 = vst.msk [vmem:[#allocation4 + $0xc0] sm:$0xff] %vm780, %v4126
          %4153 = vst.msk [vmem:[#allocation4 + $0xc8] sm:$0xff] %vm780, %v4127
          %v4154 = vld [vmem:[#allocation4] ss:$2 sm:$0x3f]
          %s4155 = scalar_lea.vmem [#allocation4], 1
          %v4156 = vld [vmem:[%s4155] ss:$2 sm:$0x3f]
          %s4157 = scalar_lea.vmem [#allocation4], 16
          %v4158 = vld [vmem:[%s4157] ss:$2 sm:$0x3f]
          %s4159 = scalar_lea.vmem [#allocation4], 17
          %v4160 = vld [vmem:[%s4159] ss:$2 sm:$0x3f]
          %v4161 = vmax.f32 %v4154, %v4156
          %v4162 = vmax.f32 %v4158, %v4160
          %v4163 = vmax.f32 %v4161, %v4162
          %v4164 = vld [vmem:[%s4] sm:$0x1]
          %v4166 = vlaneseq
          %v4167 = vshrl.u32 %v4166, 7
          %v4168 = vsub.s32 0, %v4167
          %v4169 = vrot.slane %v4164, %v4168
          %v4171 = vadd.f32 %v4163, %v4169
          %v4172 = vmax.f32 %v4171, 0.0
          %vm4173 = vcmask 521216
          %4174 = vst.msk [vmem:[#allocation5] sm:$0x3f] %vm4173, %v4172
          %s4175 = scalar_lea.vmem [#allocation4], 32
          %v4176 = vld [vmem:[%s4175] ss:$2 sm:$0x3f]
          %s4177 = scalar_lea.vmem [#allocation4], 33
          %v4178 = vld [vmem:[%s4177] ss:$2 sm:$0x3f]
          %s4179 = scalar_lea.vmem [#allocation4], 48
          %v4180 = vld [vmem:[%s4179] ss:$2 sm:$0x3f]
          %s4181 = scalar_lea.vmem [#allocation4], 49
          %v4182 = vld [vmem:[%s4181] ss:$2 sm:$0x3f]
          %v4183 = vmax.f32 %v4176, %v4178
          %v4184 = vmax.f32 %v4180, %v4182
          %v4185 = vmax.f32 %v4183, %v4184
          %v4186 = vld [vmem:[%s4] sm:$0x1]
          %v4188 = vlaneseq
          %v4189 = vshrl.u32 %v4188, 7
          %v4190 = vsub.s32 0, %v4189
          %v4191 = vrot.slane %v4186, %v4190
          %v4193 = vadd.f32 %v4185, %v4191
          %v4194 = vmax.f32 %v4193, 0.0
          %4195 = vst.msk [vmem:[#allocation5 + $0x6] sm:$0x3f] %vm4173, %v4194
          %s4196 = scalar_lea.vmem [#allocation4], 64
          %v4197 = vld [vmem:[%s4196] ss:$2 sm:$0x3f]
          %s4198 = scalar_lea.vmem [#allocation4], 65
          %v4199 = vld [vmem:[%s4198] ss:$2 sm:$0x3f]
          %s4200 = scalar_lea.vmem [#allocation4], 80
          %v4201 = vld [vmem:[%s4200] ss:$2 sm:$0x3f]
          %s4202 = scalar_lea.vmem [#allocation4], 81
          %v4203 = vld [vmem:[%s4202] ss:$2 sm:$0x3f]
          %v4204 = vmax.f32 %v4197, %v4199
          %v4205 = vmax.f32 %v4201, %v4203
          %v4206 = vmax.f32 %v4204, %v4205
          %v4207 = vld [vmem:[%s4] sm:$0x1]
          %v4209 = vlaneseq
          %v4210 = vshrl.u32 %v4209, 7
          %v4211 = vsub.s32 0, %v4210
          %v4212 = vrot.slane %v4207, %v4211
          %v4214 = vadd.f32 %v4206, %v4212
          %v4215 = vmax.f32 %v4214, 0.0
          %4216 = vst.msk [vmem:[#allocation5 + $0xc] sm:$0x3f] %vm4173, %v4215
          %s4217 = scalar_lea.vmem [#allocation4], 96
          %v4218 = vld [vmem:[%s4217] ss:$2 sm:$0x3f]
          %s4219 = scalar_lea.vmem [#allocation4], 97
          %v4220 = vld [vmem:[%s4219] ss:$2 sm:$0x3f]
          %s4221 = scalar_lea.vmem [#allocation4], 112
          %v4222 = vld [vmem:[%s4221] ss:$2 sm:$0x3f]
          %s4223 = scalar_lea.vmem [#allocation4], 113
          %v4224 = vld [vmem:[%s4223] ss:$2 sm:$0x3f]
          %v4225 = vmax.f32 %v4218, %v4220
          %v4226 = vmax.f32 %v4222, %v4224
          %v4227 = vmax.f32 %v4225, %v4226
          %v4228 = vld [vmem:[%s4] sm:$0x1]
          %v4230 = vlaneseq
          %v4231 = vshrl.u32 %v4230, 7
          %v4232 = vsub.s32 0, %v4231
          %v4233 = vrot.slane %v4228, %v4232
          %v4235 = vadd.f32 %v4227, %v4233
          %v4236 = vmax.f32 %v4235, 0.0
          %4237 = vst.msk [vmem:[#allocation5 + $0x12] sm:$0x3f] %vm4173, %v4236
          %s4238 = scalar_lea.vmem [#allocation4], 128
          %v4239 = vld [vmem:[%s4238] ss:$2 sm:$0x3f]
          %s4240 = scalar_lea.vmem [#allocation4], 129
          %v4241 = vld [vmem:[%s4240] ss:$2 sm:$0x3f]
          %s4242 = scalar_lea.vmem [#allocation4], 144
          %v4243 = vld [vmem:[%s4242] ss:$2 sm:$0x3f]
          %s4244 = scalar_lea.vmem [#allocation4], 145
          %v4245 = vld [vmem:[%s4244] ss:$2 sm:$0x3f]
          %v4246 = vmax.f32 %v4239, %v4241
          %v4247 = vmax.f32 %v4243, %v4245
          %v4248 = vmax.f32 %v4246, %v4247
          %v4249 = vld [vmem:[%s4] sm:$0x1]
          %v4251 = vlaneseq
          %v4252 = vshrl.u32 %v4251, 7
          %v4253 = vsub.s32 0, %v4252
          %v4254 = vrot.slane %v4249, %v4253
          %v4256 = vadd.f32 %v4248, %v4254
          %v4257 = vmax.f32 %v4256, 0.0
          %4258 = vst.msk [vmem:[#allocation5 + $0x18] sm:$0x3f] %vm4173, %v4257
          %s4259 = scalar_lea.vmem [#allocation4], 160
          %v4260 = vld [vmem:[%s4259] ss:$2 sm:$0x3f]
          %s4261 = scalar_lea.vmem [#allocation4], 161
          %v4262 = vld [vmem:[%s4261] ss:$2 sm:$0x3f]
          %s4263 = scalar_lea.vmem [#allocation4], 176
          %v4264 = vld [vmem:[%s4263] ss:$2 sm:$0x3f]
          %s4265 = scalar_lea.vmem [#allocation4], 177
          %v4266 = vld [vmem:[%s4265] ss:$2 sm:$0x3f]
          %v4267 = vmax.f32 %v4260, %v4262
          %v4268 = vmax.f32 %v4264, %v4266
          %v4269 = vmax.f32 %v4267, %v4268
          %v4270 = vld [vmem:[%s4] sm:$0x1]
          %v4272 = vlaneseq
          %v4273 = vshrl.u32 %v4272, 7
          %v4274 = vsub.s32 0, %v4273
          %v4275 = vrot.slane %v4270, %v4274
          %v4277 = vadd.f32 %v4269, %v4275
          %v4278 = vmax.f32 %v4277, 0.0
          %4279 = vst.msk [vmem:[#allocation5 + $0x1e] sm:$0x3f] %vm4173, %v4278
          %v4280 = vld [vmem:[#allocation5] sm:$0xff]
          %v4281 = vld [vmem:[#allocation5 + $0x8] sm:$0xff]
          %v4282 = vld [vmem:[#allocation5 + $0x10] sm:$0xff]
          %v4283 = vpack.c.bf16 %v4281, %v4280
          %v4284 = vpack.c.bf16 %v4282, %v4282
          %v4285 = vld [vmem:[#allocation5 + $0x1] sm:$0xff]
          %v4286 = vld [vmem:[#allocation5 + $0x9] sm:$0xff]
          %v4287 = vld [vmem:[#allocation5 + $0x11] sm:$0xff]
          %v4288 = vpack.c.bf16 %v4286, %v4285
          %v4289 = vpack.c.bf16 %v4287, %v4287
          %v4290 = vld [vmem:[#allocation5 + $0x2] sm:$0xff]
          %v4291 = vld [vmem:[#allocation5 + $0xa] sm:$0xff]
          %v4292 = vld [vmem:[#allocation5 + $0x12] sm:$0xff]
          %v4293 = vpack.c.bf16 %v4291, %v4290
          %v4294 = vpack.c.bf16 %v4292, %v4292
          %4297 = vrot.lane.b32.xlu0 %v4288, 64
          %v4298 = vpop.permute.xlu0 %4297
          %4299 = vrot.lane.b32.xlu0 %v4289, 64
          %v4300 = vpop.permute.xlu0 %4299
          %v4303 = vsel %vm780, %v4283, %v4298
          %v4307 = vsel %vm780, %v4284, %v4300
          %v4309 = vld [vmem:[%s5] sm:$0xf]
          %v4310 = vld [vmem:[%s5 + $0x4] sm:$0xf]
          %v4311 = vld [vmem:[%s5 + $0x8] sm:$0xf]
          %v4312 = vld [vmem:[%s5 + $0xc] sm:$0xf]
          %v4313 = vld [vmem:[%s5 + $0x10] sm:$0xf]
          %v4314 = vld [vmem:[%s5 + $0x14] sm:$0xf]
          %v4315 = vld [vmem:[%s5 + $0x18] sm:$0xf]
          %v4316 = vld [vmem:[%s5 + $0x1c] sm:$0xf]
          %v4317 = vld [vmem:[%s5 + $0x20] sm:$0xf]
          %v4318 = vld [vmem:[%s5 + $0x24] sm:$0xf]
          %v4319 = vld [vmem:[%s5 + $0x28] sm:$0xf]
          %v4320 = vld [vmem:[%s5 + $0x2c] sm:$0xf]
          %v4321 = vld [vmem:[%s5 + $0x30] sm:$0xf]
          %v4322 = vld [vmem:[%s5 + $0x34] sm:$0xf]
          %v4323 = vld [vmem:[%s5 + $0x38] sm:$0xf]
          %v4324 = vld [vmem:[%s5 + $0x3c] sm:$0xf]
          %v4325 = vld [vmem:[%s5 + $0x40] sm:$0xf]
          %v4326 = vld [vmem:[%s5 + $0x44] sm:$0xf]
          %v4327 = vld [vmem:[%s5 + $0x48] sm:$0xf]
          %v4328 = vld [vmem:[%s5 + $0x4c] sm:$0xf]
          %v4329 = vld [vmem:[%s5 + $0x50] sm:$0xf]
          %v4330 = vld [vmem:[%s5 + $0x54] sm:$0xf]
          %v4331 = vld [vmem:[%s5 + $0x58] sm:$0xf]
          %v4332 = vld [vmem:[%s5 + $0x5c] sm:$0xf]
          %v4333 = vld [vmem:[#allocation5 + $0x6] sm:$0xff]
          %v4334 = vld [vmem:[#allocation5 + $0xe] sm:$0xff]
          %v4335 = vld [vmem:[#allocation5 + $0x16] sm:$0xff]
          %v4336 = vpack.c.bf16 %v4334, %v4333
          %v4337 = vpack.c.bf16 %v4335, %v4335
          %v4338 = vld [vmem:[#allocation5 + $0x7] sm:$0xff]
          %v4339 = vld [vmem:[#allocation5 + $0xf] sm:$0xff]
          %v4340 = vld [vmem:[#allocation5 + $0x17] sm:$0xff]
          %v4341 = vpack.c.bf16 %v4339, %v4338
          %v4342 = vpack.c.bf16 %v4340, %v4340
          %v4343 = vld [vmem:[#allocation5 + $0x18] sm:$0xff]
          %v4344 = vpack.c.bf16 %v4282, %v4281
          %v4345 = vpack.c.bf16 %v4343, %v4343
          %4348 = vrot.lane.b32.xlu0 %v4341, 64
          %v4349 = vpop.permute.xlu0 %4348
          %4350 = vrot.lane.b32.xlu0 %v4342, 64
          %v4351 = vpop.permute.xlu0 %4350
          %v4354 = vsel %vm780, %v4336, %v4349
          %v4358 = vsel %vm780, %v4337, %v4351
          %s4360 = scalar_lea.vmem %s5, 96
          %v4361 = vld [vmem:[%s4360] sm:$0xf]
          %v4362 = vld [vmem:[%s4360 + $0x4] sm:$0xf]
          %v4363 = vld [vmem:[%s4360 + $0x8] sm:$0xf]
          %v4364 = vld [vmem:[%s4360 + $0xc] sm:$0xf]
          %v4365 = vld [vmem:[%s4360 + $0x10] sm:$0xf]
          %v4366 = vld [vmem:[%s4360 + $0x14] sm:$0xf]
          %v4367 = vld [vmem:[%s4360 + $0x18] sm:$0xf]
          %v4368 = vld [vmem:[%s4360 + $0x1c] sm:$0xf]
          %v4369 = vld [vmem:[%s4360 + $0x20] sm:$0xf]
          %v4370 = vld [vmem:[%s4360 + $0x24] sm:$0xf]
          %v4371 = vld [vmem:[%s4360 + $0x28] sm:$0xf]
          %v4372 = vld [vmem:[%s4360 + $0x2c] sm:$0xf]
          %v4373 = vld [vmem:[%s4360 + $0x30] sm:$0xf]
          %v4374 = vld [vmem:[%s4360 + $0x34] sm:$0xf]
          %v4375 = vld [vmem:[%s4360 + $0x38] sm:$0xf]
          %v4376 = vld [vmem:[%s4360 + $0x3c] sm:$0xf]
          %v4377 = vld [vmem:[%s4360 + $0x40] sm:$0xf]
          %v4378 = vld [vmem:[%s4360 + $0x44] sm:$0xf]
          %v4379 = vld [vmem:[%s4360 + $0x48] sm:$0xf]
          %v4380 = vld [vmem:[%s4360 + $0x4c] sm:$0xf]
          %v4381 = vld [vmem:[%s4360 + $0x50] sm:$0xf]
          %v4382 = vld [vmem:[%s4360 + $0x54] sm:$0xf]
          %v4383 = vld [vmem:[%s4360 + $0x58] sm:$0xf]
          %v4384 = vld [vmem:[%s4360 + $0x5c] sm:$0xf]
          %v4409 = vunpack.c.l.b16 %v4361
          %v4410 = vunpack.c.l.b16 %v4362
          %v4411 = vunpack.c.l.b16 %v4363
          %v4412 = vunpack.c.l.b16 %v4364
          %v4413 = vunpack.c.l.b16 %v4365
          %v4414 = vunpack.c.l.b16 %v4366
          %v4415 = vunpack.c.l.b16 %v4367
          %v4416 = vunpack.c.l.b16 %v4368
          %v4417 = vunpack.c.l.b16 %v4369
          %v4418 = vunpack.c.l.b16 %v4370
          %v4419 = vunpack.c.l.b16 %v4371
          %v4420 = vunpack.c.l.b16 %v4372
          %v4421 = vunpack.c.l.b16 %v4373
          %v4422 = vunpack.c.l.b16 %v4374
          %v4423 = vunpack.c.l.b16 %v4375
          %v4424 = vunpack.c.l.b16 %v4376
          %v4425 = vunpack.c.l.b16 %v4377
          %v4426 = vunpack.c.l.b16 %v4378
          %v4427 = vunpack.c.l.b16 %v4379
          %v4428 = vunpack.c.l.b16 %v4380
          %v4429 = vunpack.c.l.b16 %v4381
          %v4430 = vunpack.c.l.b16 %v4382
          %v4431 = vunpack.c.l.b16 %v4383
          %v4432 = vunpack.c.l.b16 %v4384
          %v4433 = vpack.c.b16 %v4410, %v4409
          %v4434 = vpack.c.b16 %v4412, %v4411
          %v4435 = vpack.c.b16 %v4414, %v4413
          %v4436 = vpack.c.b16 %v4416, %v4415
          %v4437 = vpack.c.b16 %v4418, %v4417
          %v4438 = vpack.c.b16 %v4420, %v4419
          %v4439 = vpack.c.b16 %v4422, %v4421
          %v4440 = vpack.c.b16 %v4424, %v4423
          %v4441 = vpack.c.b16 %v4426, %v4425
          %v4442 = vpack.c.b16 %v4428, %v4427
          %v4443 = vpack.c.b16 %v4430, %v4429
          %v4444 = vpack.c.b16 %v4432, %v4431
          %v4458 = vsel %vm780, %v4344, 0
          %v4461 = vsel %vm780, %v4345, 0
          %4463 = vmatprep.subr.bf16.mxu0 0
          %4464 = vmatpush1.bf16.msra.mxu0 %v4433
          %4465 = vmatprep.subr.bf16.mxu0 0
          %4466 = vmatpush1.bf16.msra.mxu0 %v4434
          %4467 = vmatprep.subr.bf16.mxu0 0
          %4468 = vmatpush1.bf16.msra.mxu0 %v4435
          %4469 = vmatprep.subr.bf16.mxu0 0
          %4470 = vmatpush1.bf16.msra.mxu0 %v4436
          %4471 = vmatprep.subr.bf16.mxu0 0
          %4472 = vmatpush1.bf16.msra.mxu0 %v4437
          %4473 = vmatprep.subr.bf16.mxu0 0
          %4474 = vmatpush1.bf16.msra.mxu0 %v4438
          %4475 = vmatprep.subr.bf16.mxu0 0
          %4476 = vmatpush1.bf16.msra.mxu0 %v4439
          %4477 = vmatprep.subr.bf16.mxu0 0
          %4478 = vmatpush1.bf16.msra.mxu0 %v4440
          %4479 = vmatprep.subr.bf16.mxu0 0
          %4480 = vmatpush1.bf16.msra.mxu0 %v4441
          %4481 = vmatprep.subr.bf16.mxu0 0
          %4482 = vmatpush1.bf16.msra.mxu0 %v4442
          %4483 = vmatprep.subr.bf16.mxu0 0
          %4484 = vmatpush1.bf16.msra.mxu0 %v4443
          %4485 = vmatprep.subr.bf16.mxu0 0
          %4486 = vmatpush1.bf16.msra.mxu0 %v4444
          %4487 = vmatprep.subr.bf16.mxu0 0
          %4488 = vmatpush1.bf16.msra.mxu0 0
          %4489 = vmatprep.subr.bf16.mxu0 0
          %4490 = vmatpush1.bf16.msra.mxu0 0
          %4491 = vmatprep.subr.bf16.mxu0 0
          %4492 = vmatpush1.bf16.msra.mxu0 0
          %4493 = vmatprep.subr.bf16.mxu0 0
          %4494 = vmatpush1.bf16.msra.mxu0 0
          %4495 = vmatprep.mubr.bf16.mxu0 %v4458
          %4496 = vmatmul.mubr.bf16.gmra.mrb[0].mxu0 %v4354
          %v4497 = vpop.f32.mrb[0].mxu0
          %v4498 = vadd.f32 0.0, %v4497
          %v4499 = vpop.f32.mrb[0].mxu0
          %v4500 = vpop.f32.mrb[0].mxu0
          %v4501 = vadd.f32 0.0, %v4500
          %v4502 = vpop.f32.mrb[0].mxu0
          %4503 = vmatprep.mubr.bf16.mxu0 %v4461
          %4504 = vmatmul.mubr.bf16.gmra.mrb[0].mxu0 %v4358
          %v4505 = vpop.f32.mrb[0].mxu0
          %v4506 = vadd.f32 0.0, %v4505
          %v4507 = vpop.f32.mrb[0].mxu0
          %v4508 = vpop.f32.mrb[0].mxu0
          %v4509 = vpop.f32.mrb[0].mxu0
          %4510 = vdwg.mxu0
          %v4535 = vunpack.c.l.b16 %v4309
          %v4536 = vunpack.c.l.b16 %v4310
          %v4537 = vunpack.c.l.b16 %v4311
          %v4538 = vunpack.c.l.b16 %v4312
          %v4539 = vunpack.c.l.b16 %v4313
          %v4540 = vunpack.c.l.b16 %v4314
          %v4541 = vunpack.c.l.b16 %v4315
          %v4542 = vunpack.c.l.b16 %v4316
          %v4543 = vunpack.c.l.b16 %v4317
          %v4544 = vunpack.c.l.b16 %v4318
          %v4545 = vunpack.c.l.b16 %v4319
          %v4546 = vunpack.c.l.b16 %v4320
          %v4547 = vunpack.c.l.b16 %v4321
          %v4548 = vunpack.c.l.b16 %v4322
          %v4549 = vunpack.c.l.b16 %v4323
          %v4550 = vunpack.c.l.b16 %v4324
          %v4551 = vunpack.c.l.b16 %v4325
          %v4552 = vunpack.c.l.b16 %v4326
          %v4553 = vunpack.c.l.b16 %v4327
          %v4554 = vunpack.c.l.b16 %v4328
          %v4555 = vunpack.c.l.b16 %v4329
          %v4556 = vunpack.c.l.b16 %v4330
          %v4557 = vunpack.c.l.b16 %v4331
          %v4558 = vunpack.c.l.b16 %v4332
          %v4559 = vpack.c.b16 %v4536, %v4535
          %v4560 = vpack.c.b16 %v4538, %v4537
          %v4561 = vpack.c.b16 %v4540, %v4539
          %v4562 = vpack.c.b16 %v4542, %v4541
          %v4563 = vpack.c.b16 %v4544, %v4543
          %v4564 = vpack.c.b16 %v4546, %v4545
          %v4565 = vpack.c.b16 %v4548, %v4547
          %v4566 = vpack.c.b16 %v4550, %v4549
          %v4567 = vpack.c.b16 %v4552, %v4551
          %v4568 = vpack.c.b16 %v4554, %v4553
          %v4569 = vpack.c.b16 %v4556, %v4555
          %v4570 = vpack.c.b16 %v4558, %v4557
          %v4584 = vsel %vm780, %v4293, 0
          %v4587 = vsel %vm780, %v4294, 0
          %4589 = vmatprep.subr.bf16.mxu0 0
          %4590 = vmatpush1.bf16.msra.mxu0 %v4559
          %4591 = vmatprep.subr.bf16.mxu0 0
          %4592 = vmatpush1.bf16.msra.mxu0 %v4560
          %4593 = vmatprep.subr.bf16.mxu0 0
          %4594 = vmatpush1.bf16.msra.mxu0 %v4561
          %4595 = vmatprep.subr.bf16.mxu0 0
          %4596 = vmatpush1.bf16.msra.mxu0 %v4562
          %4597 = vmatprep.subr.bf16.mxu0 0
          %4598 = vmatpush1.bf16.msra.mxu0 %v4563
          %4599 = vmatprep.subr.bf16.mxu0 0
          %4600 = vmatpush1.bf16.msra.mxu0 %v4564
          %4601 = vmatprep.subr.bf16.mxu0 0
          %4602 = vmatpush1.bf16.msra.mxu0 %v4565
          %4603 = vmatprep.subr.bf16.mxu0 0
          %4604 = vmatpush1.bf16.msra.mxu0 %v4566
          %4605 = vmatprep.subr.bf16.mxu0 0
          %4606 = vmatpush1.bf16.msra.mxu0 %v4567
          %4607 = vmatprep.subr.bf16.mxu0 0
          %4608 = vmatpush1.bf16.msra.mxu0 %v4568
          %4609 = vmatprep.subr.bf16.mxu0 0
          %4610 = vmatpush1.bf16.msra.mxu0 %v4569
          %4611 = vmatprep.subr.bf16.mxu0 0
          %4612 = vmatpush1.bf16.msra.mxu0 %v4570
          %4613 = vmatprep.subr.bf16.mxu0 0
          %4614 = vmatpush1.bf16.msra.mxu0 0
          %4615 = vmatprep.subr.bf16.mxu0 0
          %4616 = vmatpush1.bf16.msra.mxu0 0
          %4617 = vmatprep.subr.bf16.mxu0 0
          %4618 = vmatpush1.bf16.msra.mxu0 0
          %4619 = vmatprep.subr.bf16.mxu0 0
          %4620 = vmatpush1.bf16.msra.mxu0 0
          %4621 = vmatprep.mubr.bf16.mxu0 %v4584
          %4622 = vmatmul.mubr.bf16.gmra.mrb[0].mxu0 %v4303
          %v4623 = vpop.f32.mrb[0].mxu0
          %v4624 = vadd.f32 %v4498, %v4623
          %v4625 = vpop.f32.mrb[0].mxu0
          %v4626 = vpop.f32.mrb[0].mxu0
          %v4627 = vadd.f32 %v4501, %v4626
          %v4628 = vpop.f32.mrb[0].mxu0
          %4629 = vmatprep.mubr.bf16.mxu0 %v4587
          %4630 = vmatmul.mubr.bf16.gmra.mrb[0].mxu0 %v4307
          %v4631 = vpop.f32.mrb[0].mxu0
          %v4632 = vadd.f32 %v4506, %v4631
          %v4633 = vpop.f32.mrb[0].mxu0
          %v4634 = vpop.f32.mrb[0].mxu0
          %v4635 = vpop.f32.mrb[0].mxu0
          %4636 = vdwg.mxu0
          %v4637 = vld [vmem:[#allocation5 + $0xc] sm:$0xff]
          %v4638 = vld [vmem:[#allocation5 + $0x14] sm:$0xff]
          %v4639 = vld [vmem:[#allocation5 + $0x1c] sm:$0xff]
          %v4640 = vpack.c.bf16 %v4638, %v4637
          %v4641 = vpack.c.bf16 %v4639, %v4639
          %v4642 = vld [vmem:[#allocation5 + $0xd] sm:$0xff]
          %v4643 = vld [vmem:[#allocation5 + $0x15] sm:$0xff]
          %v4644 = vld [vmem:[#allocation5 + $0x1d] sm:$0xff]
          %v4645 = vpack.c.bf16 %v4643, %v4642
          %v4646 = vpack.c.bf16 %v4644, %v4644
          %v4647 = vld [vmem:[#allocation5 + $0xe] sm:$0xff]
          %v4648 = vld [vmem:[#allocation5 + $0x16] sm:$0xff]
          %v4649 = vld [vmem:[#allocation5 + $0x1e] sm:$0xff]
          %v4650 = vpack.c.bf16 %v4648, %v4647
          %v4651 = vpack.c.bf16 %v4649, %v4649
          %4654 = vrot.lane.b32.xlu0 %v4645, 64
          %v4655 = vpop.permute.xlu0 %4654
          %4656 = vrot.lane.b32.xlu0 %v4646, 64
          %v4657 = vpop.permute.xlu0 %4656
          %v4660 = vsel %vm780, %v4640, %v4655
          %v4664 = vsel %vm780, %v4641, %v4657
          %s4666 = scalar_lea.vmem %s5, 192
          %v4667 = vld [vmem:[%s4666] sm:$0xf]
          %v4668 = vld [vmem:[%s4666 + $0x4] sm:$0xf]
          %v4669 = vld [vmem:[%s4666 + $0x8] sm:$0xf]
          %v4670 = vld [vmem:[%s4666 + $0xc] sm:$0xf]
          %v4671 = vld [vmem:[%s4666 + $0x10] sm:$0xf]
          %v4672 = vld [vmem:[%s4666 + $0x14] sm:$0xf]
          %v4673 = vld [vmem:[%s4666 + $0x18] sm:$0xf]
          %v4674 = vld [vmem:[%s4666 + $0x1c] sm:$0xf]
          %v4675 = vld [vmem:[%s4666 + $0x20] sm:$0xf]
          %v4676 = vld [vmem:[%s4666 + $0x24] sm:$0xf]
          %v4677 = vld [vmem:[%s4666 + $0x28] sm:$0xf]
          %v4678 = vld [vmem:[%s4666 + $0x2c] sm:$0xf]
          %v4679 = vld [vmem:[%s4666 + $0x30] sm:$0xf]
          %v4680 = vld [vmem:[%s4666 + $0x34] sm:$0xf]
          %v4681 = vld [vmem:[%s4666 + $0x38] sm:$0xf]
          %v4682 = vld [vmem:[%s4666 + $0x3c] sm:$0xf]
          %v4683 = vld [vmem:[%s4666 + $0x40] sm:$0xf]
          %v4684 = vld [vmem:[%s4666 + $0x44] sm:$0xf]
          %v4685 = vld [vmem:[%s4666 + $0x48] sm:$0xf]
          %v4686 = vld [vmem:[%s4666 + $0x4c] sm:$0xf]
          %v4687 = vld [vmem:[%s4666 + $0x50] sm:$0xf]
          %v4688 = vld [vmem:[%s4666 + $0x54] sm:$0xf]
          %v4689 = vld [vmem:[%s4666 + $0x58] sm:$0xf]
          %v4690 = vld [vmem:[%s4666 + $0x5c] sm:$0xf]
          %v4715 = vunpack.c.l.b16 %v4667
          %v4716 = vunpack.c.l.b16 %v4668
          %v4717 = vunpack.c.l.b16 %v4669
          %v4718 = vunpack.c.l.b16 %v4670
          %v4719 = vunpack.c.l.b16 %v4671
          %v4720 = vunpack.c.l.b16 %v4672
          %v4721 = vunpack.c.l.b16 %v4673
          %v4722 = vunpack.c.l.b16 %v4674
          %v4723 = vunpack.c.l.b16 %v4675
          %v4724 = vunpack.c.l.b16 %v4676
          %v4725 = vunpack.c.l.b16 %v4677
          %v4726 = vunpack.c.l.b16 %v4678
          %v4727 = vunpack.c.l.b16 %v4679
          %v4728 = vunpack.c.l.b16 %v4680
          %v4729 = vunpack.c.l.b16 %v4681
          %v4730 = vunpack.c.l.b16 %v4682
          %v4731 = vunpack.c.l.b16 %v4683
          %v4732 = vunpack.c.l.b16 %v4684
          %v4733 = vunpack.c.l.b16 %v4685
          %v4734 = vunpack.c.l.b16 %v4686
          %v4735 = vunpack.c.l.b16 %v4687
          %v4736 = vunpack.c.l.b16 %v4688
          %v4737 = vunpack.c.l.b16 %v4689
          %v4738 = vunpack.c.l.b16 %v4690
          %v4739 = vpack.c.b16 %v4716, %v4715
          %v4740 = vpack.c.b16 %v4718, %v4717
          %v4741 = vpack.c.b16 %v4720, %v4719
          %v4742 = vpack.c.b16 %v4722, %v4721
          %v4743 = vpack.c.b16 %v4724, %v4723
          %v4744 = vpack.c.b16 %v4726, %v4725
          %v4745 = vpack.c.b16 %v4728, %v4727
          %v4746 = vpack.c.b16 %v4730, %v4729
          %v4747 = vpack.c.b16 %v4732, %v4731
          %v4748 = vpack.c.b16 %v4734, %v4733
          %v4749 = vpack.c.b16 %v4736, %v4735
          %v4750 = vpack.c.b16 %v4738, %v4737
          %v4764 = vsel %vm780, %v4650, 0
          %v4767 = vsel %vm780, %v4651, 0
          %4769 = vmatprep.subr.bf16.mxu0 0
          %4770 = vmatpush1.bf16.msra.mxu0 %v4739
          %4771 = vmatprep.subr.bf16.mxu0 0
          %4772 = vmatpush1.bf16.msra.mxu0 %v4740
          %4773 = vmatprep.subr.bf16.mxu0 0
          %4774 = vmatpush1.bf16.msra.mxu0 %v4741
          %4775 = vmatprep.subr.bf16.mxu0 0
          %4776 = vmatpush1.bf16.msra.mxu0 %v4742
          %4777 = vmatprep.subr.bf16.mxu0 0
          %4778 = vmatpush1.bf16.msra.mxu0 %v4743
          %4779 = vmatprep.subr.bf16.mxu0 0
          %4780 = vmatpush1.bf16.msra.mxu0 %v4744
          %4781 = vmatprep.subr.bf16.mxu0 0
          %4782 = vmatpush1.bf16.msra.mxu0 %v4745
          %4783 = vmatprep.subr.bf16.mxu0 0
          %4784 = vmatpush1.bf16.msra.mxu0 %v4746
          %4785 = vmatprep.subr.bf16.mxu0 0
          %4786 = vmatpush1.bf16.msra.mxu0 %v4747
          %4787 = vmatprep.subr.bf16.mxu0 0
          %4788 = vmatpush1.bf16.msra.mxu0 %v4748
          %4789 = vmatprep.subr.bf16.mxu0 0
          %4790 = vmatpush1.bf16.msra.mxu0 %v4749
          %4791 = vmatprep.subr.bf16.mxu0 0
          %4792 = vmatpush1.bf16.msra.mxu0 %v4750
          %4793 = vmatprep.subr.bf16.mxu0 0
          %4794 = vmatpush1.bf16.msra.mxu0 0
          %4795 = vmatprep.subr.bf16.mxu0 0
          %4796 = vmatpush1.bf16.msra.mxu0 0
          %4797 = vmatprep.subr.bf16.mxu0 0
          %4798 = vmatpush1.bf16.msra.mxu0 0
          %4799 = vmatprep.subr.bf16.mxu0 0
          %4800 = vmatpush1.bf16.msra.mxu0 0
          %4801 = vmatprep.mubr.bf16.mxu0 %v4764
          %4802 = vmatmul.mubr.bf16.gmra.mrb[0].mxu0 %v4660
          %v4803 = vpop.f32.mrb[0].mxu0
          %v4804 = vadd.f32 0.0, %v4803
          %v4805 = vpop.f32.mrb[0].mxu0
          %v4806 = vpop.f32.mrb[0].mxu0
          %v4807 = vadd.f32 0.0, %v4806
          %v4808 = vpop.f32.mrb[0].mxu0
          %4809 = vmatprep.mubr.bf16.mxu0 %v4767
          %4810 = vmatmul.mubr.bf16.gmra.mrb[0].mxu0 %v4664
          %v4811 = vpop.f32.mrb[0].mxu0
          %v4812 = vadd.f32 0.0, %v4811
          %v4813 = vpop.f32.mrb[0].mxu0
          %v4814 = vpop.f32.mrb[0].mxu0
          %v4815 = vpop.f32.mrb[0].mxu0
          %4816 = vdwg.mxu0
          %v4817 = vadd.f32 %v4624, %v4804
          %v4818 = vadd.f32 %v4627, %v4807
          %v4819 = vadd.f32 %v4632, %v4812
          %v4821 = vrot.slane %v4817, 1
          %v4823 = vmax.f32 %v4817, %v4821
          %v4825 = vrot.slane %v4823, 6
          %v4827 = vmax.f32 %v4823, %v4825
          %v4828 = vld [vmem:[%s6] sm:$0x1]
          %v4829 = vadd.f32 %v4827, %v4828
          %v4830 = vmax.f32 %v4829, 0.0
          %v4832 = vrot.slane %v4818, 1
          %v4834 = vmax.f32 %v4818, %v4832
          %v4836 = vrot.slane %v4834, 6
          %v4838 = vmax.f32 %v4823, %v4836
          %v4840 = vlaneseq
          %v4841 = vshrl.u32 %v4840, 7
          %v4842 = vsub.s32 0, %v4841
          %v4843 = vrot.slane %v4828, %v4842
          %v4845 = vadd.f32 %v4838, %v4843
          %v4846 = vmax.f32 %v4845, 0.0
          %v4848 = vrot.slane %v4846, 2
          %v4850 = vadd.f32 %v4830, %v4848
          %v4852 = vrot.slane %v4819, 1
          %v4854 = vmax.f32 %v4819, %v4852
          %v4856 = vrot.slane %v4854, 6
          %v4858 = vmax.f32 %v4834, %v4856
          %v4859 = vadd.f32 %v4858, %v4843
          %v4860 = vmax.f32 %v4859, 0.0
          %v4862 = vrot.slane %v4860, 4
          %v4864 = vadd.f32 %v4850, %v4862
          %v4865 = vrot.slane %v4860, 6
          %v4867 = vadd.f32 %v4864, %v4865
          %v4868 = vmul.f32 %v4867, 0.25
          %s4869 = scalar_lea.vmem %s274, %s292 [#allocation6]
          %vm4870 = vcmask 253952
          %4871 = vst.msk [vmem:[%s4869] sm:$0x1] %vm4870, %v4868
        $region57: #{network_forward.1} parent=47 // loop_footer
          %s296 = sadd.s32 1, %s292
        $region58: #{network_forward.1} parent=47 // loop_footer_branch
          %291 = sbr.rel target = $region54
        $region59: #{network_forward.1} parent=47 // loop_exit
          _
        %s4872 = sand.u32 %s181, 1
        %s4873 = scalar_lea.sflag [#allocation7], %s4872
        %s4874 = sand.u32 %s181, 1
        %s4875 = smul.addr %s4874, 2
        %s4876 = scalar_lea.vmem [#allocation6], %s4875
        // Predicated region
        $region60: #{network_forward.1} parent=47 // pred_check
          %p4877 = pneg %p191
        $region61: #{network_forward.1} parent=47 // pred_check_branch
          %4879 = sbr.rel (%p4877) target = $region63
        $region62: #{network_forward.1} parent=47 // pred_region
          %s4881 = ssub.s32 32, 32
          %4882 = vsyncadd %s4873, %s4881
          %s4883 = smul.addr %s21, 32
          %s4884 = scalar_lea.hbm %s7, %s4883
          %s4886 = sshll.u32 %s4876, 4
          %s4887 = int_to_ptr.vmem [resolvable:$true] %s4886
          %4889 = dma.vmem_to_hbm [thread:$0]  %s4887, 32, %s4884, %s4873
        $region63: #{network_forward.1} parent=47 // pred_fallthru
          _
      $region48: #{network_forward.1} parent=5 // pred_fallthru
        _
      %p4890 = scmp.le.s32.totalorder 2, %s16
      // Predicated region
      $region64: #{network_forward.1} parent=5 // pred_check
        %p4891 = pneg %p4890
      $region65: #{network_forward.1} parent=5 // pred_check_branch
        %4893 = sbr.rel (%p4891) target = $region67
      $region66: #{network_forward.1} parent=5 // pred_region
        %s4894 = ssub.s32 %s16, 2
        // Predicated region
        $region68: #{network_forward.1} parent=66 // pred_check
          %p4895 = pneg %p197
        $region69: #{network_forward.1} parent=66 // pred_check_branch
          %4897 = sbr.rel (%p4895) target = $region71
        $region70: #{network_forward.1} parent=66 // pred_region
          %s4898 = sand.u32 %s182, 1
          %s4899 = scalar_lea.sflag [#allocation7], %s4898
          %s4900 = sand.u32 %s182, 1
          %s4901 = smul.addr %s4900, 2
          %s4902 = scalar_lea.vmem [#allocation6], %s4901
          %4903 = dma.done %s4899, 32
        $region71: #{network_forward.1} parent=66 // pred_fallthru
          _
      $region67: #{network_forward.1} parent=5 // pred_fallthru
        _
    $region6: #{network_forward.1} parent=1 // loop_footer
      %s20 = sadd.s32 1, %s16
    $region7: #{network_forward.1} parent=1 // loop_footer_branch
      %15 = sbr.rel target = $region3
    $region8: #{network_forward.1} parent=1 // loop_exit
      _
    %4904 = vsyncpa [#allocation7], 1
    %s4905 = scalar_lea.sflag [#allocation7], 1
    %4906 = vsyncpa %s4905, 1

</llo_original>
